<compile_context>
chip_gen: v7x
topology: tpu7x:2x2x1
jax: 0.10.0
libtpu: 0.0.40
codegen_flags: <defaults>
</compile_context>

<pallas_src>
import functools

import numpy as np
import jax
import jax.numpy as jnp
from jax.experimental import pallas as pl
from jax.experimental.pallas import tpu as pltpu


# ---------------------------------------------------------------------------
# Fused Pallas kernel
# ---------------------------------------------------------------------------
def lenet_fused_kernel(x_ref, t1_ref, b1_ref, pp1_ref, ss1_ref,
                       r2_ref, t2_ref, b2_ref, pp2_ref, ss2_ref,
                       g_ref, w3_ref, b3_ref, w4_ref, b4_ref, w5_ref, b5_ref,
                       o_ref):
    """Whole NetworkWithBlock forward.

    x_ref:   (B, 28, 28)           input image (Cin=1 squeezed away)
    t1_ref:  (5, 28, 144)          block1 Toeplitz conv mats (BN folded)
    b1_ref:  (1, 144)              block1 folded bias, tiled over (ow, c)
    pp1_ref: (2, B*12, B*24)       H-pool row-selection (even/odd rows)
    ss1_ref: (2, 144, 72)          W-pool lane-selection (even/odd cols)
    r2_ref:  (5, B*8, B*12)        block2 row-shift selection per kh
    t2_ref:  (5, 72, 128)          block2 Toeplitz conv mats (BN folded)
    b2_ref:  (1, 128)              block2 folded bias, tiled over (ow, c)
    pp2_ref: (2, B*4, B*8)         block2 H-pool row-selection
    ss2_ref: (2, 128, 64)          block2 W-pool lane-selection
    g_ref:   (4, B, B*4)           fc3 spatial-row grouping selection
    w3_ref:  (4, 64, 256) bf16     fc3 weights, blocked by pooled row ph
    w4_ref:  (256, 84) bf16        fc4 weights (pre-transposed)
    w5_ref:  (84, 10) f32          final fc weights (pre-transposed)
    b*_ref:  (1, N) f32            fc biases
    o_ref:   (B, 10) f32           logits
    """
    f32 = jnp.float32
    bf16 = jnp.bfloat16
    B = x_ref.shape[0]
    KH = t1_ref.shape[0]          # 5
    OH1 = 24                      # 28 - 5 + 1
    nph = g_ref.shape[0]          # 4

    # ---- block1: Conv2d(1->6,5) + folded BN + ReLU (5 Toeplitz matmuls) ----
    acc1 = jnp.dot(x_ref[:, 0:OH1, :].reshape(B * OH1, -1), t1_ref[0],
                   preferred_element_type=f32)
    for kh in range(1, KH):
        rows = x_ref[:, kh:kh + OH1, :].reshape(B * OH1, -1)      # (B*24, 28)
        acc1 = acc1 + jnp.dot(rows, t1_ref[kh], preferred_element_type=f32)
    z1 = jnp.maximum(acc1 + b1_ref[...], 0.0)                     # (B*24, 144)

    # ---- 2x2 maxpool #1: H via row selection, W via lane selection ---------
    yh1 = jnp.maximum(jnp.dot(pp1_ref[0], z1, preferred_element_type=f32),
                      jnp.dot(pp1_ref[1], z1, preferred_element_type=f32))
    a1 = jnp.maximum(jnp.dot(yh1, ss1_ref[0], preferred_element_type=f32),
                     jnp.dot(yh1, ss1_ref[1], preferred_element_type=f32))
    # a1: (B*12, 72)  rows=(b, h2)  lanes=(w2, c)

    # ---- block2: Conv2d(6->16,5) + folded BN + ReLU -------------------------
    rows = jnp.dot(r2_ref[0], a1, preferred_element_type=f32)     # (B*8, 72)
    acc2 = jnp.dot(rows, t2_ref[0], preferred_element_type=f32)
    for kh in range(1, KH):
        rows = jnp.dot(r2_ref[kh], a1, preferred_element_type=f32)
        acc2 = acc2 + jnp.dot(rows, t2_ref[kh], preferred_element_type=f32)
    z2 = jnp.maximum(acc2 + b2_ref[...], 0.0)                     # (B*8, 128)

    # ---- 2x2 maxpool #2 ------------------------------------------------------
    mh2 = jnp.maximum(jnp.dot(pp2_ref[0], z2, preferred_element_type=f32),
                      jnp.dot(pp2_ref[1], z2, preferred_element_type=f32))
    p3 = jnp.maximum(jnp.dot(mh2, ss2_ref[0], preferred_element_type=f32),
                     jnp.dot(mh2, ss2_ref[1], preferred_element_type=f32))
    # p3: (B*4, 64)  rows=(b, ph)  lanes=(pw, co)

    # ---- fc3 (256->256) + ReLU: spatially blocked, bf16 MXU feed ------------
    acc3 = None
    for ph in range(nph):
        xb = jnp.dot(g_ref[ph], p3, preferred_element_type=f32)   # (B, 64)
        term = jnp.dot(xb.astype(bf16), w3_ref[ph], preferred_element_type=f32)
        acc3 = term if acc3 is None else acc3 + term
    h3 = jnp.maximum(acc3 + b3_ref[...], 0.0)                     # (B, 256)

    # ---- fc4 (256->84) + ReLU, fc (84->10) ----------------------------------
    h4 = jnp.dot(h3.astype(bf16), w4_ref[...], preferred_element_type=f32)
    h4 = jnp.maximum(h4 + b4_ref[...], 0.0)                       # (B, 84)
    out = jnp.dot(h4, w5_ref[...], preferred_element_type=f32) + b5_ref[...]
    o_ref[...] = out                                              # (B, 10)


# ---------------------------------------------------------------------------
# Wrapper
# ---------------------------------------------------------------------------
@jax.jit
def network_forward(prep, x_nchw):
    B = x_nchw.shape[0]
    x = x_nchw.reshape(B, 28, 28)          # NCHW with C=1 -> (B,H,W), free
    operands = (x,) + tuple(prep)
    vmem = pl.BlockSpec(memory_space=pltpu.MemorySpace.VMEM)
    return pl.pallas_call(
        lenet_fused_kernel,
        out_shape=jax.ShapeDtypeStruct((B, 10), jnp.float32),
        in_specs=[vmem] * len(operands),
        out_specs=vmem,
        compiler_params=pltpu.CompilerParams(
            vmem_limit_bytes=32 * 1024 * 1024),
    )(*operands)


# ---------------------------------------------------------------------------
# Parameter preparation (BN folding, Toeplitz / selection matrix building)
# ---------------------------------------------------------------------------
def _toeplitz_conv_mat(wf, w_in):
    """wf: (Cout, Cin, KH, KW) -> (KH, w_in*Cin, OW*Cout) banded matmul mats."""
    cout, cin, khs, kws = wf.shape
    ow = w_in - kws + 1
    t = np.zeros((khs, w_in * cin, ow * cout), np.float32)
    for kh in range(khs):
        for kw in range(kws):
            for o in range(ow):
                wi = o + kw
                t[kh, wi * cin:(wi + 1) * cin, o * cout:(o + 1) * cout] = \
                    wf[:, :, kh, kw].T
    return t


def _row_pool_mats(n_out):
    e = np.zeros((n_out, 2 * n_out), np.float32)
    o = np.zeros((n_out, 2 * n_out), np.float32)
    idx = np.arange(n_out)
    e[idx, 2 * idx] = 1.0
    o[idx, 2 * idx + 1] = 1.0
    return e, o


def _col_pool_mats(nw_out, nc):
    e = np.zeros((2 * nw_out * nc, nw_out * nc), np.float32)
    o = np.zeros((2 * nw_out * nc, nw_out * nc), np.float32)
    for pw in range(nw_out):
        for c in range(nc):
            e[(2 * pw) * nc + c, pw * nc + c] = 1.0
            o[(2 * pw + 1) * nc + c, pw * nc + c] = 1.0
    return e, o


def _row_shift_sel(batch, n_out, n_in, khs):
    r = np.zeros((khs, batch * n_out, batch * n_in), np.float32)
    for kh in range(khs):
        for b in range(batch):
            for oh in range(n_out):
                r[kh, b * n_out + oh, b * n_in + oh + kh] = 1.0
    return r


def _fc3_group_sel(batch, nph):
    g = np.zeros((nph, batch, batch * nph), np.float32)
    for ph in range(nph):
        for b in range(batch):
            g[ph, b, b * nph + ph] = 1.0
    return g


def prepare_params(params, batch, eps=1e-5):
    def fold_conv_bn(block):
        w, b, gamma, beta, mean, var = (np.asarray(t, np.float32) for t in block)
        scale = gamma / np.sqrt(var + eps)
        w_f = w * scale[:, None, None, None]            # (Cout, Cin, KH, KW)
        shift = (b - mean) * scale + beta               # (Cout,)
        return w_f, shift

    wf1, sh1 = fold_conv_bn(params["block1"])           # (6,1,5,5)
    wf2, sh2 = fold_conv_bn(params["block2"])           # (16,6,5,5)

    t1 = _toeplitz_conv_mat(wf1, w_in=28)               # (5, 28, 144)
    t2 = _toeplitz_conv_mat(wf2, w_in=12)               # (5, 72, 128)
    b1 = np.tile(sh1, 24)[None, :]                      # (1, 144)
    b2 = np.tile(sh2, 8)[None, :]                       # (1, 128)

    pp1 = np.stack(_row_pool_mats(batch * 12))          # (2, B*12, B*24)
    ss1 = np.stack(_col_pool_mats(12, 6))               # (2, 144, 72)
    r2 = _row_shift_sel(batch, 8, 12, 5)                # (5, B*8, B*12)
    pp2 = np.stack(_row_pool_mats(batch * 4))           # (2, B*4, B*8)
    ss2 = np.stack(_col_pool_mats(4, 16))               # (2, 128, 64)
    g = _fc3_group_sel(batch, 4)                        # (4, B, B*4)

    # fc3 acts on PyTorch's (c, h, w) flatten of the (16,4,4) map; our pooled
    # activation is blocked as rows=(b, ph), lanes=(pw, co), so regroup the
    # fc3 weight into 4 per-ph (64, 256) blocks.
    w3 = np.asarray(params["fc3_w"], np.float32)        # (256_out, 256_in)
    w3r = np.zeros((4, 64, 256), np.float32)
    for ph in range(4):
        for pw in range(4):
            for co in range(16):
                w3r[ph, pw * 16 + co, :] = w3[:, co * 16 + ph * 4 + pw]

    w4 = np.asarray(params["fc4_w"], np.float32).T      # (256, 84)
    w5 = np.asarray(params["fc_w"], np.float32).T       # (84, 10)

    jf = lambda a: jnp.asarray(a, jnp.float32)
    jh = lambda a: jnp.asarray(a, jnp.bfloat16)
    return (
        jf(t1), jf(b1), jf(pp1), jf(ss1),
        jf(r2), jf(t2), jf(b2), jf(pp2), jf(ss2),
        jf(g),
        jh(w3r), jf(np.asarray(params["fc3_b"], np.float32)[None, :]),
        jh(w4), jf(np.asarray(params["fc4_b"], np.float32)[None, :]),
        jf(w5), jf(np.asarray(params["fc_b"], np.float32)[None, :]),
    )


# ---------------------------------------------------------------------------
# Deterministic synthetic parameter initialization (not a checkpoint load)
# ---------------------------------------------------------------------------
def init_params(key):
    ks = jax.random.split(key, 16)

    def conv_bn(kw, kb, kg, kbt, km, kv, cout, cin, ksz):
        w = 0.1 * jax.random.normal(kw, (cout, cin, ksz, ksz), jnp.float32)
        b = 0.05 * jax.random.normal(kb, (cout,), jnp.float32)
        gamma = 1.0 + 0.1 * jax.random.normal(kg, (cout,), jnp.float32)
        beta = 0.1 * jax.random.normal(kbt, (cout,), jnp.float32)
        mean = 0.1 * jax.random.normal(km, (cout,), jnp.float32)
        var = 1.0 + 0.1 * jnp.abs(jax.random.normal(kv, (cout,), jnp.float32))
        return (w, b, gamma, beta, mean, var)

    return {
        "block1": conv_bn(*ks[0:6], cout=6, cin=1, ksz=5),
        "block2": conv_bn(*ks[6:12], cout=16, cin=6, ksz=5),
        "fc3_w": 0.05 * jax.random.normal(ks[12], (256, 256), jnp.float32),
        "fc3_b": jnp.zeros((256,), jnp.float32),
        "fc4_w": 0.05 * jax.random.normal(ks[13], (84, 256), jnp.float32),
        "fc4_b": jnp.zeros((84,), jnp.float32),
        "fc_w": 0.05 * jax.random.normal(ks[14], (10, 84), jnp.float32),
        "fc_b": 0.01 * jax.random.normal(ks[15], (10,), jnp.float32),
    }


if __name__ == "__main__":
    root = jax.random.PRNGKey(0)
    k_params, k_x = jax.random.split(root)
    params = init_params(k_params)

    BATCH = 2
    prep = prepare_params(params, batch=BATCH)
    # MNIST-like input implied by the 16*4*4 flatten: (B, 1, 28, 28) NCHW.
    x = jax.random.normal(k_x, (BATCH, 1, 28, 28), jnp.float32)

    out = network_forward(prep, x)
    out = jax.block_until_ready(out)
    assert out.shape == (BATCH, 10) and out.dtype == jnp.float32
    assert bool(jnp.all(jnp.isfinite(out)))
    print("KERNEL_OK")
</pallas_src>

<mosaic_0001>
module attributes {stable_mosaic.version = 11 : i64} {
  func.func @lenet_fused_kernel(%arg0: memref<2x28x28xf32, #tpu.memory_space<vmem>>, %arg1: memref<5x28x144xf32, #tpu.memory_space<vmem>>, %arg2: memref<1x144xf32, #tpu.memory_space<vmem>>, %arg3: memref<2x24x48xf32, #tpu.memory_space<vmem>>, %arg4: memref<2x144x72xf32, #tpu.memory_space<vmem>>, %arg5: memref<5x16x24xf32, #tpu.memory_space<vmem>>, %arg6: memref<5x72x128xf32, #tpu.memory_space<vmem>>, %arg7: memref<1x128xf32, #tpu.memory_space<vmem>>, %arg8: memref<2x8x16xf32, #tpu.memory_space<vmem>>, %arg9: memref<2x128x64xf32, #tpu.memory_space<vmem>>, %arg10: memref<4x2x8xf32, #tpu.memory_space<vmem>>, %arg11: memref<4x64x256xbf16, #tpu.memory_space<vmem>>, %arg12: memref<1x256xf32, #tpu.memory_space<vmem>>, %arg13: memref<256x84xbf16, #tpu.memory_space<vmem>>, %arg14: memref<1x84xf32, #tpu.memory_space<vmem>>, %arg15: memref<84x10xf32, #tpu.memory_space<vmem>>, %arg16: memref<1x10xf32, #tpu.memory_space<vmem>>, %arg17: memref<2x10xf32, #tpu.memory_space<vmem>>) attributes {dimension_semantics = [], scalar_prefetch = 0 : i64, scratch_operands = 0 : i64, tpu.core_type = #tpu.core_type<tc>} {
    %c0 = arith.constant 0 : index
    %c0_0 = arith.constant 0 : index
    %c0_1 = arith.constant 0 : index
    %0 = vector.load %arg0[%c0, %c0_0, %c0_1] : memref<2x28x28xf32, #tpu.memory_space<vmem>>, vector<2x24x28xf32>
    %1 = vector.shape_cast %0 : vector<2x24x28xf32> to vector<48x28xf32>
    %c0_2 = arith.constant 0 : index
    %c0_3 = arith.constant 0 : index
    %c0_4 = arith.constant 0 : index
    %2 = vector.load %arg1[%c0_2, %c0_3, %c0_4] : memref<5x28x144xf32, #tpu.memory_space<vmem>>, vector<1x28x144xf32>
    %3 = vector.shape_cast %2 : vector<1x28x144xf32> to vector<28x144xf32>
    %cst = arith.constant dense<0.000000e+00> : vector<48x144xf32>
    %4 = tpu.matmul %1, %3, %cst {dimension_numbers = #tpu.dot_dimension_numbers<[1], [0], [0], [1], [0, 0, 1, 1], [], []>} : vector<48x28xf32>, vector<28x144xf32>, vector<48x144xf32> -> vector<48x144xf32>
    %c0_5 = arith.constant 0 : index
    %c1 = arith.constant 1 : index
    %c0_6 = arith.constant 0 : index
    %5 = vector.load %arg0[%c0_5, %c1, %c0_6] : memref<2x28x28xf32, #tpu.memory_space<vmem>>, vector<2x24x28xf32>
    %6 = vector.shape_cast %5 : vector<2x24x28xf32> to vector<48x28xf32>
    %c1_7 = arith.constant 1 : index
    %c0_8 = arith.constant 0 : index
    %c0_9 = arith.constant 0 : index
    %7 = vector.load %arg1[%c1_7, %c0_8, %c0_9] : memref<5x28x144xf32, #tpu.memory_space<vmem>>, vector<1x28x144xf32>
    %8 = vector.shape_cast %7 : vector<1x28x144xf32> to vector<28x144xf32>
    %cst_10 = arith.constant dense<0.000000e+00> : vector<48x144xf32>
    %9 = tpu.matmul %6, %8, %cst_10 {dimension_numbers = #tpu.dot_dimension_numbers<[1], [0], [0], [1], [0, 0, 1, 1], [], []>} : vector<48x28xf32>, vector<28x144xf32>, vector<48x144xf32> -> vector<48x144xf32>
    %10 = arith.addf %4, %9 : vector<48x144xf32>
    %c0_11 = arith.constant 0 : index
    %c2 = arith.constant 2 : index
    %c0_12 = arith.constant 0 : index
    %11 = vector.load %arg0[%c0_11, %c2, %c0_12] : memref<2x28x28xf32, #tpu.memory_space<vmem>>, vector<2x24x28xf32>
    %12 = vector.shape_cast %11 : vector<2x24x28xf32> to vector<48x28xf32>
    %c2_13 = arith.constant 2 : index
    %c0_14 = arith.constant 0 : index
    %c0_15 = arith.constant 0 : index
    %13 = vector.load %arg1[%c2_13, %c0_14, %c0_15] : memref<5x28x144xf32, #tpu.memory_space<vmem>>, vector<1x28x144xf32>
    %14 = vector.shape_cast %13 : vector<1x28x144xf32> to vector<28x144xf32>
    %cst_16 = arith.constant dense<0.000000e+00> : vector<48x144xf32>
    %15 = tpu.matmul %12, %14, %cst_16 {dimension_numbers = #tpu.dot_dimension_numbers<[1], [0], [0], [1], [0, 0, 1, 1], [], []>} : vector<48x28xf32>, vector<28x144xf32>, vector<48x144xf32> -> vector<48x144xf32>
    %16 = arith.addf %10, %15 : vector<48x144xf32>
    %c0_17 = arith.constant 0 : index
    %c3 = arith.constant 3 : index
    %c0_18 = arith.constant 0 : index
    %17 = vector.load %arg0[%c0_17, %c3, %c0_18] : memref<2x28x28xf32, #tpu.memory_space<vmem>>, vector<2x24x28xf32>
    %18 = vector.shape_cast %17 : vector<2x24x28xf32> to vector<48x28xf32>
    %c3_19 = arith.constant 3 : index
    %c0_20 = arith.constant 0 : index
    %c0_21 = arith.constant 0 : index
    %19 = vector.load %arg1[%c3_19, %c0_20, %c0_21] : memref<5x28x144xf32, #tpu.memory_space<vmem>>, vector<1x28x144xf32>
    %20 = vector.shape_cast %19 : vector<1x28x144xf32> to vector<28x144xf32>
    %cst_22 = arith.constant dense<0.000000e+00> : vector<48x144xf32>
    %21 = tpu.matmul %18, %20, %cst_22 {dimension_numbers = #tpu.dot_dimension_numbers<[1], [0], [0], [1], [0, 0, 1, 1], [], []>} : vector<48x28xf32>, vector<28x144xf32>, vector<48x144xf32> -> vector<48x144xf32>
    %22 = arith.addf %16, %21 : vector<48x144xf32>
    %c0_23 = arith.constant 0 : index
    %c4 = arith.constant 4 : index
    %c0_24 = arith.constant 0 : index
    %23 = vector.load %arg0[%c0_23, %c4, %c0_24] : memref<2x28x28xf32, #tpu.memory_space<vmem>>, vector<2x24x28xf32>
    %24 = vector.shape_cast %23 : vector<2x24x28xf32> to vector<48x28xf32>
    %c4_25 = arith.constant 4 : index
    %c0_26 = arith.constant 0 : index
    %c0_27 = arith.constant 0 : index
    %25 = vector.load %arg1[%c4_25, %c0_26, %c0_27] : memref<5x28x144xf32, #tpu.memory_space<vmem>>, vector<1x28x144xf32>
    %26 = vector.shape_cast %25 : vector<1x28x144xf32> to vector<28x144xf32>
    %cst_28 = arith.constant dense<0.000000e+00> : vector<48x144xf32>
    %27 = tpu.matmul %24, %26, %cst_28 {dimension_numbers = #tpu.dot_dimension_numbers<[1], [0], [0], [1], [0, 0, 1, 1], [], []>} : vector<48x28xf32>, vector<28x144xf32>, vector<48x144xf32> -> vector<48x144xf32>
    %28 = arith.addf %22, %27 : vector<48x144xf32>
    %c0_29 = arith.constant 0 : index
    %c0_30 = arith.constant 0 : index
    %29 = vector.load %arg2[%c0_29, %c0_30] : memref<1x144xf32, #tpu.memory_space<vmem>>, vector<1x144xf32>
    %30 = vector.broadcast %29 : vector<1x144xf32> to vector<48x144xf32>
    %31 = arith.addf %28, %30 : vector<48x144xf32>
    %cst_31 = arith.constant 0.000000e+00 : f32
    %32 = vector.broadcast %cst_31 : f32 to vector<48x144xf32>
    %33 = arith.maximumf %31, %32 : vector<48x144xf32>
    %c0_32 = arith.constant 0 : index
    %c0_33 = arith.constant 0 : index
    %c0_34 = arith.constant 0 : index
    %34 = vector.load %arg3[%c0_32, %c0_33, %c0_34] : memref<2x24x48xf32, #tpu.memory_space<vmem>>, vector<1x24x48xf32>
    %35 = vector.shape_cast %34 : vector<1x24x48xf32> to vector<24x48xf32>
    %cst_35 = arith.constant dense<0.000000e+00> : vector<24x144xf32>
    %36 = tpu.matmul %35, %33, %cst_35 {dimension_numbers = #tpu.dot_dimension_numbers<[1], [0], [0], [1], [0, 0, 1, 1], [], []>} : vector<24x48xf32>, vector<48x144xf32>, vector<24x144xf32> -> vector<24x144xf32>
    %c1_36 = arith.constant 1 : index
    %c0_37 = arith.constant 0 : index
    %c0_38 = arith.constant 0 : index
    %37 = vector.load %arg3[%c1_36, %c0_37, %c0_38] : memref<2x24x48xf32, #tpu.memory_space<vmem>>, vector<1x24x48xf32>
    %38 = vector.shape_cast %37 : vector<1x24x48xf32> to vector<24x48xf32>
    %cst_39 = arith.constant dense<0.000000e+00> : vector<24x144xf32>
    %39 = tpu.matmul %38, %33, %cst_39 {dimension_numbers = #tpu.dot_dimension_numbers<[1], [0], [0], [1], [0, 0, 1, 1], [], []>} : vector<24x48xf32>, vector<48x144xf32>, vector<24x144xf32> -> vector<24x144xf32>
    %40 = arith.maximumf %36, %39 : vector<24x144xf32>
    %c0_40 = arith.constant 0 : index
    %c0_41 = arith.constant 0 : index
    %c0_42 = arith.constant 0 : index
    %41 = vector.load %arg4[%c0_40, %c0_41, %c0_42] : memref<2x144x72xf32, #tpu.memory_space<vmem>>, vector<1x144x72xf32>
    %42 = vector.shape_cast %41 : vector<1x144x72xf32> to vector<144x72xf32>
    %cst_43 = arith.constant dense<0.000000e+00> : vector<24x72xf32>
    %43 = tpu.matmul %40, %42, %cst_43 {dimension_numbers = #tpu.dot_dimension_numbers<[1], [0], [0], [1], [0, 0, 1, 1], [], []>} : vector<24x144xf32>, vector<144x72xf32>, vector<24x72xf32> -> vector<24x72xf32>
    %c1_44 = arith.constant 1 : index
    %c0_45 = arith.constant 0 : index
    %c0_46 = arith.constant 0 : index
    %44 = vector.load %arg4[%c1_44, %c0_45, %c0_46] : memref<2x144x72xf32, #tpu.memory_space<vmem>>, vector<1x144x72xf32>
    %45 = vector.shape_cast %44 : vector<1x144x72xf32> to vector<144x72xf32>
    %cst_47 = arith.constant dense<0.000000e+00> : vector<24x72xf32>
    %46 = tpu.matmul %40, %45, %cst_47 {dimension_numbers = #tpu.dot_dimension_numbers<[1], [0], [0], [1], [0, 0, 1, 1], [], []>} : vector<24x144xf32>, vector<144x72xf32>, vector<24x72xf32> -> vector<24x72xf32>
    %47 = arith.maximumf %43, %46 : vector<24x72xf32>
    %c0_48 = arith.constant 0 : index
    %c0_49 = arith.constant 0 : index
    %c0_50 = arith.constant 0 : index
    %48 = vector.load %arg5[%c0_48, %c0_49, %c0_50] : memref<5x16x24xf32, #tpu.memory_space<vmem>>, vector<1x16x24xf32>
    %49 = vector.shape_cast %48 : vector<1x16x24xf32> to vector<16x24xf32>
    %cst_51 = arith.constant dense<0.000000e+00> : vector<16x72xf32>
    %50 = tpu.matmul %49, %47, %cst_51 {dimension_numbers = #tpu.dot_dimension_numbers<[1], [0], [0], [1], [0, 0, 1, 1], [], []>} : vector<16x24xf32>, vector<24x72xf32>, vector<16x72xf32> -> vector<16x72xf32>
    %c0_52 = arith.constant 0 : index
    %c0_53 = arith.constant 0 : index
    %c0_54 = arith.constant 0 : index
    %51 = vector.load %arg6[%c0_52, %c0_53, %c0_54] : memref<5x72x128xf32, #tpu.memory_space<vmem>>, vector<1x72x128xf32>
    %52 = vector.shape_cast %51 : vector<1x72x128xf32> to vector<72x128xf32>
    %cst_55 = arith.constant dense<0.000000e+00> : vector<16x128xf32>
    %53 = tpu.matmul %50, %52, %cst_55 {dimension_numbers = #tpu.dot_dimension_numbers<[1], [0], [0], [1], [0, 0, 1, 1], [], []>} : vector<16x72xf32>, vector<72x128xf32>, vector<16x128xf32> -> vector<16x128xf32>
    %c1_56 = arith.constant 1 : index
    %c0_57 = arith.constant 0 : index
    %c0_58 = arith.constant 0 : index
    %54 = vector.load %arg5[%c1_56, %c0_57, %c0_58] : memref<5x16x24xf32, #tpu.memory_space<vmem>>, vector<1x16x24xf32>
    %55 = vector.shape_cast %54 : vector<1x16x24xf32> to vector<16x24xf32>
    %cst_59 = arith.constant dense<0.000000e+00> : vector<16x72xf32>
    %56 = tpu.matmul %55, %47, %cst_59 {dimension_numbers = #tpu.dot_dimension_numbers<[1], [0], [0], [1], [0, 0, 1, 1], [], []>} : vector<16x24xf32>, vector<24x72xf32>, vector<16x72xf32> -> vector<16x72xf32>
    %c1_60 = arith.constant 1 : index
    %c0_61 = arith.constant 0 : index
    %c0_62 = arith.constant 0 : index
    %57 = vector.load %arg6[%c1_60, %c0_61, %c0_62] : memref<5x72x128xf32, #tpu.memory_space<vmem>>, vector<1x72x128xf32>
    %58 = vector.shape_cast %57 : vector<1x72x128xf32> to vector<72x128xf32>
    %cst_63 = arith.constant dense<0.000000e+00> : vector<16x128xf32>
    %59 = tpu.matmul %56, %58, %cst_63 {dimension_numbers = #tpu.dot_dimension_numbers<[1], [0], [0], [1], [0, 0, 1, 1], [], []>} : vector<16x72xf32>, vector<72x128xf32>, vector<16x128xf32> -> vector<16x128xf32>
    %60 = arith.addf %53, %59 : vector<16x128xf32>
    %c2_64 = arith.constant 2 : index
    %c0_65 = arith.constant 0 : index
    %c0_66 = arith.constant 0 : index
    %61 = vector.load %arg5[%c2_64, %c0_65, %c0_66] : memref<5x16x24xf32, #tpu.memory_space<vmem>>, vector<1x16x24xf32>
    %62 = vector.shape_cast %61 : vector<1x16x24xf32> to vector<16x24xf32>
    %cst_67 = arith.constant dense<0.000000e+00> : vector<16x72xf32>
    %63 = tpu.matmul %62, %47, %cst_67 {dimension_numbers = #tpu.dot_dimension_numbers<[1], [0], [0], [1], [0, 0, 1, 1], [], []>} : vector<16x24xf32>, vector<24x72xf32>, vector<16x72xf32> -> vector<16x72xf32>
    %c2_68 = arith.constant 2 : index
    %c0_69 = arith.constant 0 : index
    %c0_70 = arith.constant 0 : index
    %64 = vector.load %arg6[%c2_68, %c0_69, %c0_70] : memref<5x72x128xf32, #tpu.memory_space<vmem>>, vector<1x72x128xf32>
    %65 = vector.shape_cast %64 : vector<1x72x128xf32> to vector<72x128xf32>
    %cst_71 = arith.constant dense<0.000000e+00> : vector<16x128xf32>
    %66 = tpu.matmul %63, %65, %cst_71 {dimension_numbers = #tpu.dot_dimension_numbers<[1], [0], [0], [1], [0, 0, 1, 1], [], []>} : vector<16x72xf32>, vector<72x128xf32>, vector<16x128xf32> -> vector<16x128xf32>
    %67 = arith.addf %60, %66 : vector<16x128xf32>
    %c3_72 = arith.constant 3 : index
    %c0_73 = arith.constant 0 : index
    %c0_74 = arith.constant 0 : index
    %68 = vector.load %arg5[%c3_72, %c0_73, %c0_74] : memref<5x16x24xf32, #tpu.memory_space<vmem>>, vector<1x16x24xf32>
    %69 = vector.shape_cast %68 : vector<1x16x24xf32> to vector<16x24xf32>
    %cst_75 = arith.constant dense<0.000000e+00> : vector<16x72xf32>
    %70 = tpu.matmul %69, %47, %cst_75 {dimension_numbers = #tpu.dot_dimension_numbers<[1], [0], [0], [1], [0, 0, 1, 1], [], []>} : vector<16x24xf32>, vector<24x72xf32>, vector<16x72xf32> -> vector<16x72xf32>
    %c3_76 = arith.constant 3 : index
    %c0_77 = arith.constant 0 : index
    %c0_78 = arith.constant 0 : index
    %71 = vector.load %arg6[%c3_76, %c0_77, %c0_78] : memref<5x72x128xf32, #tpu.memory_space<vmem>>, vector<1x72x128xf32>
    %72 = vector.shape_cast %71 : vector<1x72x128xf32> to vector<72x128xf32>
    %cst_79 = arith.constant dense<0.000000e+00> : vector<16x128xf32>
    %73 = tpu.matmul %70, %72, %cst_79 {dimension_numbers = #tpu.dot_dimension_numbers<[1], [0], [0], [1], [0, 0, 1, 1], [], []>} : vector<16x72xf32>, vector<72x128xf32>, vector<16x128xf32> -> vector<16x128xf32>
    %74 = arith.addf %67, %73 : vector<16x128xf32>
    %c4_80 = arith.constant 4 : index
    %c0_81 = arith.constant 0 : index
    %c0_82 = arith.constant 0 : index
    %75 = vector.load %arg5[%c4_80, %c0_81, %c0_82] : memref<5x16x24xf32, #tpu.memory_space<vmem>>, vector<1x16x24xf32>
    %76 = vector.shape_cast %75 : vector<1x16x24xf32> to vector<16x24xf32>
    %cst_83 = arith.constant dense<0.000000e+00> : vector<16x72xf32>
    %77 = tpu.matmul %76, %47, %cst_83 {dimension_numbers = #tpu.dot_dimension_numbers<[1], [0], [0], [1], [0, 0, 1, 1], [], []>} : vector<16x24xf32>, vector<24x72xf32>, vector<16x72xf32> -> vector<16x72xf32>
    %c4_84 = arith.constant 4 : index
    %c0_85 = arith.constant 0 : index
    %c0_86 = arith.constant 0 : index
    %78 = vector.load %arg6[%c4_84, %c0_85, %c0_86] : memref<5x72x128xf32, #tpu.memory_space<vmem>>, vector<1x72x128xf32>
    %79 = vector.shape_cast %78 : vector<1x72x128xf32> to vector<72x128xf32>
    %cst_87 = arith.constant dense<0.000000e+00> : vector<16x128xf32>
    %80 = tpu.matmul %77, %79, %cst_87 {dimension_numbers = #tpu.dot_dimension_numbers<[1], [0], [0], [1], [0, 0, 1, 1], [], []>} : vector<16x72xf32>, vector<72x128xf32>, vector<16x128xf32> -> vector<16x128xf32>
    %81 = arith.addf %74, %80 : vector<16x128xf32>
    %c0_88 = arith.constant 0 : index
    %c0_89 = arith.constant 0 : index
    %82 = vector.load %arg7[%c0_88, %c0_89] : memref<1x128xf32, #tpu.memory_space<vmem>>, vector<1x128xf32>
    %83 = vector.broadcast %82 : vector<1x128xf32> to vector<16x128xf32>
    %84 = arith.addf %81, %83 : vector<16x128xf32>
    %cst_90 = arith.constant 0.000000e+00 : f32
    %85 = vector.broadcast %cst_90 : f32 to vector<16x128xf32>
    %86 = arith.maximumf %84, %85 : vector<16x128xf32>
    %c0_91 = arith.constant 0 : index
    %c0_92 = arith.constant 0 : index
    %c0_93 = arith.constant 0 : index
    %87 = vector.load %arg8[%c0_91, %c0_92, %c0_93] : memref<2x8x16xf32, #tpu.memory_space<vmem>>, vector<1x8x16xf32>
    %88 = vector.shape_cast %87 : vector<1x8x16xf32> to vector<8x16xf32>
    %cst_94 = arith.constant dense<0.000000e+00> : vector<8x128xf32>
    %89 = tpu.matmul %88, %86, %cst_94 {dimension_numbers = #tpu.dot_dimension_numbers<[1], [0], [0], [1], [0, 0, 1, 1], [], []>} : vector<8x16xf32>, vector<16x128xf32>, vector<8x128xf32> -> vector<8x128xf32>
    %c1_95 = arith.constant 1 : index
    %c0_96 = arith.constant 0 : index
    %c0_97 = arith.constant 0 : index
    %90 = vector.load %arg8[%c1_95, %c0_96, %c0_97] : memref<2x8x16xf32, #tpu.memory_space<vmem>>, vector<1x8x16xf32>
    %91 = vector.shape_cast %90 : vector<1x8x16xf32> to vector<8x16xf32>
    %cst_98 = arith.constant dense<0.000000e+00> : vector<8x128xf32>
    %92 = tpu.matmul %91, %86, %cst_98 {dimension_numbers = #tpu.dot_dimension_numbers<[1], [0], [0], [1], [0, 0, 1, 1], [], []>} : vector<8x16xf32>, vector<16x128xf32>, vector<8x128xf32> -> vector<8x128xf32>
    %93 = arith.maximumf %89, %92 : vector<8x128xf32>
    %c0_99 = arith.constant 0 : index
    %c0_100 = arith.constant 0 : index
    %c0_101 = arith.constant 0 : index
    %94 = vector.load %arg9[%c0_99, %c0_100, %c0_101] : memref<2x128x64xf32, #tpu.memory_space<vmem>>, vector<1x128x64xf32>
    %95 = vector.shape_cast %94 : vector<1x128x64xf32> to vector<128x64xf32>
    %cst_102 = arith.constant dense<0.000000e+00> : vector<8x64xf32>
    %96 = tpu.matmul %93, %95, %cst_102 {dimension_numbers = #tpu.dot_dimension_numbers<[1], [0], [0], [1], [0, 0, 1, 1], [], []>} : vector<8x128xf32>, vector<128x64xf32>, vector<8x64xf32> -> vector<8x64xf32>
    %c1_103 = arith.constant 1 : index
    %c0_104 = arith.constant 0 : index
    %c0_105 = arith.constant 0 : index
    %97 = vector.load %arg9[%c1_103, %c0_104, %c0_105] : memref<2x128x64xf32, #tpu.memory_space<vmem>>, vector<1x128x64xf32>
    %98 = vector.shape_cast %97 : vector<1x128x64xf32> to vector<128x64xf32>
    %cst_106 = arith.constant dense<0.000000e+00> : vector<8x64xf32>
    %99 = tpu.matmul %93, %98, %cst_106 {dimension_numbers = #tpu.dot_dimension_numbers<[1], [0], [0], [1], [0, 0, 1, 1], [], []>} : vector<8x128xf32>, vector<128x64xf32>, vector<8x64xf32> -> vector<8x64xf32>
    %100 = arith.maximumf %96, %99 : vector<8x64xf32>
    %c0_107 = arith.constant 0 : index
    %c0_108 = arith.constant 0 : index
    %c0_109 = arith.constant 0 : index
    %101 = vector.load %arg10[%c0_107, %c0_108, %c0_109] : memref<4x2x8xf32, #tpu.memory_space<vmem>>, vector<1x2x8xf32>
    %102 = vector.shape_cast %101 : vector<1x2x8xf32> to vector<2x8xf32>
    %cst_110 = arith.constant dense<0.000000e+00> : vector<2x64xf32>
    %103 = tpu.matmul %102, %100, %cst_110 {dimension_numbers = #tpu.dot_dimension_numbers<[1], [0], [0], [1], [0, 0, 1, 1], [], []>} : vector<2x8xf32>, vector<8x64xf32>, vector<2x64xf32> -> vector<2x64xf32>
    %104 = arith.truncf %103 : vector<2x64xf32> to vector<2x64xbf16>
    %c0_111 = arith.constant 0 : index
    %c0_112 = arith.constant 0 : index
    %c0_113 = arith.constant 0 : index
    %105 = vector.load %arg11[%c0_111, %c0_112, %c0_113] : memref<4x64x256xbf16, #tpu.memory_space<vmem>>, vector<1x64x256xbf16>
    %106 = vector.shape_cast %105 : vector<1x64x256xbf16> to vector<64x256xbf16>
    %cst_114 = arith.constant dense<0.000000e+00> : vector<2x256xf32>
    %107 = tpu.matmul %104, %106, %cst_114 {dimension_numbers = #tpu.dot_dimension_numbers<[1], [0], [0], [1], [0, 0, 1, 1], [], []>} : vector<2x64xbf16>, vector<64x256xbf16>, vector<2x256xf32> -> vector<2x256xf32>
    %c1_115 = arith.constant 1 : index
    %c0_116 = arith.constant 0 : index
    %c0_117 = arith.constant 0 : index
    %108 = vector.load %arg10[%c1_115, %c0_116, %c0_117] : memref<4x2x8xf32, #tpu.memory_space<vmem>>, vector<1x2x8xf32>
    %109 = vector.shape_cast %108 : vector<1x2x8xf32> to vector<2x8xf32>
    %cst_118 = arith.constant dense<0.000000e+00> : vector<2x64xf32>
    %110 = tpu.matmul %109, %100, %cst_118 {dimension_numbers = #tpu.dot_dimension_numbers<[1], [0], [0], [1], [0, 0, 1, 1], [], []>} : vector<2x8xf32>, vector<8x64xf32>, vector<2x64xf32> -> vector<2x64xf32>
    %111 = arith.truncf %110 : vector<2x64xf32> to vector<2x64xbf16>
    %c1_119 = arith.constant 1 : index
    %c0_120 = arith.constant 0 : index
    %c0_121 = arith.constant 0 : index
    %112 = vector.load %arg11[%c1_119, %c0_120, %c0_121] : memref<4x64x256xbf16, #tpu.memory_space<vmem>>, vector<1x64x256xbf16>
    %113 = vector.shape_cast %112 : vector<1x64x256xbf16> to vector<64x256xbf16>
    %cst_122 = arith.constant dense<0.000000e+00> : vector<2x256xf32>
    %114 = tpu.matmul %111, %113, %cst_122 {dimension_numbers = #tpu.dot_dimension_numbers<[1], [0], [0], [1], [0, 0, 1, 1], [], []>} : vector<2x64xbf16>, vector<64x256xbf16>, vector<2x256xf32> -> vector<2x256xf32>
    %115 = arith.addf %107, %114 : vector<2x256xf32>
    %c2_123 = arith.constant 2 : index
    %c0_124 = arith.constant 0 : index
    %c0_125 = arith.constant 0 : index
    %116 = vector.load %arg10[%c2_123, %c0_124, %c0_125] : memref<4x2x8xf32, #tpu.memory_space<vmem>>, vector<1x2x8xf32>
    %117 = vector.shape_cast %116 : vector<1x2x8xf32> to vector<2x8xf32>
    %cst_126 = arith.constant dense<0.000000e+00> : vector<2x64xf32>
    %118 = tpu.matmul %117, %100, %cst_126 {dimension_numbers = #tpu.dot_dimension_numbers<[1], [0], [0], [1], [0, 0, 1, 1], [], []>} : vector<2x8xf32>, vector<8x64xf32>, vector<2x64xf32> -> vector<2x64xf32>
    %119 = arith.truncf %118 : vector<2x64xf32> to vector<2x64xbf16>
    %c2_127 = arith.constant 2 : index
    %c0_128 = arith.constant 0 : index
    %c0_129 = arith.constant 0 : index
    %120 = vector.load %arg11[%c2_127, %c0_128, %c0_129] : memref<4x64x256xbf16, #tpu.memory_space<vmem>>, vector<1x64x256xbf16>
    %121 = vector.shape_cast %120 : vector<1x64x256xbf16> to vector<64x256xbf16>
    %cst_130 = arith.constant dense<0.000000e+00> : vector<2x256xf32>
    %122 = tpu.matmul %119, %121, %cst_130 {dimension_numbers = #tpu.dot_dimension_numbers<[1], [0], [0], [1], [0, 0, 1, 1], [], []>} : vector<2x64xbf16>, vector<64x256xbf16>, vector<2x256xf32> -> vector<2x256xf32>
    %123 = arith.addf %115, %122 : vector<2x256xf32>
    %c3_131 = arith.constant 3 : index
    %c0_132 = arith.constant 0 : index
    %c0_133 = arith.constant 0 : index
    %124 = vector.load %arg10[%c3_131, %c0_132, %c0_133] : memref<4x2x8xf32, #tpu.memory_space<vmem>>, vector<1x2x8xf32>
    %125 = vector.shape_cast %124 : vector<1x2x8xf32> to vector<2x8xf32>
    %cst_134 = arith.constant dense<0.000000e+00> : vector<2x64xf32>
    %126 = tpu.matmul %125, %100, %cst_134 {dimension_numbers = #tpu.dot_dimension_numbers<[1], [0], [0], [1], [0, 0, 1, 1], [], []>} : vector<2x8xf32>, vector<8x64xf32>, vector<2x64xf32> -> vector<2x64xf32>
    %127 = arith.truncf %126 : vector<2x64xf32> to vector<2x64xbf16>
    %c3_135 = arith.constant 3 : index
    %c0_136 = arith.constant 0 : index
    %c0_137 = arith.constant 0 : index
    %128 = vector.load %arg11[%c3_135, %c0_136, %c0_137] : memref<4x64x256xbf16, #tpu.memory_space<vmem>>, vector<1x64x256xbf16>
    %129 = vector.shape_cast %128 : vector<1x64x256xbf16> to vector<64x256xbf16>
    %cst_138 = arith.constant dense<0.000000e+00> : vector<2x256xf32>
    %130 = tpu.matmul %127, %129, %cst_138 {dimension_numbers = #tpu.dot_dimension_numbers<[1], [0], [0], [1], [0, 0, 1, 1], [], []>} : vector<2x64xbf16>, vector<64x256xbf16>, vector<2x256xf32> -> vector<2x256xf32>
    %131 = arith.addf %123, %130 : vector<2x256xf32>
    %c0_139 = arith.constant 0 : index
    %c0_140 = arith.constant 0 : index
    %132 = vector.load %arg12[%c0_139, %c0_140] : memref<1x256xf32, #tpu.memory_space<vmem>>, vector<1x256xf32>
    %133 = vector.broadcast %132 : vector<1x256xf32> to vector<2x256xf32>
    %134 = arith.addf %131, %133 : vector<2x256xf32>
    %cst_141 = arith.constant 0.000000e+00 : f32
    %135 = vector.broadcast %cst_141 : f32 to vector<2x256xf32>
    %136 = arith.maximumf %134, %135 : vector<2x256xf32>
    %137 = arith.truncf %136 : vector<2x256xf32> to vector<2x256xbf16>
    %c0_142 = arith.constant 0 : index
    %c0_143 = arith.constant 0 : index
    %138 = vector.load %arg13[%c0_142, %c0_143] : memref<256x84xbf16, #tpu.memory_space<vmem>>, vector<256x84xbf16>
    %cst_144 = arith.constant dense<0.000000e+00> : vector<2x84xf32>
    %139 = tpu.matmul %137, %138, %cst_144 {dimension_numbers = #tpu.dot_dimension_numbers<[1], [0], [0], [1], [0, 0, 1, 1], [], []>} : vector<2x256xbf16>, vector<256x84xbf16>, vector<2x84xf32> -> vector<2x84xf32>
    %c0_145 = arith.constant 0 : index
    %c0_146 = arith.constant 0 : index
    %140 = vector.load %arg14[%c0_145, %c0_146] : memref<1x84xf32, #tpu.memory_space<vmem>>, vector<1x84xf32>
    %141 = vector.broadcast %140 : vector<1x84xf32> to vector<2x84xf32>
    %142 = arith.addf %139, %141 : vector<2x84xf32>
    %cst_147 = arith.constant 0.000000e+00 : f32
    %143 = vector.broadcast %cst_147 : f32 to vector<2x84xf32>
    %144 = arith.maximumf %142, %143 : vector<2x84xf32>
    %c0_148 = arith.constant 0 : index
    %c0_149 = arith.constant 0 : index
    %145 = vector.load %arg15[%c0_148, %c0_149] : memref<84x10xf32, #tpu.memory_space<vmem>>, vector<84x10xf32>
    %cst_150 = arith.constant dense<0.000000e+00> : vector<2x10xf32>
    %146 = tpu.matmul %144, %145, %cst_150 {dimension_numbers = #tpu.dot_dimension_numbers<[1], [0], [0], [1], [0, 0, 1, 1], [], []>} : vector<2x84xf32>, vector<84x10xf32>, vector<2x10xf32> -> vector<2x10xf32>
    %c0_151 = arith.constant 0 : index
    %c0_152 = arith.constant 0 : index
    %147 = vector.load %arg16[%c0_151, %c0_152] : memref<1x10xf32, #tpu.memory_space<vmem>>, vector<1x10xf32>
    %148 = vector.broadcast %147 : vector<1x10xf32> to vector<2x10xf32>
    %149 = arith.addf %146, %148 : vector<2x10xf32>
    %c0_153 = arith.constant 0 : index
    %c0_154 = arith.constant 0 : index
    %150 = vector.load %arg17[%c0_153, %c0_154] : memref<2x10xf32, #tpu.memory_space<vmem>>, vector<2x10xf32>
    tpu.vector_store %arg17[%c0_153, %c0_154], %149 {strides = array<i32>} : memref<2x10xf32, #tpu.memory_space<vmem>>, vector<2x10xf32>,
    return
  }
}

</mosaic_0001>

<llo_original>
// kernel: network_forward.1
$region0: #{network_forward.1}
  #allocation0 [shape = 'u32[]', space=smem, size = 0x4, offset = 0x4, fixed_abs, tag = 'smem constant byte address 0x4 - core index']
  #allocation1 [shape = 'u32[144,128]{1,0:T(1,128)}', space=vmem, size = 0x12000, scoped, tag = 'internal scratch']
  %s0 = inlined_call_operand.vmem [shape: f32[2,28,28], index: 0, kind: input, shape index: {}]
  %s1 = inlined_call_operand.vmem [shape: f32[5,28,144], index: 1, kind: input, shape index: {}]
  %s2 = inlined_call_operand.vmem [shape: f32[1,144], index: 2, kind: input, shape index: {}]
  %s3 = inlined_call_operand.hbm [shape: f32[2,24,48], index: 3, kind: input, shape index: {}]
  %s4 = inlined_call_operand.hbm [shape: f32[2,144,72], index: 4, kind: input, shape index: {}]
  %s5 = inlined_call_operand.hbm [shape: f32[5,16,24], index: 5, kind: input, shape index: {}]
  %s6 = inlined_call_operand.vmem [shape: f32[5,72,128], index: 6, kind: input, shape index: {}]
  %s7 = inlined_call_operand.hbm [shape: f32[1,128], index: 7, kind: input, shape index: {}]
  %s8 = inlined_call_operand.hbm [shape: f32[2,8,16], index: 8, kind: input, shape index: {}]
  %s9 = inlined_call_operand.vmem [shape: f32[2,128,64], index: 9, kind: input, shape index: {}]
  %s10 = inlined_call_operand.hbm [shape: f32[4,2,8], index: 10, kind: input, shape index: {}]
  %s11 = inlined_call_operand.vmem [shape: bf16[4,64,256], index: 11, kind: input, shape index: {}]
  %s12 = inlined_call_operand.vmem [shape: f32[1,256], index: 12, kind: input, shape index: {}]
  %s13 = inlined_call_operand.vmem [shape: bf16[256,84], index: 13, kind: input, shape index: {}]
  %s14 = inlined_call_operand.hbm [shape: f32[1,84], index: 14, kind: input, shape index: {}]
  %s15 = inlined_call_operand.vmem [shape: f32[84,10], index: 15, kind: input, shape index: {}]
  %s16 = inlined_call_operand.hbm [shape: f32[1,10], index: 16, kind: input, shape index: {}]
  %s17 = inlined_call_operand.hbm [shape: f32[2,10], index: 17, kind: output, shape index: {}]
  %s18 = sld [smem:[#allocation0]]
  $region110: #{network_forward.1} parent=0
    _
  %s20 = ssub.s32 1, %s18
  %s21 = scalar_select 0, %s20, %s18
  $region1: #{network_forward.1} parent=0
    #allocation2 [shape = 'u8[24576]{0}', space=vmem, size = 0x6000, scoped, tag = 'input window, operand 3, single buffered']
    #allocation3 [shape = 's32[1]{0}', space=sflag, size = 0x4, scoped, tag = 'scoped memory for network_forward.1']
    #allocation4 [shape = 's32[1]{0}', space=sflag, size = 0x4, scoped, tag = 'scoped memory for network_forward.1']
    #allocation5 [shape = 'u8[147456]{0}', space=vmem, size = 0x24000, scoped, tag = 'input window, operand 4, single buffered']
    #allocation6 [shape = 's32[1]{0}', space=sflag, size = 0x4, scoped, tag = 'scoped memory for network_forward.1']
    #allocation7 [shape = 'u8[40960]{0}', space=vmem, size = 0xa000, scoped, tag = 'input window, operand 5, single buffered']
    #allocation8 [shape = 'u8[512]{0}', space=vmem, size = 0x400, scoped, tag = 'input window, operand 7, single buffered']
    #allocation9 [shape = 's32[1]{0}', space=sflag, size = 0x4, scoped, tag = 'scoped memory for network_forward.1']
    #allocation10 [shape = 'u8[8192]{0}', space=vmem, size = 0x2000, scoped, tag = 'input window, operand 8, single buffered']
    #allocation11 [shape = 'u8[4096]{0}', space=vmem, size = 0x1000, scoped, tag = 'input window, operand 10, single buffered']
    #allocation12 [shape = 's32[1]{0}', space=sflag, size = 0x4, scoped, tag = 'scoped memory for network_forward.1']
    #allocation13 [shape = 'u8[512]{0}', space=vmem, size = 0x400, scoped, tag = 'input window, operand 14, single buffered']
    #allocation14 [shape = 'u8[512]{0}', space=vmem, size = 0x400, scoped, tag = 'input window, operand 16, single buffered']
    #allocation15 [shape = 's32[1]{0}', space=sflag, size = 0x4, scoped, tag = 'scoped memory for network_forward.1']
    #allocation16 [shape = 'u8[1024]{0}', space=vmem, size = 0x400, scoped, tag = 'output window, operand 0, single buffered']
    %22 = vsyncpa [#allocation3], 0
    %23 = vsyncpa [#allocation6], 0
    %24 = vsyncpa [#allocation9], 0
    %25 = vsyncpa [#allocation12], 0
    %26 = vsyncpa [#allocation15], 0
    %27 = vsyncpa [#allocation4], 0
    // Predicated region
    $region2: #{network_forward.1} parent=1 // pred_check
      _
    $region3: #{network_forward.1} parent=1 // pred_check_branch
      %29 = sbr.rel (0) target = $region5
    $region4: #{network_forward.1} parent=1 // pred_region
      _
    $region5: #{network_forward.1} parent=1 // pred_fallthru
      _
    // Predicated region
    $region6: #{network_forward.1} parent=1 // pred_check
      _
    $region7: #{network_forward.1} parent=1 // pred_check_branch
      %31 = sbr.rel (0) target = $region9
    $region8: #{network_forward.1} parent=1 // pred_region
      _
    $region9: #{network_forward.1} parent=1 // pred_fallthru
      _
    // Predicated region
    $region10: #{network_forward.1} parent=1 // pred_check
      _
    $region11: #{network_forward.1} parent=1 // pred_check_branch
      %33 = sbr.rel (0) target = $region13
    $region12: #{network_forward.1} parent=1 // pred_region
      _
    $region13: #{network_forward.1} parent=1 // pred_fallthru
      _
    // Predicated region
    $region14: #{network_forward.1} parent=1 // pred_check
      _
    $region15: #{network_forward.1} parent=1 // pred_check_branch
      %35 = sbr.rel (0) target = $region17
    $region16: #{network_forward.1} parent=1 // pred_region
      %s37 = ssub.s32 768, 768
      %38 = vsyncadd [#allocation3], %s37
      %s39 = sshll.u32 [#allocation2], 4
      %s40 = int_to_ptr.vmem [resolvable:$true] %s39
      %45 = dma.hbm_to_vmem [thread:$0]  %s3, 768, %s40, [#allocation3], 128, 128, 8
    $region17: #{network_forward.1} parent=1 // pred_fallthru
      _
    // Predicated region
    $region18: #{network_forward.1} parent=1 // pred_check
      _
    $region19: #{network_forward.1} parent=1 // pred_check_branch
      %47 = sbr.rel (0) target = $region21
    $region20: #{network_forward.1} parent=1 // pred_region
      %s49 = ssub.s32 4608, 4608
      %50 = vsyncadd [#allocation6], %s49
      %s51 = sshll.u32 [#allocation5], 4
      %s52 = int_to_ptr.vmem [resolvable:$true] %s51
      %57 = dma.hbm_to_vmem [thread:$0]  %s4, 4608, %s52, [#allocation6], 128, 128, 8
    $region21: #{network_forward.1} parent=1 // pred_fallthru
      _
    // Predicated region
    $region22: #{network_forward.1} parent=1 // pred_check
      _
    $region23: #{network_forward.1} parent=1 // pred_check_branch
      %59 = sbr.rel (0) target = $region25
    $region24: #{network_forward.1} parent=1 // pred_region
      %s61 = ssub.s32 1280, 1280
      %62 = vsyncadd [#allocation6], %s61
      %s63 = sshll.u32 [#allocation7], 4
      %s64 = int_to_ptr.vmem [resolvable:$true] %s63
      %69 = dma.hbm_to_vmem [thread:$0]  %s5, 1280, %s64, [#allocation6], 128, 128, 8
    $region25: #{network_forward.1} parent=1 // pred_fallthru
      _
    // Predicated region
    $region26: #{network_forward.1} parent=1 // pred_check
      _
    $region27: #{network_forward.1} parent=1 // pred_check_branch
      %71 = sbr.rel (0) target = $region29
    $region28: #{network_forward.1} parent=1 // pred_region
      _
    $region29: #{network_forward.1} parent=1 // pred_fallthru
      _
    // Predicated region
    $region30: #{network_forward.1} parent=1 // pred_check
      _
    $region31: #{network_forward.1} parent=1 // pred_check_branch
      %73 = sbr.rel (0) target = $region33
    $region32: #{network_forward.1} parent=1 // pred_region
      %s75 = ssub.s32 16, 16
      %76 = vsyncadd [#allocation9], %s75
      %s78 = sshll.u32 [#allocation8], 4
      %s79 = int_to_ptr.vmem [resolvable:$true] %s78
      %81 = dma.hbm_to_vmem [thread:$0]  %s7, 16, %s79, [#allocation9]
    $region33: #{network_forward.1} parent=1 // pred_fallthru
      _
    // Predicated region
    $region34: #{network_forward.1} parent=1 // pred_check
      _
    $region35: #{network_forward.1} parent=1 // pred_check_branch
      %83 = sbr.rel (0) target = $region37
    $region36: #{network_forward.1} parent=1 // pred_region
      %s85 = ssub.s32 256, 256
      %86 = vsyncadd [#allocation9], %s85
      %s87 = sshll.u32 [#allocation10], 4
      %s88 = int_to_ptr.vmem [resolvable:$true] %s87
      %93 = dma.hbm_to_vmem [thread:$0]  %s8, 256, %s88, [#allocation9], 128, 128, 8
    $region37: #{network_forward.1} parent=1 // pred_fallthru
      _
    // Predicated region
    $region38: #{network_forward.1} parent=1 // pred_check
      _
    $region39: #{network_forward.1} parent=1 // pred_check_branch
      %95 = sbr.rel (0) target = $region41
    $region40: #{network_forward.1} parent=1 // pred_region
      _
    $region41: #{network_forward.1} parent=1 // pred_fallthru
      _
    // Predicated region
    $region42: #{network_forward.1} parent=1 // pred_check
      _
    $region43: #{network_forward.1} parent=1 // pred_check_branch
      %97 = sbr.rel (0) target = $region45
    $region44: #{network_forward.1} parent=1 // pred_region
      %s99 = ssub.s32 128, 128
      %100 = vsyncadd [#allocation12], %s99
      %s101 = sshll.u32 [#allocation11], 4
      %s102 = int_to_ptr.vmem [resolvable:$true] %s101
      %107 = dma.hbm_to_vmem [thread:$0]  %s10, 128, %s102, [#allocation12], 32, 32, 2
    $region45: #{network_forward.1} parent=1 // pred_fallthru
      _
    // Predicated region
    $region46: #{network_forward.1} parent=1 // pred_check
      _
    $region47: #{network_forward.1} parent=1 // pred_check_branch
      %109 = sbr.rel (0) target = $region49
    $region48: #{network_forward.1} parent=1 // pred_region
      _
    $region49: #{network_forward.1} parent=1 // pred_fallthru
      _
    // Predicated region
    $region50: #{network_forward.1} parent=1 // pred_check
      _
    $region51: #{network_forward.1} parent=1 // pred_check_branch
      %111 = sbr.rel (0) target = $region53
    $region52: #{network_forward.1} parent=1 // pred_region
      _
    $region53: #{network_forward.1} parent=1 // pred_fallthru
      _
    // Predicated region
    $region54: #{network_forward.1} parent=1 // pred_check
      _
    $region55: #{network_forward.1} parent=1 // pred_check_branch
      %113 = sbr.rel (0) target = $region57
    $region56: #{network_forward.1} parent=1 // pred_region
      _
    $region57: #{network_forward.1} parent=1 // pred_fallthru
      _
    // Predicated region
    $region58: #{network_forward.1} parent=1 // pred_check
      _
    $region59: #{network_forward.1} parent=1 // pred_check_branch
      %115 = sbr.rel (0) target = $region61
    $region60: #{network_forward.1} parent=1 // pred_region
      %s117 = ssub.s32 16, 16
      %118 = vsyncadd [#allocation12], %s117
      %s120 = sshll.u32 [#allocation13], 4
      %s121 = int_to_ptr.vmem [resolvable:$true] %s120
      %123 = dma.hbm_to_vmem [thread:$0]  %s14, 16, %s121, [#allocation12]
    $region61: #{network_forward.1} parent=1 // pred_fallthru
      _
    // Predicated region
    $region62: #{network_forward.1} parent=1 // pred_check
      _
    $region63: #{network_forward.1} parent=1 // pred_check_branch
      %125 = sbr.rel (0) target = $region65
    $region64: #{network_forward.1} parent=1 // pred_region
      _
    $region65: #{network_forward.1} parent=1 // pred_fallthru
      _
    // Predicated region
    $region66: #{network_forward.1} parent=1 // pred_check
      _
    $region67: #{network_forward.1} parent=1 // pred_check_branch
      %127 = sbr.rel (0) target = $region69
    $region68: #{network_forward.1} parent=1 // pred_region
      %s129 = ssub.s32 16, 16
      %130 = vsyncadd [#allocation15], %s129
      %s132 = sshll.u32 [#allocation14], 4
      %s133 = int_to_ptr.vmem [resolvable:$true] %s132
      %135 = dma.hbm_to_vmem [thread:$0]  %s16, 16, %s133, [#allocation15]
    $region69: #{network_forward.1} parent=1 // pred_fallthru
      _
    // Predicated region
    $region70: #{network_forward.1} parent=1 // pred_check
      _
    $region71: #{network_forward.1} parent=1 // pred_check_branch
      %137 = sbr.rel (0) target = $region73
    $region72: #{network_forward.1} parent=1 // pred_region
      %138 = dma.done [#allocation3], 768
    $region73: #{network_forward.1} parent=1 // pred_fallthru
      _
    // Predicated region
    $region74: #{network_forward.1} parent=1 // pred_check
      _
    $region75: #{network_forward.1} parent=1 // pred_check_branch
      %140 = sbr.rel (0) target = $region77
    $region76: #{network_forward.1} parent=1 // pred_region
      %141 = dma.done [#allocation6], 4608
    $region77: #{network_forward.1} parent=1 // pred_fallthru
      _
    // Predicated region
    $region78: #{network_forward.1} parent=1 // pred_check
      _
    $region79: #{network_forward.1} parent=1 // pred_check_branch
      %143 = sbr.rel (0) target = $region81
    $region80: #{network_forward.1} parent=1 // pred_region
      %144 = dma.done [#allocation6], 1280
    $region81: #{network_forward.1} parent=1 // pred_fallthru
      _
    // Predicated region
    $region82: #{network_forward.1} parent=1 // pred_check
      _
    $region83: #{network_forward.1} parent=1 // pred_check_branch
      %146 = sbr.rel (0) target = $region85
    $region84: #{network_forward.1} parent=1 // pred_region
      %147 = dma.done [#allocation9], 16
    $region85: #{network_forward.1} parent=1 // pred_fallthru
      _
    // Predicated region
    $region86: #{network_forward.1} parent=1 // pred_check
      _
    $region87: #{network_forward.1} parent=1 // pred_check_branch
      %149 = sbr.rel (0) target = $region89
    $region88: #{network_forward.1} parent=1 // pred_region
      %150 = dma.done [#allocation9], 256
    $region89: #{network_forward.1} parent=1 // pred_fallthru
      _
    // Predicated region
    $region90: #{network_forward.1} parent=1 // pred_check
      _
    $region91: #{network_forward.1} parent=1 // pred_check_branch
      %152 = sbr.rel (0) target = $region93
    $region92: #{network_forward.1} parent=1 // pred_region
      %153 = dma.done [#allocation12], 128
    $region93: #{network_forward.1} parent=1 // pred_fallthru
      _
    // Predicated region
    $region94: #{network_forward.1} parent=1 // pred_check
      _
    $region95: #{network_forward.1} parent=1 // pred_check_branch
      %155 = sbr.rel (0) target = $region97
    $region96: #{network_forward.1} parent=1 // pred_region
      %156 = dma.done [#allocation12], 16
    $region97: #{network_forward.1} parent=1 // pred_fallthru
      _
    // Predicated region
    $region98: #{network_forward.1} parent=1 // pred_check
      _
    $region99: #{network_forward.1} parent=1 // pred_check_branch
      %158 = sbr.rel (0) target = $region101
    $region100: #{network_forward.1} parent=1 // pred_region
      %159 = dma.done [#allocation15], 16
    $region101: #{network_forward.1} parent=1 // pred_fallthru
      _
    %v161 = vld [vmem:[%s0] sm:$0xff]
    %v162 = vld [vmem:[%s0 + $0x8] sm:$0xff]
    %v163 = vld [vmem:[%s0 + $0x10] sm:$0xff]
    %v164 = vld [vmem:[%s0 + $0x20] sm:$0xff]
    %v165 = vld [vmem:[%s0 + $0x28] sm:$0xff]
    %v166 = vld [vmem:[%s0 + $0x30] sm:$0xff]
    %v167 = vld [vmem:[%s1] sm:$0xff]
    %v168 = vld [vmem:[%s1 + $0x8] sm:$0xff]
    %v169 = vld [vmem:[%s1 + $0x10] sm:$0xff]
    %v170 = vld [vmem:[%s1 + $0x18] sm:$0xff]
    %v171 = vld [vmem:[%s1 + $0x20] sm:$0xff]
    %v172 = vld [vmem:[%s1 + $0x28] sm:$0xff]
    %v173 = vld [vmem:[%s1 + $0x30] sm:$0xf]
    %v174 = vld [vmem:[%s1 + $0x38] sm:$0xf]
    %v175 = vld [vmem:[%s0 + $0x1] sm:$0xff]
    %v176 = vld [vmem:[%s0 + $0x9] sm:$0xff]
    %v177 = vld [vmem:[%s0 + $0x11] sm:$0xff]
    %v178 = vld [vmem:[%s0 + $0x21] sm:$0xff]
    %v179 = vld [vmem:[%s0 + $0x29] sm:$0xff]
    %v180 = vld [vmem:[%s0 + $0x31] sm:$0xff]
    %s181 = scalar_lea.vmem %s1, 64
    %v182 = vld [vmem:[%s181] sm:$0xff]
    %v183 = vld [vmem:[%s181 + $0x8] sm:$0xff]
    %v184 = vld [vmem:[%s181 + $0x10] sm:$0xff]
    %v185 = vld [vmem:[%s181 + $0x18] sm:$0xff]
    %v186 = vld [vmem:[%s181 + $0x20] sm:$0xff]
    %v187 = vld [vmem:[%s181 + $0x28] sm:$0xff]
    %v188 = vld [vmem:[%s181 + $0x30] sm:$0xf]
    %v189 = vld [vmem:[%s181 + $0x38] sm:$0xf]
    %vm190 = vcmask 228352
    %v192 = vsel %vm190, %v175, 0
    %v195 = vsel %vm190, %v176, 0
    %v198 = vsel %vm190, %v177, 0
    %v201 = vsel %vm190, %v178, 0
    %v204 = vsel %vm190, %v179, 0
    %v207 = vsel %vm190, %v180, 0
    %vm209 = vcmask 1043456
    %v211 = vsel %vm209, %v188, 0
    %v214 = vsel %vm209, %v189, 0
    %216 = vmatprep.subr.mxu0 %v183
    %217 = vmatpush1.msra.mxu0 %v182
    %218 = vmatprep.subr.mxu0 %v185
    %219 = vmatpush1.msra.mxu0 %v184
    %220 = vmatprep.subr.mxu0 %v187
    %221 = vmatpush1.msra.mxu0 %v186
    %222 = vmatprep.subr.mxu0 %v214
    %223 = vmatpush1.msra.mxu0 %v211
    %224 = vmatprep.subr.mxu0 0.0
    %225 = vmatpush1.msra.mxu0 0.0
    %226 = vmatprep.subr.mxu0 0.0
    %227 = vmatpush1.msra.mxu0 0.0
    %228 = vmatprep.subr.mxu0 0.0
    %229 = vmatpush1.msra.mxu0 0.0
    %230 = vmatprep.subr.mxu0 0.0
    %231 = vmatpush1.msra.mxu0 0.0
    %232 = vmatprep.subr.mxu0 0.0
    %233 = vmatpush1.msra.mxu0 0.0
    %234 = vmatprep.subr.mxu0 0.0
    %235 = vmatpush1.msra.mxu0 0.0
    %236 = vmatprep.subr.mxu0 0.0
    %237 = vmatpush1.msra.mxu0 0.0
    %238 = vmatprep.subr.mxu0 0.0
    %239 = vmatpush1.msra.mxu0 0.0
    %240 = vmatprep.subr.mxu0 0.0
    %241 = vmatpush1.msra.mxu0 0.0
    %242 = vmatprep.subr.mxu0 0.0
    %243 = vmatpush1.msra.mxu0 0.0
    %244 = vmatprep.subr.mxu0 0.0
    %245 = vmatpush1.msra.mxu0 0.0
    %246 = vmatprep.subr.mxu0 0.0
    %247 = vmatpush1.msra.mxu0 0.0
    %248 = vmatprep.subr.mxu0 0.0
    %249 = vmatpush1.msra.mxu0 0.0
    %250 = vmatprep.subr.mxu0 0.0
    %251 = vmatpush1.msra.mxu0 0.0
    %252 = vmatprep.subr.mxu0 0.0
    %253 = vmatpush1.msra.mxu0 0.0
    %254 = vmatprep.subr.mxu0 0.0
    %255 = vmatpush1.msra.mxu0 0.0
    %256 = vmatprep.subr.mxu0 0.0
    %257 = vmatpush1.msra.mxu0 0.0
    %258 = vmatprep.subr.mxu0 0.0
    %259 = vmatpush1.msra.mxu0 0.0
    %260 = vmatprep.subr.mxu0 0.0
    %261 = vmatpush1.msra.mxu0 0.0
    %262 = vmatprep.subr.mxu0 0.0
    %263 = vmatpush1.msra.mxu0 0.0
    %264 = vmatprep.subr.mxu0 0.0
    %265 = vmatpush1.msra.mxu0 0.0
    %266 = vmatprep.subr.mxu0 0.0
    %267 = vmatpush1.msra.mxu0 0.0
    %268 = vmatprep.subr.mxu0 0.0
    %269 = vmatpush1.msra.mxu0 0.0
    %270 = vmatprep.subr.mxu0 0.0
    %271 = vmatpush1.msra.mxu0 0.0
    %272 = vmatprep.subr.mxu0 0.0
    %273 = vmatpush1.msra.mxu0 0.0
    %274 = vmatprep.subr.mxu0 0.0
    %275 = vmatpush1.msra.mxu0 0.0
    %276 = vmatprep.subr.mxu0 0.0
    %277 = vmatpush1.msra.mxu0 0.0
    %278 = vmatprep.subr.mxu0 0.0
    %279 = vmatpush1.msra.mxu0 0.0
    %280 = vmatprep.mubr.f32.mxu0 0.0
    %281 = vmatmul.mubr.f32.gmra.mrb[0].mxu0 %v192
    %v282 = vpop.f32.mrb[0].mxu0
    %v283 = vadd.f32 0.0, %v282
    %v284 = vpop.f32.mrb[0].mxu0
    %v285 = vadd.f32 0.0, %v284
    %286 = vmatprep.mubr.f32.mxu0 0.0
    %287 = vmatmul.mubr.f32.gmra.mrb[0].mxu0 %v195
    %v288 = vpop.f32.mrb[0].mxu0
    %v289 = vadd.f32 0.0, %v288
    %v290 = vpop.f32.mrb[0].mxu0
    %v291 = vadd.f32 0.0, %v290
    %292 = vmatprep.mubr.f32.mxu0 0.0
    %293 = vmatmul.mubr.f32.gmra.mrb[0].mxu0 %v198
    %v294 = vpop.f32.mrb[0].mxu0
    %v295 = vadd.f32 0.0, %v294
    %v296 = vpop.f32.mrb[0].mxu0
    %v297 = vadd.f32 0.0, %v296
    %298 = vmatprep.mubr.f32.mxu0 0.0
    %299 = vmatmul.mubr.f32.gmra.mrb[0].mxu0 %v201
    %v300 = vpop.f32.mrb[0].mxu0
    %v301 = vadd.f32 0.0, %v300
    %v302 = vpop.f32.mrb[0].mxu0
    %v303 = vadd.f32 0.0, %v302
    %304 = vmatprep.mubr.f32.mxu0 0.0
    %305 = vmatmul.mubr.f32.gmra.mrb[0].mxu0 %v204
    %v306 = vpop.f32.mrb[0].mxu0
    %v307 = vadd.f32 0.0, %v306
    %v308 = vpop.f32.mrb[0].mxu0
    %v309 = vadd.f32 0.0, %v308
    %310 = vmatprep.mubr.f32.mxu0 0.0
    %311 = vmatmul.mubr.f32.gmra.mrb[0].mxu0 %v207
    %v312 = vpop.f32.mrb[0].mxu0
    %v313 = vadd.f32 0.0, %v312
    %v314 = vpop.f32.mrb[0].mxu0
    %v315 = vadd.f32 0.0, %v314
    %316 = vdwg.mxu0
    %v318 = vsel %vm190, %v161, 0
    %v321 = vsel %vm190, %v162, 0
    %v324 = vsel %vm190, %v163, 0
    %v327 = vsel %vm190, %v164, 0
    %v330 = vsel %vm190, %v165, 0
    %v333 = vsel %vm190, %v166, 0
    %v336 = vsel %vm209, %v173, 0
    %v339 = vsel %vm209, %v174, 0
    %341 = vmatprep.subr.mxu0 %v168
    %342 = vmatpush1.msra.mxu0 %v167
    %343 = vmatprep.subr.mxu0 %v170
    %344 = vmatpush1.msra.mxu0 %v169
    %345 = vmatprep.subr.mxu0 %v172
    %346 = vmatpush1.msra.mxu0 %v171
    %347 = vmatprep.subr.mxu0 %v339
    %348 = vmatpush1.msra.mxu0 %v336
    %349 = vmatprep.subr.mxu0 0.0
    %350 = vmatpush1.msra.mxu0 0.0
    %351 = vmatprep.subr.mxu0 0.0
    %352 = vmatpush1.msra.mxu0 0.0
    %353 = vmatprep.subr.mxu0 0.0
    %354 = vmatpush1.msra.mxu0 0.0
    %355 = vmatprep.subr.mxu0 0.0
    %356 = vmatpush1.msra.mxu0 0.0
    %357 = vmatprep.subr.mxu0 0.0
    %358 = vmatpush1.msra.mxu0 0.0
    %359 = vmatprep.subr.mxu0 0.0
    %360 = vmatpush1.msra.mxu0 0.0
    %361 = vmatprep.subr.mxu0 0.0
    %362 = vmatpush1.msra.mxu0 0.0
    %363 = vmatprep.subr.mxu0 0.0
    %364 = vmatpush1.msra.mxu0 0.0
    %365 = vmatprep.subr.mxu0 0.0
    %366 = vmatpush1.msra.mxu0 0.0
    %367 = vmatprep.subr.mxu0 0.0
    %368 = vmatpush1.msra.mxu0 0.0
    %369 = vmatprep.subr.mxu0 0.0
    %370 = vmatpush1.msra.mxu0 0.0
    %371 = vmatprep.subr.mxu0 0.0
    %372 = vmatpush1.msra.mxu0 0.0
    %373 = vmatprep.subr.mxu0 0.0
    %374 = vmatpush1.msra.mxu0 0.0
    %375 = vmatprep.subr.mxu0 0.0
    %376 = vmatpush1.msra.mxu0 0.0
    %377 = vmatprep.subr.mxu0 0.0
    %378 = vmatpush1.msra.mxu0 0.0
    %379 = vmatprep.subr.mxu0 0.0
    %380 = vmatpush1.msra.mxu0 0.0
    %381 = vmatprep.subr.mxu0 0.0
    %382 = vmatpush1.msra.mxu0 0.0
    %383 = vmatprep.subr.mxu0 0.0
    %384 = vmatpush1.msra.mxu0 0.0
    %385 = vmatprep.subr.mxu0 0.0
    %386 = vmatpush1.msra.mxu0 0.0
    %387 = vmatprep.subr.mxu0 0.0
    %388 = vmatpush1.msra.mxu0 0.0
    %389 = vmatprep.subr.mxu0 0.0
    %390 = vmatpush1.msra.mxu0 0.0
    %391 = vmatprep.subr.mxu0 0.0
    %392 = vmatpush1.msra.mxu0 0.0
    %393 = vmatprep.subr.mxu0 0.0
    %394 = vmatpush1.msra.mxu0 0.0
    %395 = vmatprep.subr.mxu0 0.0
    %396 = vmatpush1.msra.mxu0 0.0
    %397 = vmatprep.subr.mxu0 0.0
    %398 = vmatpush1.msra.mxu0 0.0
    %399 = vmatprep.subr.mxu0 0.0
    %400 = vmatpush1.msra.mxu0 0.0
    %401 = vmatprep.subr.mxu0 0.0
    %402 = vmatpush1.msra.mxu0 0.0
    %403 = vmatprep.subr.mxu0 0.0
    %404 = vmatpush1.msra.mxu0 0.0
    %405 = vmatprep.mubr.f32.mxu0 0.0
    %406 = vmatmul.mubr.f32.gmra.mrb[0].mxu0 %v318
    %v407 = vpop.f32.mrb[0].mxu0
    %v408 = vadd.f32 %v283, %v407
    %v409 = vpop.f32.mrb[0].mxu0
    %v410 = vadd.f32 %v285, %v409
    %411 = vmatprep.mubr.f32.mxu0 0.0
    %412 = vmatmul.mubr.f32.gmra.mrb[0].mxu0 %v321
    %v413 = vpop.f32.mrb[0].mxu0
    %v414 = vadd.f32 %v289, %v413
    %v415 = vpop.f32.mrb[0].mxu0
    %v416 = vadd.f32 %v291, %v415
    %417 = vmatprep.mubr.f32.mxu0 0.0
    %418 = vmatmul.mubr.f32.gmra.mrb[0].mxu0 %v324
    %v419 = vpop.f32.mrb[0].mxu0
    %v420 = vadd.f32 %v295, %v419
    %v421 = vpop.f32.mrb[0].mxu0
    %v422 = vadd.f32 %v297, %v421
    %423 = vmatprep.mubr.f32.mxu0 0.0
    %424 = vmatmul.mubr.f32.gmra.mrb[0].mxu0 %v327
    %v425 = vpop.f32.mrb[0].mxu0
    %v426 = vadd.f32 %v301, %v425
    %v427 = vpop.f32.mrb[0].mxu0
    %v428 = vadd.f32 %v303, %v427
    %429 = vmatprep.mubr.f32.mxu0 0.0
    %430 = vmatmul.mubr.f32.gmra.mrb[0].mxu0 %v330
    %v431 = vpop.f32.mrb[0].mxu0
    %v432 = vadd.f32 %v307, %v431
    %v433 = vpop.f32.mrb[0].mxu0
    %v434 = vadd.f32 %v309, %v433
    %435 = vmatprep.mubr.f32.mxu0 0.0
    %436 = vmatmul.mubr.f32.gmra.mrb[0].mxu0 %v333
    %v437 = vpop.f32.mrb[0].mxu0
    %v438 = vadd.f32 %v313, %v437
    %v439 = vpop.f32.mrb[0].mxu0
    %v440 = vadd.f32 %v315, %v439
    %441 = vdwg.mxu0
    %v442 = vld [vmem:[%s0 + $0x2] sm:$0xff]
    %v443 = vld [vmem:[%s0 + $0xa] sm:$0xff]
    %v444 = vld [vmem:[%s0 + $0x12] sm:$0xff]
    %v445 = vld [vmem:[%s0 + $0x22] sm:$0xff]
    %v446 = vld [vmem:[%s0 + $0x2a] sm:$0xff]
    %v447 = vld [vmem:[%s0 + $0x32] sm:$0xff]
    %s448 = scalar_lea.vmem %s1, 128
    %v449 = vld [vmem:[%s448] sm:$0xff]
    %v450 = vld [vmem:[%s448 + $0x8] sm:$0xff]
    %v451 = vld [vmem:[%s448 + $0x10] sm:$0xff]
    %v452 = vld [vmem:[%s448 + $0x18] sm:$0xff]
    %v453 = vld [vmem:[%s448 + $0x20] sm:$0xff]
    %v454 = vld [vmem:[%s448 + $0x28] sm:$0xff]
    %v455 = vld [vmem:[%s448 + $0x30] sm:$0xf]
    %v456 = vld [vmem:[%s448 + $0x38] sm:$0xf]
    %v458 = vsel %vm190, %v442, 0
    %v461 = vsel %vm190, %v443, 0
    %v464 = vsel %vm190, %v444, 0
    %v467 = vsel %vm190, %v445, 0
    %v470 = vsel %vm190, %v446, 0
    %v473 = vsel %vm190, %v447, 0
    %v476 = vsel %vm209, %v455, 0
    %v479 = vsel %vm209, %v456, 0
    %481 = vmatprep.subr.mxu0 %v450
    %482 = vmatpush1.msra.mxu0 %v449
    %483 = vmatprep.subr.mxu0 %v452
    %484 = vmatpush1.msra.mxu0 %v451
    %485 = vmatprep.subr.mxu0 %v454
    %486 = vmatpush1.msra.mxu0 %v453
    %487 = vmatprep.subr.mxu0 %v479
    %488 = vmatpush1.msra.mxu0 %v476
    %489 = vmatprep.subr.mxu0 0.0
    %490 = vmatpush1.msra.mxu0 0.0
    %491 = vmatprep.subr.mxu0 0.0
    %492 = vmatpush1.msra.mxu0 0.0
    %493 = vmatprep.subr.mxu0 0.0
    %494 = vmatpush1.msra.mxu0 0.0
    %495 = vmatprep.subr.mxu0 0.0
    %496 = vmatpush1.msra.mxu0 0.0
    %497 = vmatprep.subr.mxu0 0.0
    %498 = vmatpush1.msra.mxu0 0.0
    %499 = vmatprep.subr.mxu0 0.0
    %500 = vmatpush1.msra.mxu0 0.0
    %501 = vmatprep.subr.mxu0 0.0
    %502 = vmatpush1.msra.mxu0 0.0
    %503 = vmatprep.subr.mxu0 0.0
    %504 = vmatpush1.msra.mxu0 0.0
    %505 = vmatprep.subr.mxu0 0.0
    %506 = vmatpush1.msra.mxu0 0.0
    %507 = vmatprep.subr.mxu0 0.0
    %508 = vmatpush1.msra.mxu0 0.0
    %509 = vmatprep.subr.mxu0 0.0
    %510 = vmatpush1.msra.mxu0 0.0
    %511 = vmatprep.subr.mxu0 0.0
    %512 = vmatpush1.msra.mxu0 0.0
    %513 = vmatprep.subr.mxu0 0.0
    %514 = vmatpush1.msra.mxu0 0.0
    %515 = vmatprep.subr.mxu0 0.0
    %516 = vmatpush1.msra.mxu0 0.0
    %517 = vmatprep.subr.mxu0 0.0
    %518 = vmatpush1.msra.mxu0 0.0
    %519 = vmatprep.subr.mxu0 0.0
    %520 = vmatpush1.msra.mxu0 0.0
    %521 = vmatprep.subr.mxu0 0.0
    %522 = vmatpush1.msra.mxu0 0.0
    %523 = vmatprep.subr.mxu0 0.0
    %524 = vmatpush1.msra.mxu0 0.0
    %525 = vmatprep.subr.mxu0 0.0
    %526 = vmatpush1.msra.mxu0 0.0
    %527 = vmatprep.subr.mxu0 0.0
    %528 = vmatpush1.msra.mxu0 0.0
    %529 = vmatprep.subr.mxu0 0.0
    %530 = vmatpush1.msra.mxu0 0.0
    %531 = vmatprep.subr.mxu0 0.0
    %532 = vmatpush1.msra.mxu0 0.0
    %533 = vmatprep.subr.mxu0 0.0
    %534 = vmatpush1.msra.mxu0 0.0
    %535 = vmatprep.subr.mxu0 0.0
    %536 = vmatpush1.msra.mxu0 0.0
    %537 = vmatprep.subr.mxu0 0.0
    %538 = vmatpush1.msra.mxu0 0.0
    %539 = vmatprep.subr.mxu0 0.0
    %540 = vmatpush1.msra.mxu0 0.0
    %541 = vmatprep.subr.mxu0 0.0
    %542 = vmatpush1.msra.mxu0 0.0
    %543 = vmatprep.subr.mxu0 0.0
    %544 = vmatpush1.msra.mxu0 0.0
    %545 = vmatprep.mubr.f32.mxu0 0.0
    %546 = vmatmul.mubr.f32.gmra.mrb[0].mxu0 %v458
    %v547 = vpop.f32.mrb[0].mxu0
    %v548 = vadd.f32 0.0, %v547
    %v549 = vpop.f32.mrb[0].mxu0
    %v550 = vadd.f32 0.0, %v549
    %551 = vmatprep.mubr.f32.mxu0 0.0
    %552 = vmatmul.mubr.f32.gmra.mrb[0].mxu0 %v461
    %v553 = vpop.f32.mrb[0].mxu0
    %v554 = vadd.f32 0.0, %v553
    %v555 = vpop.f32.mrb[0].mxu0
    %v556 = vadd.f32 0.0, %v555
    %557 = vmatprep.mubr.f32.mxu0 0.0
    %558 = vmatmul.mubr.f32.gmra.mrb[0].mxu0 %v464
    %v559 = vpop.f32.mrb[0].mxu0
    %v560 = vadd.f32 0.0, %v559
    %v561 = vpop.f32.mrb[0].mxu0
    %v562 = vadd.f32 0.0, %v561
    %563 = vmatprep.mubr.f32.mxu0 0.0
    %564 = vmatmul.mubr.f32.gmra.mrb[0].mxu0 %v467
    %v565 = vpop.f32.mrb[0].mxu0
    %v566 = vadd.f32 0.0, %v565
    %v567 = vpop.f32.mrb[0].mxu0
    %v568 = vadd.f32 0.0, %v567
    %569 = vmatprep.mubr.f32.mxu0 0.0
    %570 = vmatmul.mubr.f32.gmra.mrb[0].mxu0 %v470
    %v571 = vpop.f32.mrb[0].mxu0
    %v572 = vadd.f32 0.0, %v571
    %v573 = vpop.f32.mrb[0].mxu0
    %v574 = vadd.f32 0.0, %v573
    %575 = vmatprep.mubr.f32.mxu0 0.0
    %576 = vmatmul.mubr.f32.gmra.mrb[0].mxu0 %v473
    %v577 = vpop.f32.mrb[0].mxu0
    %v578 = vadd.f32 0.0, %v577
    %v579 = vpop.f32.mrb[0].mxu0
    %v580 = vadd.f32 0.0, %v579
    %581 = vdwg.mxu0
    %v582 = vadd.f32 %v408, %v548
    %v583 = vadd.f32 %v410, %v550
    %v584 = vadd.f32 %v414, %v554
    %v585 = vadd.f32 %v416, %v556
    %v586 = vadd.f32 %v420, %v560
    %v587 = vadd.f32 %v422, %v562
    %v588 = vadd.f32 %v426, %v566
    %v589 = vadd.f32 %v428, %v568
    %v590 = vadd.f32 %v432, %v572
    %v591 = vadd.f32 %v434, %v574
    %v592 = vadd.f32 %v438, %v578
    %v593 = vadd.f32 %v440, %v580
    %v594 = vld [vmem:[%s0 + $0x3] sm:$0xff]
    %v595 = vld [vmem:[%s0 + $0xb] sm:$0xff]
    %v596 = vld [vmem:[%s0 + $0x13] sm:$0xff]
    %v597 = vld [vmem:[%s0 + $0x23] sm:$0xff]
    %v598 = vld [vmem:[%s0 + $0x2b] sm:$0xff]
    %v599 = vld [vmem:[%s0 + $0x33] sm:$0xff]
    %s600 = scalar_lea.vmem %s1, 192
    %v601 = vld [vmem:[%s600] sm:$0xff]
    %v602 = vld [vmem:[%s600 + $0x8] sm:$0xff]
    %v603 = vld [vmem:[%s600 + $0x10] sm:$0xff]
    %v604 = vld [vmem:[%s600 + $0x18] sm:$0xff]
    %v605 = vld [vmem:[%s600 + $0x20] sm:$0xff]
    %v606 = vld [vmem:[%s600 + $0x28] sm:$0xff]
    %v607 = vld [vmem:[%s600 + $0x30] sm:$0xf]
    %v608 = vld [vmem:[%s600 + $0x38] sm:$0xf]
    %v610 = vsel %vm190, %v594, 0
    %v613 = vsel %vm190, %v595, 0
    %v616 = vsel %vm190, %v596, 0
    %v619 = vsel %vm190, %v597, 0
    %v622 = vsel %vm190, %v598, 0
    %v625 = vsel %vm190, %v599, 0
    %v628 = vsel %vm209, %v607, 0
    %v631 = vsel %vm209, %v608, 0
    %633 = vmatprep.subr.mxu0 %v602
    %634 = vmatpush1.msra.mxu0 %v601
    %635 = vmatprep.subr.mxu0 %v604
    %636 = vmatpush1.msra.mxu0 %v603
    %637 = vmatprep.subr.mxu0 %v606
    %638 = vmatpush1.msra.mxu0 %v605
    %639 = vmatprep.subr.mxu0 %v631
    %640 = vmatpush1.msra.mxu0 %v628
    %641 = vmatprep.subr.mxu0 0.0
    %642 = vmatpush1.msra.mxu0 0.0
    %643 = vmatprep.subr.mxu0 0.0
    %644 = vmatpush1.msra.mxu0 0.0
    %645 = vmatprep.subr.mxu0 0.0
    %646 = vmatpush1.msra.mxu0 0.0
    %647 = vmatprep.subr.mxu0 0.0
    %648 = vmatpush1.msra.mxu0 0.0
    %649 = vmatprep.subr.mxu0 0.0
    %650 = vmatpush1.msra.mxu0 0.0
    %651 = vmatprep.subr.mxu0 0.0
    %652 = vmatpush1.msra.mxu0 0.0
    %653 = vmatprep.subr.mxu0 0.0
    %654 = vmatpush1.msra.mxu0 0.0
    %655 = vmatprep.subr.mxu0 0.0
    %656 = vmatpush1.msra.mxu0 0.0
    %657 = vmatprep.subr.mxu0 0.0
    %658 = vmatpush1.msra.mxu0 0.0
    %659 = vmatprep.subr.mxu0 0.0
    %660 = vmatpush1.msra.mxu0 0.0
    %661 = vmatprep.subr.mxu0 0.0
    %662 = vmatpush1.msra.mxu0 0.0
    %663 = vmatprep.subr.mxu0 0.0
    %664 = vmatpush1.msra.mxu0 0.0
    %665 = vmatprep.subr.mxu0 0.0
    %666 = vmatpush1.msra.mxu0 0.0
    %667 = vmatprep.subr.mxu0 0.0
    %668 = vmatpush1.msra.mxu0 0.0
    %669 = vmatprep.subr.mxu0 0.0
    %670 = vmatpush1.msra.mxu0 0.0
    %671 = vmatprep.subr.mxu0 0.0
    %672 = vmatpush1.msra.mxu0 0.0
    %673 = vmatprep.subr.mxu0 0.0
    %674 = vmatpush1.msra.mxu0 0.0
    %675 = vmatprep.subr.mxu0 0.0
    %676 = vmatpush1.msra.mxu0 0.0
    %677 = vmatprep.subr.mxu0 0.0
    %678 = vmatpush1.msra.mxu0 0.0
    %679 = vmatprep.subr.mxu0 0.0
    %680 = vmatpush1.msra.mxu0 0.0
    %681 = vmatprep.subr.mxu0 0.0
    %682 = vmatpush1.msra.mxu0 0.0
    %683 = vmatprep.subr.mxu0 0.0
    %684 = vmatpush1.msra.mxu0 0.0
    %685 = vmatprep.subr.mxu0 0.0
    %686 = vmatpush1.msra.mxu0 0.0
    %687 = vmatprep.subr.mxu0 0.0
    %688 = vmatpush1.msra.mxu0 0.0
    %689 = vmatprep.subr.mxu0 0.0
    %690 = vmatpush1.msra.mxu0 0.0
    %691 = vmatprep.subr.mxu0 0.0
    %692 = vmatpush1.msra.mxu0 0.0
    %693 = vmatprep.subr.mxu0 0.0
    %694 = vmatpush1.msra.mxu0 0.0
    %695 = vmatprep.subr.mxu0 0.0
    %696 = vmatpush1.msra.mxu0 0.0
    %697 = vmatprep.mubr.f32.mxu0 0.0
    %698 = vmatmul.mubr.f32.gmra.mrb[0].mxu0 %v610
    %v699 = vpop.f32.mrb[0].mxu0
    %v700 = vadd.f32 0.0, %v699
    %v701 = vpop.f32.mrb[0].mxu0
    %v702 = vadd.f32 0.0, %v701
    %703 = vmatprep.mubr.f32.mxu0 0.0
    %704 = vmatmul.mubr.f32.gmra.mrb[0].mxu0 %v613
    %v705 = vpop.f32.mrb[0].mxu0
    %v706 = vadd.f32 0.0, %v705
    %v707 = vpop.f32.mrb[0].mxu0
    %v708 = vadd.f32 0.0, %v707
    %709 = vmatprep.mubr.f32.mxu0 0.0
    %710 = vmatmul.mubr.f32.gmra.mrb[0].mxu0 %v616
    %v711 = vpop.f32.mrb[0].mxu0
    %v712 = vadd.f32 0.0, %v711
    %v713 = vpop.f32.mrb[0].mxu0
    %v714 = vadd.f32 0.0, %v713
    %715 = vmatprep.mubr.f32.mxu0 0.0
    %716 = vmatmul.mubr.f32.gmra.mrb[0].mxu0 %v619
    %v717 = vpop.f32.mrb[0].mxu0
    %v718 = vadd.f32 0.0, %v717
    %v719 = vpop.f32.mrb[0].mxu0
    %v720 = vadd.f32 0.0, %v719
    %721 = vmatprep.mubr.f32.mxu0 0.0
    %722 = vmatmul.mubr.f32.gmra.mrb[0].mxu0 %v622
    %v723 = vpop.f32.mrb[0].mxu0
    %v724 = vadd.f32 0.0, %v723
    %v725 = vpop.f32.mrb[0].mxu0
    %v726 = vadd.f32 0.0, %v725
    %727 = vmatprep.mubr.f32.mxu0 0.0
    %728 = vmatmul.mubr.f32.gmra.mrb[0].mxu0 %v625
    %v729 = vpop.f32.mrb[0].mxu0
    %v730 = vadd.f32 0.0, %v729
    %v731 = vpop.f32.mrb[0].mxu0
    %v732 = vadd.f32 0.0, %v731
    %733 = vdwg.mxu0
    %v734 = vadd.f32 %v582, %v700
    %v735 = vadd.f32 %v583, %v702
    %v736 = vadd.f32 %v584, %v706
    %v737 = vadd.f32 %v585, %v708
    %v738 = vadd.f32 %v586, %v712
    %v739 = vadd.f32 %v587, %v714
    %v740 = vadd.f32 %v588, %v718
    %v741 = vadd.f32 %v589, %v720
    %v742 = vadd.f32 %v590, %v724
    %v743 = vadd.f32 %v591, %v726
    %v744 = vadd.f32 %v592, %v730
    %v745 = vadd.f32 %v593, %v732
    %v746 = vld [vmem:[%s0 + $0x4] sm:$0xff]
    %v747 = vld [vmem:[%s0 + $0xc] sm:$0xff]
    %v748 = vld [vmem:[%s0 + $0x14] sm:$0xff]
    %v749 = vld [vmem:[%s0 + $0x24] sm:$0xff]
    %v750 = vld [vmem:[%s0 + $0x2c] sm:$0xff]
    %v751 = vld [vmem:[%s0 + $0x34] sm:$0xff]
    %s752 = scalar_lea.vmem %s1, 256
    %v753 = vld [vmem:[%s752] sm:$0xff]
    %v754 = vld [vmem:[%s752 + $0x8] sm:$0xff]
    %v755 = vld [vmem:[%s752 + $0x10] sm:$0xff]
    %v756 = vld [vmem:[%s752 + $0x18] sm:$0xff]
    %v757 = vld [vmem:[%s752 + $0x20] sm:$0xff]
    %v758 = vld [vmem:[%s752 + $0x28] sm:$0xff]
    %v759 = vld [vmem:[%s752 + $0x30] sm:$0xf]
    %v760 = vld [vmem:[%s752 + $0x38] sm:$0xf]
    %v762 = vsel %vm190, %v746, 0
    %v765 = vsel %vm190, %v747, 0
    %v768 = vsel %vm190, %v748, 0
    %v771 = vsel %vm190, %v749, 0
    %v774 = vsel %vm190, %v750, 0
    %v777 = vsel %vm190, %v751, 0
    %v780 = vsel %vm209, %v759, 0
    %v783 = vsel %vm209, %v760, 0
    %785 = vmatprep.subr.mxu0 %v754
    %786 = vmatpush1.msra.mxu0 %v753
    %787 = vmatprep.subr.mxu0 %v756
    %788 = vmatpush1.msra.mxu0 %v755
    %789 = vmatprep.subr.mxu0 %v758
    %790 = vmatpush1.msra.mxu0 %v757
    %791 = vmatprep.subr.mxu0 %v783
    %792 = vmatpush1.msra.mxu0 %v780
    %793 = vmatprep.subr.mxu0 0.0
    %794 = vmatpush1.msra.mxu0 0.0
    %795 = vmatprep.subr.mxu0 0.0
    %796 = vmatpush1.msra.mxu0 0.0
    %797 = vmatprep.subr.mxu0 0.0
    %798 = vmatpush1.msra.mxu0 0.0
    %799 = vmatprep.subr.mxu0 0.0
    %800 = vmatpush1.msra.mxu0 0.0
    %801 = vmatprep.subr.mxu0 0.0
    %802 = vmatpush1.msra.mxu0 0.0
    %803 = vmatprep.subr.mxu0 0.0
    %804 = vmatpush1.msra.mxu0 0.0
    %805 = vmatprep.subr.mxu0 0.0
    %806 = vmatpush1.msra.mxu0 0.0
    %807 = vmatprep.subr.mxu0 0.0
    %808 = vmatpush1.msra.mxu0 0.0
    %809 = vmatprep.subr.mxu0 0.0
    %810 = vmatpush1.msra.mxu0 0.0
    %811 = vmatprep.subr.mxu0 0.0
    %812 = vmatpush1.msra.mxu0 0.0
    %813 = vmatprep.subr.mxu0 0.0
    %814 = vmatpush1.msra.mxu0 0.0
    %815 = vmatprep.subr.mxu0 0.0
    %816 = vmatpush1.msra.mxu0 0.0
    %817 = vmatprep.subr.mxu0 0.0
    %818 = vmatpush1.msra.mxu0 0.0
    %819 = vmatprep.subr.mxu0 0.0
    %820 = vmatpush1.msra.mxu0 0.0
    %821 = vmatprep.subr.mxu0 0.0
    %822 = vmatpush1.msra.mxu0 0.0
    %823 = vmatprep.subr.mxu0 0.0
    %824 = vmatpush1.msra.mxu0 0.0
    %825 = vmatprep.subr.mxu0 0.0
    %826 = vmatpush1.msra.mxu0 0.0
    %827 = vmatprep.subr.mxu0 0.0
    %828 = vmatpush1.msra.mxu0 0.0
    %829 = vmatprep.subr.mxu0 0.0
    %830 = vmatpush1.msra.mxu0 0.0
    %831 = vmatprep.subr.mxu0 0.0
    %832 = vmatpush1.msra.mxu0 0.0
    %833 = vmatprep.subr.mxu0 0.0
    %834 = vmatpush1.msra.mxu0 0.0
    %835 = vmatprep.subr.mxu0 0.0
    %836 = vmatpush1.msra.mxu0 0.0
    %837 = vmatprep.subr.mxu0 0.0
    %838 = vmatpush1.msra.mxu0 0.0
    %839 = vmatprep.subr.mxu0 0.0
    %840 = vmatpush1.msra.mxu0 0.0
    %841 = vmatprep.subr.mxu0 0.0
    %842 = vmatpush1.msra.mxu0 0.0
    %843 = vmatprep.subr.mxu0 0.0
    %844 = vmatpush1.msra.mxu0 0.0
    %845 = vmatprep.subr.mxu0 0.0
    %846 = vmatpush1.msra.mxu0 0.0
    %847 = vmatprep.subr.mxu0 0.0
    %848 = vmatpush1.msra.mxu0 0.0
    %849 = vmatprep.mubr.f32.mxu0 0.0
    %850 = vmatmul.mubr.f32.gmra.mrb[0].mxu0 %v762
    %v851 = vpop.f32.mrb[0].mxu0
    %v852 = vadd.f32 0.0, %v851
    %v853 = vpop.f32.mrb[0].mxu0
    %v854 = vadd.f32 0.0, %v853
    %855 = vmatprep.mubr.f32.mxu0 0.0
    %856 = vmatmul.mubr.f32.gmra.mrb[0].mxu0 %v765
    %v857 = vpop.f32.mrb[0].mxu0
    %v858 = vadd.f32 0.0, %v857
    %v859 = vpop.f32.mrb[0].mxu0
    %v860 = vadd.f32 0.0, %v859
    %861 = vmatprep.mubr.f32.mxu0 0.0
    %862 = vmatmul.mubr.f32.gmra.mrb[0].mxu0 %v768
    %v863 = vpop.f32.mrb[0].mxu0
    %v864 = vadd.f32 0.0, %v863
    %v865 = vpop.f32.mrb[0].mxu0
    %v866 = vadd.f32 0.0, %v865
    %867 = vmatprep.mubr.f32.mxu0 0.0
    %868 = vmatmul.mubr.f32.gmra.mrb[0].mxu0 %v771
    %v869 = vpop.f32.mrb[0].mxu0
    %v870 = vadd.f32 0.0, %v869
    %v871 = vpop.f32.mrb[0].mxu0
    %v872 = vadd.f32 0.0, %v871
    %873 = vmatprep.mubr.f32.mxu0 0.0
    %874 = vmatmul.mubr.f32.gmra.mrb[0].mxu0 %v774
    %v875 = vpop.f32.mrb[0].mxu0
    %v876 = vadd.f32 0.0, %v875
    %v877 = vpop.f32.mrb[0].mxu0
    %v878 = vadd.f32 0.0, %v877
    %879 = vmatprep.mubr.f32.mxu0 0.0
    %880 = vmatmul.mubr.f32.gmra.mrb[0].mxu0 %v777
    %v881 = vpop.f32.mrb[0].mxu0
    %v882 = vadd.f32 0.0, %v881
    %v883 = vpop.f32.mrb[0].mxu0
    %v884 = vadd.f32 0.0, %v883
    %885 = vdwg.mxu0
    %v886 = vadd.f32 %v734, %v852
    %v887 = vadd.f32 %v735, %v854
    %v888 = vadd.f32 %v736, %v858
    %v889 = vadd.f32 %v737, %v860
    %v890 = vadd.f32 %v738, %v864
    %v891 = vadd.f32 %v739, %v866
    %v892 = vadd.f32 %v740, %v870
    %v893 = vadd.f32 %v741, %v872
    %v894 = vadd.f32 %v742, %v876
    %v895 = vadd.f32 %v743, %v878
    %v896 = vadd.f32 %v744, %v882
    %v897 = vadd.f32 %v745, %v884
    %v898 = vld [vmem:[%s2] sm:$0x3]
    %v900 = vlaneseq
    %v901 = vshrl.u32 %v900, 7
    %v902 = vsub.s32 0, %v901
    %v903 = vrot.slane %v898, %v902
    %v904 = vlaneseq
    %v905 = vshrl.u32 %v904, 7
    %v906 = vsub.s32 1, %v905
    %v907 = vrot.slane %v898, %v906
    %v910 = vadd.f32 %v886, %v903
    %v911 = vadd.f32 %v887, %v907
    %v912 = vadd.f32 %v888, %v903
    %v913 = vadd.f32 %v889, %v907
    %v914 = vadd.f32 %v890, %v903
    %v915 = vadd.f32 %v891, %v907
    %v916 = vadd.f32 %v892, %v903
    %v917 = vadd.f32 %v893, %v907
    %v918 = vadd.f32 %v894, %v903
    %v919 = vadd.f32 %v895, %v907
    %v920 = vadd.f32 %v896, %v903
    %v921 = vadd.f32 %v897, %v907
    %v922 = vmax.f32 %v910, 0.0
    %v923 = vmax.f32 %v911, 0.0
    %v924 = vmax.f32 %v912, 0.0
    %v925 = vmax.f32 %v913, 0.0
    %v926 = vmax.f32 %v914, 0.0
    %v927 = vmax.f32 %v915, 0.0
    %v928 = vmax.f32 %v916, 0.0
    %v929 = vmax.f32 %v917, 0.0
    %v930 = vmax.f32 %v918, 0.0
    %v931 = vmax.f32 %v919, 0.0
    %v932 = vmax.f32 %v920, 0.0
    %v933 = vmax.f32 %v921, 0.0
    %v934 = vld [vmem:[#allocation2] sm:$0xff]
    %v935 = vld [vmem:[#allocation2 + $0x8] sm:$0xff]
    %v936 = vld [vmem:[#allocation2 + $0x10] sm:$0xff]
    %vm937 = vcmask 392192
    %v939 = vsel %vm937, %v934, 0
    %v942 = vsel %vm937, %v935, 0
    %v945 = vsel %vm937, %v936, 0
    %947 = vmatprep.subr.mxu0 %v923
    %948 = vmatpush1.msra.mxu0 %v922
    %949 = vmatprep.subr.mxu0 %v925
    %950 = vmatpush1.msra.mxu0 %v924
    %951 = vmatprep.subr.mxu0 %v927
    %952 = vmatpush1.msra.mxu0 %v926
    %953 = vmatprep.subr.mxu0 %v929
    %954 = vmatpush1.msra.mxu0 %v928
    %955 = vmatprep.subr.mxu0 %v931
    %956 = vmatpush1.msra.mxu0 %v930
    %957 = vmatprep.subr.mxu0 %v933
    %958 = vmatpush1.msra.mxu0 %v932
    %959 = vmatprep.subr.mxu0 0.0
    %960 = vmatpush1.msra.mxu0 0.0
    %961 = vmatprep.subr.mxu0 0.0
    %962 = vmatpush1.msra.mxu0 0.0
    %963 = vmatprep.subr.mxu0 0.0
    %964 = vmatpush1.msra.mxu0 0.0
    %965 = vmatprep.subr.mxu0 0.0
    %966 = vmatpush1.msra.mxu0 0.0
    %967 = vmatprep.subr.mxu0 0.0
    %968 = vmatpush1.msra.mxu0 0.0
    %969 = vmatprep.subr.mxu0 0.0
    %970 = vmatpush1.msra.mxu0 0.0
    %971 = vmatprep.subr.mxu0 0.0
    %972 = vmatpush1.msra.mxu0 0.0
    %973 = vmatprep.subr.mxu0 0.0
    %974 = vmatpush1.msra.mxu0 0.0
    %975 = vmatprep.subr.mxu0 0.0
    %976 = vmatpush1.msra.mxu0 0.0
    %977 = vmatprep.subr.mxu0 0.0
    %978 = vmatpush1.msra.mxu0 0.0
    %979 = vmatprep.subr.mxu0 0.0
    %980 = vmatpush1.msra.mxu0 0.0
    %981 = vmatprep.subr.mxu0 0.0
    %982 = vmatpush1.msra.mxu0 0.0
    %983 = vmatprep.subr.mxu0 0.0
    %984 = vmatpush1.msra.mxu0 0.0
    %985 = vmatprep.subr.mxu0 0.0
    %986 = vmatpush1.msra.mxu0 0.0
    %987 = vmatprep.subr.mxu0 0.0
    %988 = vmatpush1.msra.mxu0 0.0
    %989 = vmatprep.subr.mxu0 0.0
    %990 = vmatpush1.msra.mxu0 0.0
    %991 = vmatprep.subr.mxu0 0.0
    %992 = vmatpush1.msra.mxu0 0.0
    %993 = vmatprep.subr.mxu0 0.0
    %994 = vmatpush1.msra.mxu0 0.0
    %995 = vmatprep.subr.mxu0 0.0
    %996 = vmatpush1.msra.mxu0 0.0
    %997 = vmatprep.subr.mxu0 0.0
    %998 = vmatpush1.msra.mxu0 0.0
    %999 = vmatprep.subr.mxu0 0.0
    %1000 = vmatpush1.msra.mxu0 0.0
    %1001 = vmatprep.subr.mxu0 0.0
    %1002 = vmatpush1.msra.mxu0 0.0
    %1003 = vmatprep.subr.mxu0 0.0
    %1004 = vmatpush1.msra.mxu0 0.0
    %1005 = vmatprep.subr.mxu0 0.0
    %1006 = vmatpush1.msra.mxu0 0.0
    %1007 = vmatprep.subr.mxu0 0.0
    %1008 = vmatpush1.msra.mxu0 0.0
    %1009 = vmatprep.subr.mxu0 0.0
    %1010 = vmatpush1.msra.mxu0 0.0
    %1011 = vmatprep.mubr.f32.mxu0 0.0
    %1012 = vmatmul.mubr.f32.gmra.mrb[0].mxu0 %v939
    %v1013 = vpop.f32.mrb[0].mxu0
    %v1014 = vadd.f32 0.0, %v1013
    %v1015 = vpop.f32.mrb[0].mxu0
    %v1016 = vadd.f32 0.0, %v1015
    %1017 = vmatprep.mubr.f32.mxu0 0.0
    %1018 = vmatmul.mubr.f32.gmra.mrb[0].mxu0 %v942
    %v1019 = vpop.f32.mrb[0].mxu0
    %v1020 = vadd.f32 0.0, %v1019
    %v1021 = vpop.f32.mrb[0].mxu0
    %v1022 = vadd.f32 0.0, %v1021
    %1023 = vmatprep.mubr.f32.mxu0 0.0
    %1024 = vmatmul.mubr.f32.gmra.mrb[0].mxu0 %v945
    %v1025 = vpop.f32.mrb[0].mxu0
    %v1026 = vadd.f32 0.0, %v1025
    %v1027 = vpop.f32.mrb[0].mxu0
    %v1028 = vadd.f32 0.0, %v1027
    %1029 = vdwg.mxu0
    %s1030 = scalar_lea.vmem [#allocation2], 24
    %v1031 = vld [vmem:[%s1030] sm:$0xff]
    %v1032 = vld [vmem:[%s1030 + $0x8] sm:$0xff]
    %v1033 = vld [vmem:[%s1030 + $0x10] sm:$0xff]
    %v1035 = vsel %vm937, %v1031, 0
    %v1038 = vsel %vm937, %v1032, 0
    %v1041 = vsel %vm937, %v1033, 0
    %1043 = vmatprep.subr.mxu0 %v923
    %1044 = vmatpush1.msra.mxu0 %v922
    %1045 = vmatprep.subr.mxu0 %v925
    %1046 = vmatpush1.msra.mxu0 %v924
    %1047 = vmatprep.subr.mxu0 %v927
    %1048 = vmatpush1.msra.mxu0 %v926
    %1049 = vmatprep.subr.mxu0 %v929
    %1050 = vmatpush1.msra.mxu0 %v928
    %1051 = vmatprep.subr.mxu0 %v931
    %1052 = vmatpush1.msra.mxu0 %v930
    %1053 = vmatprep.subr.mxu0 %v933
    %1054 = vmatpush1.msra.mxu0 %v932
    %1055 = vmatprep.subr.mxu0 0.0
    %1056 = vmatpush1.msra.mxu0 0.0
    %1057 = vmatprep.subr.mxu0 0.0
    %1058 = vmatpush1.msra.mxu0 0.0
    %1059 = vmatprep.subr.mxu0 0.0
    %1060 = vmatpush1.msra.mxu0 0.0
    %1061 = vmatprep.subr.mxu0 0.0
    %1062 = vmatpush1.msra.mxu0 0.0
    %1063 = vmatprep.subr.mxu0 0.0
    %1064 = vmatpush1.msra.mxu0 0.0
    %1065 = vmatprep.subr.mxu0 0.0
    %1066 = vmatpush1.msra.mxu0 0.0
    %1067 = vmatprep.subr.mxu0 0.0
    %1068 = vmatpush1.msra.mxu0 0.0
    %1069 = vmatprep.subr.mxu0 0.0
    %1070 = vmatpush1.msra.mxu0 0.0
    %1071 = vmatprep.subr.mxu0 0.0
    %1072 = vmatpush1.msra.mxu0 0.0
    %1073 = vmatprep.subr.mxu0 0.0
    %1074 = vmatpush1.msra.mxu0 0.0
    %1075 = vmatprep.subr.mxu0 0.0
    %1076 = vmatpush1.msra.mxu0 0.0
    %1077 = vmatprep.subr.mxu0 0.0
    %1078 = vmatpush1.msra.mxu0 0.0
    %1079 = vmatprep.subr.mxu0 0.0
    %1080 = vmatpush1.msra.mxu0 0.0
    %1081 = vmatprep.subr.mxu0 0.0
    %1082 = vmatpush1.msra.mxu0 0.0
    %1083 = vmatprep.subr.mxu0 0.0
    %1084 = vmatpush1.msra.mxu0 0.0
    %1085 = vmatprep.subr.mxu0 0.0
    %1086 = vmatpush1.msra.mxu0 0.0
    %1087 = vmatprep.subr.mxu0 0.0
    %1088 = vmatpush1.msra.mxu0 0.0
    %1089 = vmatprep.subr.mxu0 0.0
    %1090 = vmatpush1.msra.mxu0 0.0
    %1091 = vmatprep.subr.mxu0 0.0
    %1092 = vmatpush1.msra.mxu0 0.0
    %1093 = vmatprep.subr.mxu0 0.0
    %1094 = vmatpush1.msra.mxu0 0.0
    %1095 = vmatprep.subr.mxu0 0.0
    %1096 = vmatpush1.msra.mxu0 0.0
    %1097 = vmatprep.subr.mxu0 0.0
    %1098 = vmatpush1.msra.mxu0 0.0
    %1099 = vmatprep.subr.mxu0 0.0
    %1100 = vmatpush1.msra.mxu0 0.0
    %1101 = vmatprep.subr.mxu0 0.0
    %1102 = vmatpush1.msra.mxu0 0.0
    %1103 = vmatprep.subr.mxu0 0.0
    %1104 = vmatpush1.msra.mxu0 0.0
    %1105 = vmatprep.subr.mxu0 0.0
    %1106 = vmatpush1.msra.mxu0 0.0
    %1107 = vmatprep.mubr.f32.mxu0 0.0
    %1108 = vmatmul.mubr.f32.gmra.mrb[0].mxu0 %v1035
    %v1109 = vpop.f32.mrb[0].mxu0
    %v1110 = vadd.f32 0.0, %v1109
    %v1111 = vpop.f32.mrb[0].mxu0
    %v1112 = vadd.f32 0.0, %v1111
    %1113 = vmatprep.mubr.f32.mxu0 0.0
    %1114 = vmatmul.mubr.f32.gmra.mrb[0].mxu0 %v1038
    %v1115 = vpop.f32.mrb[0].mxu0
    %v1116 = vadd.f32 0.0, %v1115
    %v1117 = vpop.f32.mrb[0].mxu0
    %v1118 = vadd.f32 0.0, %v1117
    %1119 = vmatprep.mubr.f32.mxu0 0.0
    %1120 = vmatmul.mubr.f32.gmra.mrb[0].mxu0 %v1041
    %v1121 = vpop.f32.mrb[0].mxu0
    %v1122 = vadd.f32 0.0, %v1121
    %v1123 = vpop.f32.mrb[0].mxu0
    %v1124 = vadd.f32 0.0, %v1123
    %1125 = vdwg.mxu0
    %v1126 = vmax.f32 %v1014, %v1110
    %v1127 = vmax.f32 %v1016, %v1112
    %v1128 = vmax.f32 %v1020, %v1116
    %v1129 = vmax.f32 %v1022, %v1118
    %v1130 = vmax.f32 %v1026, %v1122
    %v1131 = vmax.f32 %v1028, %v1124
    %v1132 = vld [vmem:[#allocation5] sm:$0xff]
    %v1133 = vld [vmem:[#allocation5 + $0x8] sm:$0xff]
    %v1134 = vld [vmem:[#allocation5 + $0x10] sm:$0xff]
    %v1135 = vld [vmem:[#allocation5 + $0x18] sm:$0xff]
    %v1136 = vld [vmem:[#allocation5 + $0x20] sm:$0xff]
    %v1137 = vld [vmem:[#allocation5 + $0x28] sm:$0xff]
    %v1138 = vld [vmem:[#allocation5 + $0x30] sm:$0xff]
    %v1139 = vld [vmem:[#allocation5 + $0x38] sm:$0xff]
    %v1140 = vld [vmem:[#allocation5 + $0x40] sm:$0xff]
    %v1141 = vld [vmem:[#allocation5 + $0x48] sm:$0xff]
    %v1142 = vld [vmem:[#allocation5 + $0x50] sm:$0xff]
    %v1143 = vld [vmem:[#allocation5 + $0x58] sm:$0xff]
    %v1144 = vld [vmem:[#allocation5 + $0x60] sm:$0xff]
    %v1145 = vld [vmem:[#allocation5 + $0x68] sm:$0xff]
    %v1146 = vld [vmem:[#allocation5 + $0x70] sm:$0xff]
    %v1147 = vld [vmem:[#allocation5 + $0x78] sm:$0xff]
    %v1148 = vld [vmem:[#allocation5 + $0x80] sm:$0xff]
    %v1149 = vld [vmem:[#allocation5 + $0x88] sm:$0xff]
    %vm1150 = vcmask 130048
    %v1152 = vsel %vm1150, %v1127, 0
    %v1155 = vsel %vm1150, %v1129, 0
    %v1158 = vsel %vm1150, %v1131, 0
    %1160 = vmatprep.subr.mxu0 0.0
    %1161 = vmatpush1.msra.mxu0 %v1132
    %1162 = vmatprep.subr.mxu0 0.0
    %1163 = vmatpush1.msra.mxu0 %v1133
    %1164 = vmatprep.subr.mxu0 0.0
    %1165 = vmatpush1.msra.mxu0 %v1134
    %1166 = vmatprep.subr.mxu0 0.0
    %1167 = vmatpush1.msra.mxu0 %v1135
    %1168 = vmatprep.subr.mxu0 0.0
    %1169 = vmatpush1.msra.mxu0 %v1136
    %1170 = vmatprep.subr.mxu0 0.0
    %1171 = vmatpush1.msra.mxu0 %v1137
    %1172 = vmatprep.subr.mxu0 0.0
    %1173 = vmatpush1.msra.mxu0 %v1138
    %1174 = vmatprep.subr.mxu0 0.0
    %1175 = vmatpush1.msra.mxu0 %v1139
    %1176 = vmatprep.subr.mxu0 0.0
    %1177 = vmatpush1.msra.mxu0 %v1140
    %1178 = vmatprep.subr.mxu0 0.0
    %1179 = vmatpush1.msra.mxu0 %v1141
    %1180 = vmatprep.subr.mxu0 0.0
    %1181 = vmatpush1.msra.mxu0 %v1142
    %1182 = vmatprep.subr.mxu0 0.0
    %1183 = vmatpush1.msra.mxu0 %v1143
    %1184 = vmatprep.subr.mxu0 0.0
    %1185 = vmatpush1.msra.mxu0 %v1144
    %1186 = vmatprep.subr.mxu0 0.0
    %1187 = vmatpush1.msra.mxu0 %v1145
    %1188 = vmatprep.subr.mxu0 0.0
    %1189 = vmatpush1.msra.mxu0 %v1146
    %1190 = vmatprep.subr.mxu0 0.0
    %1191 = vmatpush1.msra.mxu0 %v1147
    %1192 = vmatprep.subr.mxu0 0.0
    %1193 = vmatpush1.msra.mxu0 %v1148
    %1194 = vmatprep.subr.mxu0 0.0
    %1195 = vmatpush1.msra.mxu0 %v1149
    %1196 = vmatprep.subr.mxu0 0.0
    %1197 = vmatpush1.msra.mxu0 0.0
    %1198 = vmatprep.subr.mxu0 0.0
    %1199 = vmatpush1.msra.mxu0 0.0
    %1200 = vmatprep.subr.mxu0 0.0
    %1201 = vmatpush1.msra.mxu0 0.0
    %1202 = vmatprep.subr.mxu0 0.0
    %1203 = vmatpush1.msra.mxu0 0.0
    %1204 = vmatprep.subr.mxu0 0.0
    %1205 = vmatpush1.msra.mxu0 0.0
    %1206 = vmatprep.subr.mxu0 0.0
    %1207 = vmatpush1.msra.mxu0 0.0
    %1208 = vmatprep.subr.mxu0 0.0
    %1209 = vmatpush1.msra.mxu0 0.0
    %1210 = vmatprep.subr.mxu0 0.0
    %1211 = vmatpush1.msra.mxu0 0.0
    %1212 = vmatprep.subr.mxu0 0.0
    %1213 = vmatpush1.msra.mxu0 0.0
    %1214 = vmatprep.subr.mxu0 0.0
    %1215 = vmatpush1.msra.mxu0 0.0
    %1216 = vmatprep.subr.mxu0 0.0
    %1217 = vmatpush1.msra.mxu0 0.0
    %1218 = vmatprep.subr.mxu0 0.0
    %1219 = vmatpush1.msra.mxu0 0.0
    %1220 = vmatprep.subr.mxu0 0.0
    %1221 = vmatpush1.msra.mxu0 0.0
    %1222 = vmatprep.subr.mxu0 0.0
    %1223 = vmatpush1.msra.mxu0 0.0
    %1224 = vmatprep.mubr.f32.mxu0 %v1152
    %1225 = vmatmul.mubr.f32.gmra.mrb[0].mxu0 %v1126
    %v1226 = vpop.f32.mrb[0].mxu0
    %v1227 = vadd.f32 0.0, %v1226
    %v1228 = vpop.f32.mrb[0].mxu0
    %1229 = vmatprep.mubr.f32.mxu0 %v1155
    %1230 = vmatmul.mubr.f32.gmra.mrb[0].mxu0 %v1128
    %v1231 = vpop.f32.mrb[0].mxu0
    %v1232 = vadd.f32 0.0, %v1231
    %v1233 = vpop.f32.mrb[0].mxu0
    %1234 = vmatprep.mubr.f32.mxu0 %v1158
    %1235 = vmatmul.mubr.f32.gmra.mrb[0].mxu0 %v1130
    %v1236 = vpop.f32.mrb[0].mxu0
    %v1237 = vadd.f32 0.0, %v1236
    %v1238 = vpop.f32.mrb[0].mxu0
    %1239 = vdwg.mxu0
    %s1240 = scalar_lea.vmem [#allocation5], 144
    %v1241 = vld [vmem:[%s1240] sm:$0xff]
    %v1242 = vld [vmem:[%s1240 + $0x8] sm:$0xff]
    %v1243 = vld [vmem:[%s1240 + $0x10] sm:$0xff]
    %v1244 = vld [vmem:[%s1240 + $0x18] sm:$0xff]
    %v1245 = vld [vmem:[%s1240 + $0x20] sm:$0xff]
    %v1246 = vld [vmem:[%s1240 + $0x28] sm:$0xff]
    %v1247 = vld [vmem:[%s1240 + $0x30] sm:$0xff]
    %v1248 = vld [vmem:[%s1240 + $0x38] sm:$0xff]
    %v1249 = vld [vmem:[%s1240 + $0x40] sm:$0xff]
    %v1250 = vld [vmem:[%s1240 + $0x48] sm:$0xff]
    %v1251 = vld [vmem:[%s1240 + $0x50] sm:$0xff]
    %v1252 = vld [vmem:[%s1240 + $0x58] sm:$0xff]
    %v1253 = vld [vmem:[%s1240 + $0x60] sm:$0xff]
    %v1254 = vld [vmem:[%s1240 + $0x68] sm:$0xff]
    %v1255 = vld [vmem:[%s1240 + $0x70] sm:$0xff]
    %v1256 = vld [vmem:[%s1240 + $0x78] sm:$0xff]
    %v1257 = vld [vmem:[%s1240 + $0x80] sm:$0xff]
    %v1258 = vld [vmem:[%s1240 + $0x88] sm:$0xff]
    %1259 = vmatprep.subr.mxu0 0.0
    %1260 = vmatpush1.msra.mxu0 %v1241
    %1261 = vmatprep.subr.mxu0 0.0
    %1262 = vmatpush1.msra.mxu0 %v1242
    %1263 = vmatprep.subr.mxu0 0.0
    %1264 = vmatpush1.msra.mxu0 %v1243
    %1265 = vmatprep.subr.mxu0 0.0
    %1266 = vmatpush1.msra.mxu0 %v1244
    %1267 = vmatprep.subr.mxu0 0.0
    %1268 = vmatpush1.msra.mxu0 %v1245
    %1269 = vmatprep.subr.mxu0 0.0
    %1270 = vmatpush1.msra.mxu0 %v1246
    %1271 = vmatprep.subr.mxu0 0.0
    %1272 = vmatpush1.msra.mxu0 %v1247
    %1273 = vmatprep.subr.mxu0 0.0
    %1274 = vmatpush1.msra.mxu0 %v1248
    %1275 = vmatprep.subr.mxu0 0.0
    %1276 = vmatpush1.msra.mxu0 %v1249
    %1277 = vmatprep.subr.mxu0 0.0
    %1278 = vmatpush1.msra.mxu0 %v1250
    %1279 = vmatprep.subr.mxu0 0.0
    %1280 = vmatpush1.msra.mxu0 %v1251
    %1281 = vmatprep.subr.mxu0 0.0
    %1282 = vmatpush1.msra.mxu0 %v1252
    %1283 = vmatprep.subr.mxu0 0.0
    %1284 = vmatpush1.msra.mxu0 %v1253
    %1285 = vmatprep.subr.mxu0 0.0
    %1286 = vmatpush1.msra.mxu0 %v1254
    %1287 = vmatprep.subr.mxu0 0.0
    %1288 = vmatpush1.msra.mxu0 %v1255
    %1289 = vmatprep.subr.mxu0 0.0
    %1290 = vmatpush1.msra.mxu0 %v1256
    %1291 = vmatprep.subr.mxu0 0.0
    %1292 = vmatpush1.msra.mxu0 %v1257
    %1293 = vmatprep.subr.mxu0 0.0
    %1294 = vmatpush1.msra.mxu0 %v1258
    %1295 = vmatprep.subr.mxu0 0.0
    %1296 = vmatpush1.msra.mxu0 0.0
    %1297 = vmatprep.subr.mxu0 0.0
    %1298 = vmatpush1.msra.mxu0 0.0
    %1299 = vmatprep.subr.mxu0 0.0
    %1300 = vmatpush1.msra.mxu0 0.0
    %1301 = vmatprep.subr.mxu0 0.0
    %1302 = vmatpush1.msra.mxu0 0.0
    %1303 = vmatprep.subr.mxu0 0.0
    %1304 = vmatpush1.msra.mxu0 0.0
    %1305 = vmatprep.subr.mxu0 0.0
    %1306 = vmatpush1.msra.mxu0 0.0
    %1307 = vmatprep.subr.mxu0 0.0
    %1308 = vmatpush1.msra.mxu0 0.0
    %1309 = vmatprep.subr.mxu0 0.0
    %1310 = vmatpush1.msra.mxu0 0.0
    %1311 = vmatprep.subr.mxu0 0.0
    %1312 = vmatpush1.msra.mxu0 0.0
    %1313 = vmatprep.subr.mxu0 0.0
    %1314 = vmatpush1.msra.mxu0 0.0
    %1315 = vmatprep.subr.mxu0 0.0
    %1316 = vmatpush1.msra.mxu0 0.0
    %1317 = vmatprep.subr.mxu0 0.0
    %1318 = vmatpush1.msra.mxu0 0.0
    %1319 = vmatprep.subr.mxu0 0.0
    %1320 = vmatpush1.msra.mxu0 0.0
    %1321 = vmatprep.subr.mxu0 0.0
    %1322 = vmatpush1.msra.mxu0 0.0
    %1323 = vmatprep.mubr.f32.mxu0 %v1152
    %1324 = vmatmul.mubr.f32.gmra.mrb[0].mxu0 %v1126
    %v1325 = vpop.f32.mrb[0].mxu0
    %v1326 = vadd.f32 0.0, %v1325
    %v1327 = vpop.f32.mrb[0].mxu0
    %1328 = vmatprep.mubr.f32.mxu0 %v1155
    %1329 = vmatmul.mubr.f32.gmra.mrb[0].mxu0 %v1128
    %v1330 = vpop.f32.mrb[0].mxu0
    %v1331 = vadd.f32 0.0, %v1330
    %v1332 = vpop.f32.mrb[0].mxu0
    %1333 = vmatprep.mubr.f32.mxu0 %v1158
    %1334 = vmatmul.mubr.f32.gmra.mrb[0].mxu0 %v1130
    %v1335 = vpop.f32.mrb[0].mxu0
    %v1336 = vadd.f32 0.0, %v1335
    %v1337 = vpop.f32.mrb[0].mxu0
    %1338 = vdwg.mxu0
    %v1339 = vmax.f32 %v1227, %v1326
    %v1340 = vmax.f32 %v1232, %v1331
    %v1341 = vmax.f32 %v1237, %v1336
    %v1342 = vld [vmem:[#allocation7] sm:$0xff]
    %v1343 = vld [vmem:[#allocation7 + $0x8] sm:$0xff]
    %vm1344 = vcmask 195584
    %v1346 = vsel %vm1344, %v1342, 0
    %v1349 = vsel %vm1344, %v1343, 0
    %1351 = vmatprep.subr.mxu0 0.0
    %1352 = vmatpush1.msra.mxu0 %v1339
    %1353 = vmatprep.subr.mxu0 0.0
    %1354 = vmatpush1.msra.mxu0 %v1340
    %1355 = vmatprep.subr.mxu0 0.0
    %1356 = vmatpush1.msra.mxu0 %v1341
    %1357 = vmatprep.subr.mxu0 0.0
    %1358 = vmatpush1.msra.mxu0 0.0
    %1359 = vmatprep.subr.mxu0 0.0
    %1360 = vmatpush1.msra.mxu0 0.0
    %1361 = vmatprep.subr.mxu0 0.0
    %1362 = vmatpush1.msra.mxu0 0.0
    %1363 = vmatprep.subr.mxu0 0.0
    %1364 = vmatpush1.msra.mxu0 0.0
    %1365 = vmatprep.subr.mxu0 0.0
    %1366 = vmatpush1.msra.mxu0 0.0
    %1367 = vmatprep.subr.mxu0 0.0
    %1368 = vmatpush1.msra.mxu0 0.0
    %1369 = vmatprep.subr.mxu0 0.0
    %1370 = vmatpush1.msra.mxu0 0.0
    %1371 = vmatprep.subr.mxu0 0.0
    %1372 = vmatpush1.msra.mxu0 0.0
    %1373 = vmatprep.subr.mxu0 0.0
    %1374 = vmatpush1.msra.mxu0 0.0
    %1375 = vmatprep.subr.mxu0 0.0
    %1376 = vmatpush1.msra.mxu0 0.0
    %1377 = vmatprep.subr.mxu0 0.0
    %1378 = vmatpush1.msra.mxu0 0.0
    %1379 = vmatprep.subr.mxu0 0.0
    %1380 = vmatpush1.msra.mxu0 0.0
    %1381 = vmatprep.subr.mxu0 0.0
    %1382 = vmatpush1.msra.mxu0 0.0
    %1383 = vmatprep.subr.mxu0 0.0
    %1384 = vmatpush1.msra.mxu0 0.0
    %1385 = vmatprep.subr.mxu0 0.0
    %1386 = vmatpush1.msra.mxu0 0.0
    %1387 = vmatprep.subr.mxu0 0.0
    %1388 = vmatpush1.msra.mxu0 0.0
    %1389 = vmatprep.subr.mxu0 0.0
    %1390 = vmatpush1.msra.mxu0 0.0
    %1391 = vmatprep.subr.mxu0 0.0
    %1392 = vmatpush1.msra.mxu0 0.0
    %1393 = vmatprep.subr.mxu0 0.0
    %1394 = vmatpush1.msra.mxu0 0.0
    %1395 = vmatprep.subr.mxu0 0.0
    %1396 = vmatpush1.msra.mxu0 0.0
    %1397 = vmatprep.subr.mxu0 0.0
    %1398 = vmatpush1.msra.mxu0 0.0
    %1399 = vmatprep.subr.mxu0 0.0
    %1400 = vmatpush1.msra.mxu0 0.0
    %1401 = vmatprep.subr.mxu0 0.0
    %1402 = vmatpush1.msra.mxu0 0.0
    %1403 = vmatprep.subr.mxu0 0.0
    %1404 = vmatpush1.msra.mxu0 0.0
    %1405 = vmatprep.subr.mxu0 0.0
    %1406 = vmatpush1.msra.mxu0 0.0
    %1407 = vmatprep.subr.mxu0 0.0
    %1408 = vmatpush1.msra.mxu0 0.0
    %1409 = vmatprep.subr.mxu0 0.0
    %1410 = vmatpush1.msra.mxu0 0.0
    %1411 = vmatprep.subr.mxu0 0.0
    %1412 = vmatpush1.msra.mxu0 0.0
    %1413 = vmatprep.subr.mxu0 0.0
    %1414 = vmatpush1.msra.mxu0 0.0
    %1415 = vmatprep.mubr.f32.mxu0 0.0
    %1416 = vmatmul.mubr.f32.gmra.mrb[0].mxu0 %v1346
    %v1417 = vpop.f32.mrb[0].mxu0
    %v1418 = vadd.f32 0.0, %v1417
    %v1419 = vpop.f32.mrb[0].mxu0
    %1420 = vmatprep.mubr.f32.mxu0 0.0
    %1421 = vmatmul.mubr.f32.gmra.mrb[0].mxu0 %v1349
    %v1422 = vpop.f32.mrb[0].mxu0
    %v1423 = vadd.f32 0.0, %v1422
    %v1424 = vpop.f32.mrb[0].mxu0
    %1425 = vdwg.mxu0
    %v1426 = vld [vmem:[%s6] sm:$0xff]
    %v1427 = vld [vmem:[%s6 + $0x8] sm:$0xff]
    %v1428 = vld [vmem:[%s6 + $0x10] sm:$0xff]
    %v1429 = vld [vmem:[%s6 + $0x18] sm:$0xff]
    %v1430 = vld [vmem:[%s6 + $0x20] sm:$0xff]
    %v1431 = vld [vmem:[%s6 + $0x28] sm:$0xff]
    %v1432 = vld [vmem:[%s6 + $0x30] sm:$0xff]
    %v1433 = vld [vmem:[%s6 + $0x38] sm:$0xff]
    %v1434 = vld [vmem:[%s6 + $0x40] sm:$0xff]
    %s1435 = scalar_lea.vmem [#allocation7], 16
    %v1436 = vld [vmem:[%s1435] sm:$0xff]
    %v1437 = vld [vmem:[%s1435 + $0x8] sm:$0xff]
    %v1439 = vsel %vm1344, %v1436, 0
    %v1442 = vsel %vm1344, %v1437, 0
    %1444 = vmatprep.subr.mxu0 0.0
    %1445 = vmatpush1.msra.mxu0 %v1339
    %1446 = vmatprep.subr.mxu0 0.0
    %1447 = vmatpush1.msra.mxu0 %v1340
    %1448 = vmatprep.subr.mxu0 0.0
    %1449 = vmatpush1.msra.mxu0 %v1341
    %1450 = vmatprep.subr.mxu0 0.0
    %1451 = vmatpush1.msra.mxu0 0.0
    %1452 = vmatprep.subr.mxu0 0.0
    %1453 = vmatpush1.msra.mxu0 0.0
    %1454 = vmatprep.subr.mxu0 0.0
    %1455 = vmatpush1.msra.mxu0 0.0
    %1456 = vmatprep.subr.mxu0 0.0
    %1457 = vmatpush1.msra.mxu0 0.0
    %1458 = vmatprep.subr.mxu0 0.0
    %1459 = vmatpush1.msra.mxu0 0.0
    %1460 = vmatprep.subr.mxu0 0.0
    %1461 = vmatpush1.msra.mxu0 0.0
    %1462 = vmatprep.subr.mxu0 0.0
    %1463 = vmatpush1.msra.mxu0 0.0
    %1464 = vmatprep.subr.mxu0 0.0
    %1465 = vmatpush1.msra.mxu0 0.0
    %1466 = vmatprep.subr.mxu0 0.0
    %1467 = vmatpush1.msra.mxu0 0.0
    %1468 = vmatprep.subr.mxu0 0.0
    %1469 = vmatpush1.msra.mxu0 0.0
    %1470 = vmatprep.subr.mxu0 0.0
    %1471 = vmatpush1.msra.mxu0 0.0
    %1472 = vmatprep.subr.mxu0 0.0
    %1473 = vmatpush1.msra.mxu0 0.0
    %1474 = vmatprep.subr.mxu0 0.0
    %1475 = vmatpush1.msra.mxu0 0.0
    %1476 = vmatprep.subr.mxu0 0.0
    %1477 = vmatpush1.msra.mxu0 0.0
    %1478 = vmatprep.subr.mxu0 0.0
    %1479 = vmatpush1.msra.mxu0 0.0
    %1480 = vmatprep.subr.mxu0 0.0
    %1481 = vmatpush1.msra.mxu0 0.0
    %1482 = vmatprep.subr.mxu0 0.0
    %1483 = vmatpush1.msra.mxu0 0.0
    %1484 = vmatprep.subr.mxu0 0.0
    %1485 = vmatpush1.msra.mxu0 0.0
    %1486 = vmatprep.subr.mxu0 0.0
    %1487 = vmatpush1.msra.mxu0 0.0
    %1488 = vmatprep.subr.mxu0 0.0
    %1489 = vmatpush1.msra.mxu0 0.0
    %1490 = vmatprep.subr.mxu0 0.0
    %1491 = vmatpush1.msra.mxu0 0.0
    %1492 = vmatprep.subr.mxu0 0.0
    %1493 = vmatpush1.msra.mxu0 0.0
    %1494 = vmatprep.subr.mxu0 0.0
    %1495 = vmatpush1.msra.mxu0 0.0
    %1496 = vmatprep.subr.mxu0 0.0
    %1497 = vmatpush1.msra.mxu0 0.0
    %1498 = vmatprep.subr.mxu0 0.0
    %1499 = vmatpush1.msra.mxu0 0.0
    %1500 = vmatprep.subr.mxu0 0.0
    %1501 = vmatpush1.msra.mxu0 0.0
    %1502 = vmatprep.subr.mxu0 0.0
    %1503 = vmatpush1.msra.mxu0 0.0
    %1504 = vmatprep.subr.mxu0 0.0
    %1505 = vmatpush1.msra.mxu0 0.0
    %1506 = vmatprep.subr.mxu0 0.0
    %1507 = vmatpush1.msra.mxu0 0.0
    %1508 = vmatprep.mubr.f32.mxu0 0.0
    %1509 = vmatmul.mubr.f32.gmra.mrb[0].mxu0 %v1439
    %v1510 = vpop.f32.mrb[0].mxu0
    %v1511 = vadd.f32 0.0, %v1510
    %v1512 = vpop.f32.mrb[0].mxu0
    %1513 = vmatprep.mubr.f32.mxu0 0.0
    %1514 = vmatmul.mubr.f32.gmra.mrb[0].mxu0 %v1442
    %v1515 = vpop.f32.mrb[0].mxu0
    %v1516 = vadd.f32 0.0, %v1515
    %v1517 = vpop.f32.mrb[0].mxu0
    %1518 = vdwg.mxu0
    %s1519 = scalar_lea.vmem %s6, 72
    %v1520 = vld [vmem:[%s1519] sm:$0xff]
    %v1521 = vld [vmem:[%s1519 + $0x8] sm:$0xff]
    %v1522 = vld [vmem:[%s1519 + $0x10] sm:$0xff]
    %v1523 = vld [vmem:[%s1519 + $0x18] sm:$0xff]
    %v1524 = vld [vmem:[%s1519 + $0x20] sm:$0xff]
    %v1525 = vld [vmem:[%s1519 + $0x28] sm:$0xff]
    %v1526 = vld [vmem:[%s1519 + $0x30] sm:$0xff]
    %v1527 = vld [vmem:[%s1519 + $0x38] sm:$0xff]
    %v1528 = vld [vmem:[%s1519 + $0x40] sm:$0xff]
    %vm1529 = vcmask 588800
    %v1531 = vsel %vm1529, %v1511, 0
    %v1534 = vsel %vm1529, %v1516, 0
    %1536 = vmatprep.subr.mxu0 0.0
    %1537 = vmatpush1.msra.mxu0 %v1520
    %1538 = vmatprep.subr.mxu0 0.0
    %1539 = vmatpush1.msra.mxu0 %v1521
    %1540 = vmatprep.subr.mxu0 0.0
    %1541 = vmatpush1.msra.mxu0 %v1522
    %1542 = vmatprep.subr.mxu0 0.0
    %1543 = vmatpush1.msra.mxu0 %v1523
    %1544 = vmatprep.subr.mxu0 0.0
    %1545 = vmatpush1.msra.mxu0 %v1524
    %1546 = vmatprep.subr.mxu0 0.0
    %1547 = vmatpush1.msra.mxu0 %v1525
    %1548 = vmatprep.subr.mxu0 0.0
    %1549 = vmatpush1.msra.mxu0 %v1526
    %1550 = vmatprep.subr.mxu0 0.0
    %1551 = vmatpush1.msra.mxu0 %v1527
    %1552 = vmatprep.subr.mxu0 0.0
    %1553 = vmatpush1.msra.mxu0 %v1528
    %1554 = vmatprep.subr.mxu0 0.0
    %1555 = vmatpush1.msra.mxu0 0.0
    %1556 = vmatprep.subr.mxu0 0.0
    %1557 = vmatpush1.msra.mxu0 0.0
    %1558 = vmatprep.subr.mxu0 0.0
    %1559 = vmatpush1.msra.mxu0 0.0
    %1560 = vmatprep.subr.mxu0 0.0
    %1561 = vmatpush1.msra.mxu0 0.0
    %1562 = vmatprep.subr.mxu0 0.0
    %1563 = vmatpush1.msra.mxu0 0.0
    %1564 = vmatprep.subr.mxu0 0.0
    %1565 = vmatpush1.msra.mxu0 0.0
    %1566 = vmatprep.subr.mxu0 0.0
    %1567 = vmatpush1.msra.mxu0 0.0
    %1568 = vmatprep.subr.mxu0 0.0
    %1569 = vmatpush1.msra.mxu0 0.0
    %1570 = vmatprep.subr.mxu0 0.0
    %1571 = vmatpush1.msra.mxu0 0.0
    %1572 = vmatprep.subr.mxu0 0.0
    %1573 = vmatpush1.msra.mxu0 0.0
    %1574 = vmatprep.subr.mxu0 0.0
    %1575 = vmatpush1.msra.mxu0 0.0
    %1576 = vmatprep.subr.mxu0 0.0
    %1577 = vmatpush1.msra.mxu0 0.0
    %1578 = vmatprep.subr.mxu0 0.0
    %1579 = vmatpush1.msra.mxu0 0.0
    %1580 = vmatprep.subr.mxu0 0.0
    %1581 = vmatpush1.msra.mxu0 0.0
    %1582 = vmatprep.subr.mxu0 0.0
    %1583 = vmatpush1.msra.mxu0 0.0
    %1584 = vmatprep.subr.mxu0 0.0
    %1585 = vmatpush1.msra.mxu0 0.0
    %1586 = vmatprep.subr.mxu0 0.0
    %1587 = vmatpush1.msra.mxu0 0.0
    %1588 = vmatprep.subr.mxu0 0.0
    %1589 = vmatpush1.msra.mxu0 0.0
    %1590 = vmatprep.subr.mxu0 0.0
    %1591 = vmatpush1.msra.mxu0 0.0
    %1592 = vmatprep.subr.mxu0 0.0
    %1593 = vmatpush1.msra.mxu0 0.0
    %1594 = vmatprep.subr.mxu0 0.0
    %1595 = vmatpush1.msra.mxu0 0.0
    %1596 = vmatprep.subr.mxu0 0.0
    %1597 = vmatpush1.msra.mxu0 0.0
    %1598 = vmatprep.subr.mxu0 0.0
    %1599 = vmatpush1.msra.mxu0 0.0
    %1600 = vmatprep.mubr.f32.mxu0 0.0
    %1601 = vmatmul.mubr.f32.gmra.mrb[0].mxu0 %v1531
    %v1602 = vpop.f32.mrb[0].mxu0
    %v1603 = vadd.f32 0.0, %v1602
    %v1604 = vpop.f32.mrb[0].mxu0
    %1605 = vmatprep.mubr.f32.mxu0 0.0
    %1606 = vmatmul.mubr.f32.gmra.mrb[0].mxu0 %v1534
    %v1607 = vpop.f32.mrb[0].mxu0
    %v1608 = vadd.f32 0.0, %v1607
    %v1609 = vpop.f32.mrb[0].mxu0
    %1610 = vdwg.mxu0
    %v1612 = vsel %vm1529, %v1418, 0
    %v1615 = vsel %vm1529, %v1423, 0
    %1617 = vmatprep.subr.mxu0 0.0
    %1618 = vmatpush1.msra.mxu0 %v1426
    %1619 = vmatprep.subr.mxu0 0.0
    %1620 = vmatpush1.msra.mxu0 %v1427
    %1621 = vmatprep.subr.mxu0 0.0
    %1622 = vmatpush1.msra.mxu0 %v1428
    %1623 = vmatprep.subr.mxu0 0.0
    %1624 = vmatpush1.msra.mxu0 %v1429
    %1625 = vmatprep.subr.mxu0 0.0
    %1626 = vmatpush1.msra.mxu0 %v1430
    %1627 = vmatprep.subr.mxu0 0.0
    %1628 = vmatpush1.msra.mxu0 %v1431
    %1629 = vmatprep.subr.mxu0 0.0
    %1630 = vmatpush1.msra.mxu0 %v1432
    %1631 = vmatprep.subr.mxu0 0.0
    %1632 = vmatpush1.msra.mxu0 %v1433
    %1633 = vmatprep.subr.mxu0 0.0
    %1634 = vmatpush1.msra.mxu0 %v1434
    %1635 = vmatprep.subr.mxu0 0.0
    %1636 = vmatpush1.msra.mxu0 0.0
    %1637 = vmatprep.subr.mxu0 0.0
    %1638 = vmatpush1.msra.mxu0 0.0
    %1639 = vmatprep.subr.mxu0 0.0
    %1640 = vmatpush1.msra.mxu0 0.0
    %1641 = vmatprep.subr.mxu0 0.0
    %1642 = vmatpush1.msra.mxu0 0.0
    %1643 = vmatprep.subr.mxu0 0.0
    %1644 = vmatpush1.msra.mxu0 0.0
    %1645 = vmatprep.subr.mxu0 0.0
    %1646 = vmatpush1.msra.mxu0 0.0
    %1647 = vmatprep.subr.mxu0 0.0
    %1648 = vmatpush1.msra.mxu0 0.0
    %1649 = vmatprep.subr.mxu0 0.0
    %1650 = vmatpush1.msra.mxu0 0.0
    %1651 = vmatprep.subr.mxu0 0.0
    %1652 = vmatpush1.msra.mxu0 0.0
    %1653 = vmatprep.subr.mxu0 0.0
    %1654 = vmatpush1.msra.mxu0 0.0
    %1655 = vmatprep.subr.mxu0 0.0
    %1656 = vmatpush1.msra.mxu0 0.0
    %1657 = vmatprep.subr.mxu0 0.0
    %1658 = vmatpush1.msra.mxu0 0.0
    %1659 = vmatprep.subr.mxu0 0.0
    %1660 = vmatpush1.msra.mxu0 0.0
    %1661 = vmatprep.subr.mxu0 0.0
    %1662 = vmatpush1.msra.mxu0 0.0
    %1663 = vmatprep.subr.mxu0 0.0
    %1664 = vmatpush1.msra.mxu0 0.0
    %1665 = vmatprep.subr.mxu0 0.0
    %1666 = vmatpush1.msra.mxu0 0.0
    %1667 = vmatprep.subr.mxu0 0.0
    %1668 = vmatpush1.msra.mxu0 0.0
    %1669 = vmatprep.subr.mxu0 0.0
    %1670 = vmatpush1.msra.mxu0 0.0
    %1671 = vmatprep.subr.mxu0 0.0
    %1672 = vmatpush1.msra.mxu0 0.0
    %1673 = vmatprep.subr.mxu0 0.0
    %1674 = vmatpush1.msra.mxu0 0.0
    %1675 = vmatprep.subr.mxu0 0.0
    %1676 = vmatpush1.msra.mxu0 0.0
    %1677 = vmatprep.subr.mxu0 0.0
    %1678 = vmatpush1.msra.mxu0 0.0
    %1679 = vmatprep.subr.mxu0 0.0
    %1680 = vmatpush1.msra.mxu0 0.0
    %1681 = vmatprep.mubr.f32.mxu0 0.0
    %1682 = vmatmul.mubr.f32.gmra.mrb[0].mxu0 %v1612
    %v1683 = vpop.f32.mrb[0].mxu0
    %v1684 = vadd.f32 %v1603, %v1683
    %v1685 = vpop.f32.mrb[0].mxu0
    %1686 = vmatprep.mubr.f32.mxu0 0.0
    %1687 = vmatmul.mubr.f32.gmra.mrb[0].mxu0 %v1615
    %v1688 = vpop.f32.mrb[0].mxu0
    %v1689 = vadd.f32 %v1608, %v1688
    %v1690 = vpop.f32.mrb[0].mxu0
    %1691 = vdwg.mxu0
    %s1692 = scalar_lea.vmem [#allocation7], 32
    %v1693 = vld [vmem:[%s1692] sm:$0xff]
    %v1694 = vld [vmem:[%s1692 + $0x8] sm:$0xff]
    %v1696 = vsel %vm1344, %v1693, 0
    %v1699 = vsel %vm1344, %v1694, 0
    %1701 = vmatprep.subr.mxu0 0.0
    %1702 = vmatpush1.msra.mxu0 %v1339
    %1703 = vmatprep.subr.mxu0 0.0
    %1704 = vmatpush1.msra.mxu0 %v1340
    %1705 = vmatprep.subr.mxu0 0.0
    %1706 = vmatpush1.msra.mxu0 %v1341
    %1707 = vmatprep.subr.mxu0 0.0
    %1708 = vmatpush1.msra.mxu0 0.0
    %1709 = vmatprep.subr.mxu0 0.0
    %1710 = vmatpush1.msra.mxu0 0.0
    %1711 = vmatprep.subr.mxu0 0.0
    %1712 = vmatpush1.msra.mxu0 0.0
    %1713 = vmatprep.subr.mxu0 0.0
    %1714 = vmatpush1.msra.mxu0 0.0
    %1715 = vmatprep.subr.mxu0 0.0
    %1716 = vmatpush1.msra.mxu0 0.0
    %1717 = vmatprep.subr.mxu0 0.0
    %1718 = vmatpush1.msra.mxu0 0.0
    %1719 = vmatprep.subr.mxu0 0.0
    %1720 = vmatpush1.msra.mxu0 0.0
    %1721 = vmatprep.subr.mxu0 0.0
    %1722 = vmatpush1.msra.mxu0 0.0
    %1723 = vmatprep.subr.mxu0 0.0
    %1724 = vmatpush1.msra.mxu0 0.0
    %1725 = vmatprep.subr.mxu0 0.0
    %1726 = vmatpush1.msra.mxu0 0.0
    %1727 = vmatprep.subr.mxu0 0.0
    %1728 = vmatpush1.msra.mxu0 0.0
    %1729 = vmatprep.subr.mxu0 0.0
    %1730 = vmatpush1.msra.mxu0 0.0
    %1731 = vmatprep.subr.mxu0 0.0
    %1732 = vmatpush1.msra.mxu0 0.0
    %1733 = vmatprep.subr.mxu0 0.0
    %1734 = vmatpush1.msra.mxu0 0.0
    %1735 = vmatprep.subr.mxu0 0.0
    %1736 = vmatpush1.msra.mxu0 0.0
    %1737 = vmatprep.subr.mxu0 0.0
    %1738 = vmatpush1.msra.mxu0 0.0
    %1739 = vmatprep.subr.mxu0 0.0
    %1740 = vmatpush1.msra.mxu0 0.0
    %1741 = vmatprep.subr.mxu0 0.0
    %1742 = vmatpush1.msra.mxu0 0.0
    %1743 = vmatprep.subr.mxu0 0.0
    %1744 = vmatpush1.msra.mxu0 0.0
    %1745 = vmatprep.subr.mxu0 0.0
    %1746 = vmatpush1.msra.mxu0 0.0
    %1747 = vmatprep.subr.mxu0 0.0
    %1748 = vmatpush1.msra.mxu0 0.0
    %1749 = vmatprep.subr.mxu0 0.0
    %1750 = vmatpush1.msra.mxu0 0.0
    %1751 = vmatprep.subr.mxu0 0.0
    %1752 = vmatpush1.msra.mxu0 0.0
    %1753 = vmatprep.subr.mxu0 0.0
    %1754 = vmatpush1.msra.mxu0 0.0
    %1755 = vmatprep.subr.mxu0 0.0
    %1756 = vmatpush1.msra.mxu0 0.0
    %1757 = vmatprep.subr.mxu0 0.0
    %1758 = vmatpush1.msra.mxu0 0.0
    %1759 = vmatprep.subr.mxu0 0.0
    %1760 = vmatpush1.msra.mxu0 0.0
    %1761 = vmatprep.subr.mxu0 0.0
    %1762 = vmatpush1.msra.mxu0 0.0
    %1763 = vmatprep.subr.mxu0 0.0
    %1764 = vmatpush1.msra.mxu0 0.0
    %1765 = vmatprep.mubr.f32.mxu0 0.0
    %1766 = vmatmul.mubr.f32.gmra.mrb[0].mxu0 %v1696
    %v1767 = vpop.f32.mrb[0].mxu0
    %v1768 = vadd.f32 0.0, %v1767
    %v1769 = vpop.f32.mrb[0].mxu0
    %1770 = vmatprep.mubr.f32.mxu0 0.0
    %1771 = vmatmul.mubr.f32.gmra.mrb[0].mxu0 %v1699
    %v1772 = vpop.f32.mrb[0].mxu0
    %v1773 = vadd.f32 0.0, %v1772
    %v1774 = vpop.f32.mrb[0].mxu0
    %1775 = vdwg.mxu0
    %s1776 = scalar_lea.vmem %s6, 144
    %v1777 = vld [vmem:[%s1776] sm:$0xff]
    %v1778 = vld [vmem:[%s1776 + $0x8] sm:$0xff]
    %v1779 = vld [vmem:[%s1776 + $0x10] sm:$0xff]
    %v1780 = vld [vmem:[%s1776 + $0x18] sm:$0xff]
    %v1781 = vld [vmem:[%s1776 + $0x20] sm:$0xff]
    %v1782 = vld [vmem:[%s1776 + $0x28] sm:$0xff]
    %v1783 = vld [vmem:[%s1776 + $0x30] sm:$0xff]
    %v1784 = vld [vmem:[%s1776 + $0x38] sm:$0xff]
    %v1785 = vld [vmem:[%s1776 + $0x40] sm:$0xff]
    %v1787 = vsel %vm1529, %v1768, 0
    %v1790 = vsel %vm1529, %v1773, 0
    %1792 = vmatprep.subr.mxu0 0.0
    %1793 = vmatpush1.msra.mxu0 %v1777
    %1794 = vmatprep.subr.mxu0 0.0
    %1795 = vmatpush1.msra.mxu0 %v1778
    %1796 = vmatprep.subr.mxu0 0.0
    %1797 = vmatpush1.msra.mxu0 %v1779
    %1798 = vmatprep.subr.mxu0 0.0
    %1799 = vmatpush1.msra.mxu0 %v1780
    %1800 = vmatprep.subr.mxu0 0.0
    %1801 = vmatpush1.msra.mxu0 %v1781
    %1802 = vmatprep.subr.mxu0 0.0
    %1803 = vmatpush1.msra.mxu0 %v1782
    %1804 = vmatprep.subr.mxu0 0.0
    %1805 = vmatpush1.msra.mxu0 %v1783
    %1806 = vmatprep.subr.mxu0 0.0
    %1807 = vmatpush1.msra.mxu0 %v1784
    %1808 = vmatprep.subr.mxu0 0.0
    %1809 = vmatpush1.msra.mxu0 %v1785
    %1810 = vmatprep.subr.mxu0 0.0
    %1811 = vmatpush1.msra.mxu0 0.0
    %1812 = vmatprep.subr.mxu0 0.0
    %1813 = vmatpush1.msra.mxu0 0.0
    %1814 = vmatprep.subr.mxu0 0.0
    %1815 = vmatpush1.msra.mxu0 0.0
    %1816 = vmatprep.subr.mxu0 0.0
    %1817 = vmatpush1.msra.mxu0 0.0
    %1818 = vmatprep.subr.mxu0 0.0
    %1819 = vmatpush1.msra.mxu0 0.0
    %1820 = vmatprep.subr.mxu0 0.0
    %1821 = vmatpush1.msra.mxu0 0.0
    %1822 = vmatprep.subr.mxu0 0.0
    %1823 = vmatpush1.msra.mxu0 0.0
    %1824 = vmatprep.subr.mxu0 0.0
    %1825 = vmatpush1.msra.mxu0 0.0
    %1826 = vmatprep.subr.mxu0 0.0
    %1827 = vmatpush1.msra.mxu0 0.0
    %1828 = vmatprep.subr.mxu0 0.0
    %1829 = vmatpush1.msra.mxu0 0.0
    %1830 = vmatprep.subr.mxu0 0.0
    %1831 = vmatpush1.msra.mxu0 0.0
    %1832 = vmatprep.subr.mxu0 0.0
    %1833 = vmatpush1.msra.mxu0 0.0
    %1834 = vmatprep.subr.mxu0 0.0
    %1835 = vmatpush1.msra.mxu0 0.0
    %1836 = vmatprep.subr.mxu0 0.0
    %1837 = vmatpush1.msra.mxu0 0.0
    %1838 = vmatprep.subr.mxu0 0.0
    %1839 = vmatpush1.msra.mxu0 0.0
    %1840 = vmatprep.subr.mxu0 0.0
    %1841 = vmatpush1.msra.mxu0 0.0
    %1842 = vmatprep.subr.mxu0 0.0
    %1843 = vmatpush1.msra.mxu0 0.0
    %1844 = vmatprep.subr.mxu0 0.0
    %1845 = vmatpush1.msra.mxu0 0.0
    %1846 = vmatprep.subr.mxu0 0.0
    %1847 = vmatpush1.msra.mxu0 0.0
    %1848 = vmatprep.subr.mxu0 0.0
    %1849 = vmatpush1.msra.mxu0 0.0
    %1850 = vmatprep.subr.mxu0 0.0
    %1851 = vmatpush1.msra.mxu0 0.0
    %1852 = vmatprep.subr.mxu0 0.0
    %1853 = vmatpush1.msra.mxu0 0.0
    %1854 = vmatprep.subr.mxu0 0.0
    %1855 = vmatpush1.msra.mxu0 0.0
    %1856 = vmatprep.mubr.f32.mxu0 0.0
    %1857 = vmatmul.mubr.f32.gmra.mrb[0].mxu0 %v1787
    %v1858 = vpop.f32.mrb[0].mxu0
    %v1859 = vadd.f32 0.0, %v1858
    %v1860 = vpop.f32.mrb[0].mxu0
    %1861 = vmatprep.mubr.f32.mxu0 0.0
    %1862 = vmatmul.mubr.f32.gmra.mrb[0].mxu0 %v1790
    %v1863 = vpop.f32.mrb[0].mxu0
    %v1864 = vadd.f32 0.0, %v1863
    %v1865 = vpop.f32.mrb[0].mxu0
    %1866 = vdwg.mxu0
    %v1867 = vadd.f32 %v1684, %v1859
    %v1868 = vadd.f32 %v1689, %v1864
    %s1869 = scalar_lea.vmem [#allocation7], 48
    %v1870 = vld [vmem:[%s1869] sm:$0xff]
    %v1871 = vld [vmem:[%s1869 + $0x8] sm:$0xff]
    %v1873 = vsel %vm1344, %v1870, 0
    %v1876 = vsel %vm1344, %v1871, 0
    %1878 = vmatprep.subr.mxu0 0.0
    %1879 = vmatpush1.msra.mxu0 %v1339
    %1880 = vmatprep.subr.mxu0 0.0
    %1881 = vmatpush1.msra.mxu0 %v1340
    %1882 = vmatprep.subr.mxu0 0.0
    %1883 = vmatpush1.msra.mxu0 %v1341
    %1884 = vmatprep.subr.mxu0 0.0
    %1885 = vmatpush1.msra.mxu0 0.0
    %1886 = vmatprep.subr.mxu0 0.0
    %1887 = vmatpush1.msra.mxu0 0.0
    %1888 = vmatprep.subr.mxu0 0.0
    %1889 = vmatpush1.msra.mxu0 0.0
    %1890 = vmatprep.subr.mxu0 0.0
    %1891 = vmatpush1.msra.mxu0 0.0
    %1892 = vmatprep.subr.mxu0 0.0
    %1893 = vmatpush1.msra.mxu0 0.0
    %1894 = vmatprep.subr.mxu0 0.0
    %1895 = vmatpush1.msra.mxu0 0.0
    %1896 = vmatprep.subr.mxu0 0.0
    %1897 = vmatpush1.msra.mxu0 0.0
    %1898 = vmatprep.subr.mxu0 0.0
    %1899 = vmatpush1.msra.mxu0 0.0
    %1900 = vmatprep.subr.mxu0 0.0
    %1901 = vmatpush1.msra.mxu0 0.0
    %1902 = vmatprep.subr.mxu0 0.0
    %1903 = vmatpush1.msra.mxu0 0.0
    %1904 = vmatprep.subr.mxu0 0.0
    %1905 = vmatpush1.msra.mxu0 0.0
    %1906 = vmatprep.subr.mxu0 0.0
    %1907 = vmatpush1.msra.mxu0 0.0
    %1908 = vmatprep.subr.mxu0 0.0
    %1909 = vmatpush1.msra.mxu0 0.0
    %1910 = vmatprep.subr.mxu0 0.0
    %1911 = vmatpush1.msra.mxu0 0.0
    %1912 = vmatprep.subr.mxu0 0.0
    %1913 = vmatpush1.msra.mxu0 0.0
    %1914 = vmatprep.subr.mxu0 0.0
    %1915 = vmatpush1.msra.mxu0 0.0
    %1916 = vmatprep.subr.mxu0 0.0
    %1917 = vmatpush1.msra.mxu0 0.0
    %1918 = vmatprep.subr.mxu0 0.0
    %1919 = vmatpush1.msra.mxu0 0.0
    %1920 = vmatprep.subr.mxu0 0.0
    %1921 = vmatpush1.msra.mxu0 0.0
    %1922 = vmatprep.subr.mxu0 0.0
    %1923 = vmatpush1.msra.mxu0 0.0
    %1924 = vmatprep.subr.mxu0 0.0
    %1925 = vmatpush1.msra.mxu0 0.0
    %1926 = vmatprep.subr.mxu0 0.0
    %1927 = vmatpush1.msra.mxu0 0.0
    %1928 = vmatprep.subr.mxu0 0.0
    %1929 = vmatpush1.msra.mxu0 0.0
    %1930 = vmatprep.subr.mxu0 0.0
    %1931 = vmatpush1.msra.mxu0 0.0
    %1932 = vmatprep.subr.mxu0 0.0
    %1933 = vmatpush1.msra.mxu0 0.0
    %1934 = vmatprep.subr.mxu0 0.0
    %1935 = vmatpush1.msra.mxu0 0.0
    %1936 = vmatprep.subr.mxu0 0.0
    %1937 = vmatpush1.msra.mxu0 0.0
    %1938 = vmatprep.subr.mxu0 0.0
    %1939 = vmatpush1.msra.mxu0 0.0
    %1940 = vmatprep.subr.mxu0 0.0
    %1941 = vmatpush1.msra.mxu0 0.0
    %1942 = vmatprep.mubr.f32.mxu0 0.0
    %1943 = vmatmul.mubr.f32.gmra.mrb[0].mxu0 %v1873
    %v1944 = vpop.f32.mrb[0].mxu0
    %v1945 = vadd.f32 0.0, %v1944
    %v1946 = vpop.f32.mrb[0].mxu0
    %1947 = vmatprep.mubr.f32.mxu0 0.0
    %1948 = vmatmul.mubr.f32.gmra.mrb[0].mxu0 %v1876
    %v1949 = vpop.f32.mrb[0].mxu0
    %v1950 = vadd.f32 0.0, %v1949
    %v1951 = vpop.f32.mrb[0].mxu0
    %1952 = vdwg.mxu0
    %s1953 = scalar_lea.vmem %s6, 216
    %v1954 = vld [vmem:[%s1953] sm:$0xff]
    %v1955 = vld [vmem:[%s1953 + $0x8] sm:$0xff]
    %v1956 = vld [vmem:[%s1953 + $0x10] sm:$0xff]
    %v1957 = vld [vmem:[%s1953 + $0x18] sm:$0xff]
    %v1958 = vld [vmem:[%s1953 + $0x20] sm:$0xff]
    %v1959 = vld [vmem:[%s1953 + $0x28] sm:$0xff]
    %v1960 = vld [vmem:[%s1953 + $0x30] sm:$0xff]
    %v1961 = vld [vmem:[%s1953 + $0x38] sm:$0xff]
    %v1962 = vld [vmem:[%s1953 + $0x40] sm:$0xff]
    %v1964 = vsel %vm1529, %v1945, 0
    %v1967 = vsel %vm1529, %v1950, 0
    %1969 = vmatprep.subr.mxu0 0.0
    %1970 = vmatpush1.msra.mxu0 %v1954
    %1971 = vmatprep.subr.mxu0 0.0
    %1972 = vmatpush1.msra.mxu0 %v1955
    %1973 = vmatprep.subr.mxu0 0.0
    %1974 = vmatpush1.msra.mxu0 %v1956
    %1975 = vmatprep.subr.mxu0 0.0
    %1976 = vmatpush1.msra.mxu0 %v1957
    %1977 = vmatprep.subr.mxu0 0.0
    %1978 = vmatpush1.msra.mxu0 %v1958
    %1979 = vmatprep.subr.mxu0 0.0
    %1980 = vmatpush1.msra.mxu0 %v1959
    %1981 = vmatprep.subr.mxu0 0.0
    %1982 = vmatpush1.msra.mxu0 %v1960
    %1983 = vmatprep.subr.mxu0 0.0
    %1984 = vmatpush1.msra.mxu0 %v1961
    %1985 = vmatprep.subr.mxu0 0.0
    %1986 = vmatpush1.msra.mxu0 %v1962
    %1987 = vmatprep.subr.mxu0 0.0
    %1988 = vmatpush1.msra.mxu0 0.0
    %1989 = vmatprep.subr.mxu0 0.0
    %1990 = vmatpush1.msra.mxu0 0.0
    %1991 = vmatprep.subr.mxu0 0.0
    %1992 = vmatpush1.msra.mxu0 0.0
    %1993 = vmatprep.subr.mxu0 0.0
    %1994 = vmatpush1.msra.mxu0 0.0
    %1995 = vmatprep.subr.mxu0 0.0
    %1996 = vmatpush1.msra.mxu0 0.0
    %1997 = vmatprep.subr.mxu0 0.0
    %1998 = vmatpush1.msra.mxu0 0.0
    %1999 = vmatprep.subr.mxu0 0.0
    %2000 = vmatpush1.msra.mxu0 0.0
    %2001 = vmatprep.subr.mxu0 0.0
    %2002 = vmatpush1.msra.mxu0 0.0
    %2003 = vmatprep.subr.mxu0 0.0
    %2004 = vmatpush1.msra.mxu0 0.0
    %2005 = vmatprep.subr.mxu0 0.0
    %2006 = vmatpush1.msra.mxu0 0.0
    %2007 = vmatprep.subr.mxu0 0.0
    %2008 = vmatpush1.msra.mxu0 0.0
    %2009 = vmatprep.subr.mxu0 0.0
    %2010 = vmatpush1.msra.mxu0 0.0
    %2011 = vmatprep.subr.mxu0 0.0
    %2012 = vmatpush1.msra.mxu0 0.0
    %2013 = vmatprep.subr.mxu0 0.0
    %2014 = vmatpush1.msra.mxu0 0.0
    %2015 = vmatprep.subr.mxu0 0.0
    %2016 = vmatpush1.msra.mxu0 0.0
    %2017 = vmatprep.subr.mxu0 0.0
    %2018 = vmatpush1.msra.mxu0 0.0
    %2019 = vmatprep.subr.mxu0 0.0
    %2020 = vmatpush1.msra.mxu0 0.0
    %2021 = vmatprep.subr.mxu0 0.0
    %2022 = vmatpush1.msra.mxu0 0.0
    %2023 = vmatprep.subr.mxu0 0.0
    %2024 = vmatpush1.msra.mxu0 0.0
    %2025 = vmatprep.subr.mxu0 0.0
    %2026 = vmatpush1.msra.mxu0 0.0
    %2027 = vmatprep.subr.mxu0 0.0
    %2028 = vmatpush1.msra.mxu0 0.0
    %2029 = vmatprep.subr.mxu0 0.0
    %2030 = vmatpush1.msra.mxu0 0.0
    %2031 = vmatprep.subr.mxu0 0.0
    %2032 = vmatpush1.msra.mxu0 0.0
    %2033 = vmatprep.mubr.f32.mxu0 0.0
    %2034 = vmatmul.mubr.f32.gmra.mrb[0].mxu0 %v1964
    %v2035 = vpop.f32.mrb[0].mxu0
    %v2036 = vadd.f32 0.0, %v2035
    %v2037 = vpop.f32.mrb[0].mxu0
    %2038 = vmatprep.mubr.f32.mxu0 0.0
    %2039 = vmatmul.mubr.f32.gmra.mrb[0].mxu0 %v1967
    %v2040 = vpop.f32.mrb[0].mxu0
    %v2041 = vadd.f32 0.0, %v2040
    %v2042 = vpop.f32.mrb[0].mxu0
    %2043 = vdwg.mxu0
    %v2044 = vadd.f32 %v1867, %v2036
    %v2045 = vadd.f32 %v1868, %v2041
    %s2046 = scalar_lea.vmem [#allocation7], 64
    %v2047 = vld [vmem:[%s2046] sm:$0xff]
    %v2048 = vld [vmem:[%s2046 + $0x8] sm:$0xff]
    %v2050 = vsel %vm1344, %v2047, 0
    %v2053 = vsel %vm1344, %v2048, 0
    %2055 = vmatprep.subr.mxu0 0.0
    %2056 = vmatpush1.msra.mxu0 %v1339
    %2057 = vmatprep.subr.mxu0 0.0
    %2058 = vmatpush1.msra.mxu0 %v1340
    %2059 = vmatprep.subr.mxu0 0.0
    %2060 = vmatpush1.msra.mxu0 %v1341
    %2061 = vmatprep.subr.mxu0 0.0
    %2062 = vmatpush1.msra.mxu0 0.0
    %2063 = vmatprep.subr.mxu0 0.0
    %2064 = vmatpush1.msra.mxu0 0.0
    %2065 = vmatprep.subr.mxu0 0.0
    %2066 = vmatpush1.msra.mxu0 0.0
    %2067 = vmatprep.subr.mxu0 0.0
    %2068 = vmatpush1.msra.mxu0 0.0
    %2069 = vmatprep.subr.mxu0 0.0
    %2070 = vmatpush1.msra.mxu0 0.0
    %2071 = vmatprep.subr.mxu0 0.0
    %2072 = vmatpush1.msra.mxu0 0.0
    %2073 = vmatprep.subr.mxu0 0.0
    %2074 = vmatpush1.msra.mxu0 0.0
    %2075 = vmatprep.subr.mxu0 0.0
    %2076 = vmatpush1.msra.mxu0 0.0
    %2077 = vmatprep.subr.mxu0 0.0
    %2078 = vmatpush1.msra.mxu0 0.0
    %2079 = vmatprep.subr.mxu0 0.0
    %2080 = vmatpush1.msra.mxu0 0.0
    %2081 = vmatprep.subr.mxu0 0.0
    %2082 = vmatpush1.msra.mxu0 0.0
    %2083 = vmatprep.subr.mxu0 0.0
    %2084 = vmatpush1.msra.mxu0 0.0
    %2085 = vmatprep.subr.mxu0 0.0
    %2086 = vmatpush1.msra.mxu0 0.0
    %2087 = vmatprep.subr.mxu0 0.0
    %2088 = vmatpush1.msra.mxu0 0.0
    %2089 = vmatprep.subr.mxu0 0.0
    %2090 = vmatpush1.msra.mxu0 0.0
    %2091 = vmatprep.subr.mxu0 0.0
    %2092 = vmatpush1.msra.mxu0 0.0
    %2093 = vmatprep.subr.mxu0 0.0
    %2094 = vmatpush1.msra.mxu0 0.0
    %2095 = vmatprep.subr.mxu0 0.0
    %2096 = vmatpush1.msra.mxu0 0.0
    %2097 = vmatprep.subr.mxu0 0.0
    %2098 = vmatpush1.msra.mxu0 0.0
    %2099 = vmatprep.subr.mxu0 0.0
    %2100 = vmatpush1.msra.mxu0 0.0
    %2101 = vmatprep.subr.mxu0 0.0
    %2102 = vmatpush1.msra.mxu0 0.0
    %2103 = vmatprep.subr.mxu0 0.0
    %2104 = vmatpush1.msra.mxu0 0.0
    %2105 = vmatprep.subr.mxu0 0.0
    %2106 = vmatpush1.msra.mxu0 0.0
    %2107 = vmatprep.subr.mxu0 0.0
    %2108 = vmatpush1.msra.mxu0 0.0
    %2109 = vmatprep.subr.mxu0 0.0
    %2110 = vmatpush1.msra.mxu0 0.0
    %2111 = vmatprep.subr.mxu0 0.0
    %2112 = vmatpush1.msra.mxu0 0.0
    %2113 = vmatprep.subr.mxu0 0.0
    %2114 = vmatpush1.msra.mxu0 0.0
    %2115 = vmatprep.subr.mxu0 0.0
    %2116 = vmatpush1.msra.mxu0 0.0
    %2117 = vmatprep.subr.mxu0 0.0
    %2118 = vmatpush1.msra.mxu0 0.0
    %2119 = vmatprep.mubr.f32.mxu0 0.0
    %2120 = vmatmul.mubr.f32.gmra.mrb[0].mxu0 %v2050
    %v2121 = vpop.f32.mrb[0].mxu0
    %v2122 = vadd.f32 0.0, %v2121
    %v2123 = vpop.f32.mrb[0].mxu0
    %2124 = vmatprep.mubr.f32.mxu0 0.0
    %2125 = vmatmul.mubr.f32.gmra.mrb[0].mxu0 %v2053
    %v2126 = vpop.f32.mrb[0].mxu0
    %v2127 = vadd.f32 0.0, %v2126
    %v2128 = vpop.f32.mrb[0].mxu0
    %2129 = vdwg.mxu0
    %s2130 = scalar_lea.vmem %s6, 288
    %v2131 = vld [vmem:[%s2130] sm:$0xff]
    %v2132 = vld [vmem:[%s2130 + $0x8] sm:$0xff]
    %v2133 = vld [vmem:[%s2130 + $0x10] sm:$0xff]
    %v2134 = vld [vmem:[%s2130 + $0x18] sm:$0xff]
    %v2135 = vld [vmem:[%s2130 + $0x20] sm:$0xff]
    %v2136 = vld [vmem:[%s2130 + $0x28] sm:$0xff]
    %v2137 = vld [vmem:[%s2130 + $0x30] sm:$0xff]
    %v2138 = vld [vmem:[%s2130 + $0x38] sm:$0xff]
    %v2139 = vld [vmem:[%s2130 + $0x40] sm:$0xff]
    %v2141 = vsel %vm1529, %v2122, 0
    %v2144 = vsel %vm1529, %v2127, 0
    %2146 = vmatprep.subr.mxu0 0.0
    %2147 = vmatpush1.msra.mxu0 %v2131
    %2148 = vmatprep.subr.mxu0 0.0
    %2149 = vmatpush1.msra.mxu0 %v2132
    %2150 = vmatprep.subr.mxu0 0.0
    %2151 = vmatpush1.msra.mxu0 %v2133
    %2152 = vmatprep.subr.mxu0 0.0
    %2153 = vmatpush1.msra.mxu0 %v2134
    %2154 = vmatprep.subr.mxu0 0.0
    %2155 = vmatpush1.msra.mxu0 %v2135
    %2156 = vmatprep.subr.mxu0 0.0
    %2157 = vmatpush1.msra.mxu0 %v2136
    %2158 = vmatprep.subr.mxu0 0.0
    %2159 = vmatpush1.msra.mxu0 %v2137
    %2160 = vmatprep.subr.mxu0 0.0
    %2161 = vmatpush1.msra.mxu0 %v2138
    %2162 = vmatprep.subr.mxu0 0.0
    %2163 = vmatpush1.msra.mxu0 %v2139
    %2164 = vmatprep.subr.mxu0 0.0
    %2165 = vmatpush1.msra.mxu0 0.0
    %2166 = vmatprep.subr.mxu0 0.0
    %2167 = vmatpush1.msra.mxu0 0.0
    %2168 = vmatprep.subr.mxu0 0.0
    %2169 = vmatpush1.msra.mxu0 0.0
    %2170 = vmatprep.subr.mxu0 0.0
    %2171 = vmatpush1.msra.mxu0 0.0
    %2172 = vmatprep.subr.mxu0 0.0
    %2173 = vmatpush1.msra.mxu0 0.0
    %2174 = vmatprep.subr.mxu0 0.0
    %2175 = vmatpush1.msra.mxu0 0.0
    %2176 = vmatprep.subr.mxu0 0.0
    %2177 = vmatpush1.msra.mxu0 0.0
    %2178 = vmatprep.subr.mxu0 0.0
    %2179 = vmatpush1.msra.mxu0 0.0
    %2180 = vmatprep.subr.mxu0 0.0
    %2181 = vmatpush1.msra.mxu0 0.0
    %2182 = vmatprep.subr.mxu0 0.0
    %2183 = vmatpush1.msra.mxu0 0.0
    %2184 = vmatprep.subr.mxu0 0.0
    %2185 = vmatpush1.msra.mxu0 0.0
    %2186 = vmatprep.subr.mxu0 0.0
    %2187 = vmatpush1.msra.mxu0 0.0
    %2188 = vmatprep.subr.mxu0 0.0
    %2189 = vmatpush1.msra.mxu0 0.0
    %2190 = vmatprep.subr.mxu0 0.0
    %2191 = vmatpush1.msra.mxu0 0.0
    %2192 = vmatprep.subr.mxu0 0.0
    %2193 = vmatpush1.msra.mxu0 0.0
    %2194 = vmatprep.subr.mxu0 0.0
    %2195 = vmatpush1.msra.mxu0 0.0
    %2196 = vmatprep.subr.mxu0 0.0
    %2197 = vmatpush1.msra.mxu0 0.0
    %2198 = vmatprep.subr.mxu0 0.0
    %2199 = vmatpush1.msra.mxu0 0.0
    %2200 = vmatprep.subr.mxu0 0.0
    %2201 = vmatpush1.msra.mxu0 0.0
    %2202 = vmatprep.subr.mxu0 0.0
    %2203 = vmatpush1.msra.mxu0 0.0
    %2204 = vmatprep.subr.mxu0 0.0
    %2205 = vmatpush1.msra.mxu0 0.0
    %2206 = vmatprep.subr.mxu0 0.0
    %2207 = vmatpush1.msra.mxu0 0.0
    %2208 = vmatprep.subr.mxu0 0.0
    %2209 = vmatpush1.msra.mxu0 0.0
    %2210 = vmatprep.mubr.f32.mxu0 0.0
    %2211 = vmatmul.mubr.f32.gmra.mrb[0].mxu0 %v2141
    %v2212 = vpop.f32.mrb[0].mxu0
    %v2213 = vadd.f32 0.0, %v2212
    %v2214 = vpop.f32.mrb[0].mxu0
    %2215 = vmatprep.mubr.f32.mxu0 0.0
    %2216 = vmatmul.mubr.f32.gmra.mrb[0].mxu0 %v2144
    %v2217 = vpop.f32.mrb[0].mxu0
    %v2218 = vadd.f32 0.0, %v2217
    %v2219 = vpop.f32.mrb[0].mxu0
    %2220 = vdwg.mxu0
    %v2221 = vadd.f32 %v2044, %v2213
    %v2222 = vadd.f32 %v2045, %v2218
    %v2223 = vld [vmem:[#allocation8] sm:$0x1]
    %v2225 = vlaneseq
    %v2226 = vshrl.u32 %v2225, 7
    %v2227 = vsub.s32 0, %v2226
    %v2228 = vrot.slane %v2223, %v2227
    %v2230 = vadd.f32 %v2221, %v2228
    %v2231 = vadd.f32 %v2222, %v2228
    %v2232 = vmax.f32 %v2230, 0.0
    %v2233 = vmax.f32 %v2231, 0.0
    %v2234 = vld [vmem:[#allocation10] sm:$0xff]
    %v2236 = vsel %vm1150, %v2234, 0
    %2238 = vmatprep.subr.mxu0 0.0
    %2239 = vmatpush1.msra.mxu0 %v2232
    %2240 = vmatprep.subr.mxu0 0.0
    %2241 = vmatpush1.msra.mxu0 %v2233
    %2242 = vmatprep.subr.mxu0 0.0
    %2243 = vmatpush1.msra.mxu0 0.0
    %2244 = vmatprep.subr.mxu0 0.0
    %2245 = vmatpush1.msra.mxu0 0.0
    %2246 = vmatprep.subr.mxu0 0.0
    %2247 = vmatpush1.msra.mxu0 0.0
    %2248 = vmatprep.subr.mxu0 0.0
    %2249 = vmatpush1.msra.mxu0 0.0
    %2250 = vmatprep.subr.mxu0 0.0
    %2251 = vmatpush1.msra.mxu0 0.0
    %2252 = vmatprep.subr.mxu0 0.0
    %2253 = vmatpush1.msra.mxu0 0.0
    %2254 = vmatprep.subr.mxu0 0.0
    %2255 = vmatpush1.msra.mxu0 0.0
    %2256 = vmatprep.subr.mxu0 0.0
    %2257 = vmatpush1.msra.mxu0 0.0
    %2258 = vmatprep.subr.mxu0 0.0
    %2259 = vmatpush1.msra.mxu0 0.0
    %2260 = vmatprep.subr.mxu0 0.0
    %2261 = vmatpush1.msra.mxu0 0.0
    %2262 = vmatprep.subr.mxu0 0.0
    %2263 = vmatpush1.msra.mxu0 0.0
    %2264 = vmatprep.subr.mxu0 0.0
    %2265 = vmatpush1.msra.mxu0 0.0
    %2266 = vmatprep.subr.mxu0 0.0
    %2267 = vmatpush1.msra.mxu0 0.0
    %2268 = vmatprep.subr.mxu0 0.0
    %2269 = vmatpush1.msra.mxu0 0.0
    %2270 = vmatprep.subr.mxu0 0.0
    %2271 = vmatpush1.msra.mxu0 0.0
    %2272 = vmatprep.subr.mxu0 0.0
    %2273 = vmatpush1.msra.mxu0 0.0
    %2274 = vmatprep.subr.mxu0 0.0
    %2275 = vmatpush1.msra.mxu0 0.0
    %2276 = vmatprep.subr.mxu0 0.0
    %2277 = vmatpush1.msra.mxu0 0.0
    %2278 = vmatprep.subr.mxu0 0.0
    %2279 = vmatpush1.msra.mxu0 0.0
    %2280 = vmatprep.subr.mxu0 0.0
    %2281 = vmatpush1.msra.mxu0 0.0
    %2282 = vmatprep.subr.mxu0 0.0
    %2283 = vmatpush1.msra.mxu0 0.0
    %2284 = vmatprep.subr.mxu0 0.0
    %2285 = vmatpush1.msra.mxu0 0.0
    %2286 = vmatprep.subr.mxu0 0.0
    %2287 = vmatpush1.msra.mxu0 0.0
    %2288 = vmatprep.subr.mxu0 0.0
    %2289 = vmatpush1.msra.mxu0 0.0
    %2290 = vmatprep.subr.mxu0 0.0
    %2291 = vmatpush1.msra.mxu0 0.0
    %2292 = vmatprep.subr.mxu0 0.0
    %2293 = vmatpush1.msra.mxu0 0.0
    %2294 = vmatprep.subr.mxu0 0.0
    %2295 = vmatpush1.msra.mxu0 0.0
    %2296 = vmatprep.subr.mxu0 0.0
    %2297 = vmatpush1.msra.mxu0 0.0
    %2298 = vmatprep.subr.mxu0 0.0
    %2299 = vmatpush1.msra.mxu0 0.0
    %2300 = vmatprep.subr.mxu0 0.0
    %2301 = vmatpush1.msra.mxu0 0.0
    %2302 = vmatprep.mubr.f32.mxu0 0.0
    %2303 = vmatmul.mubr.f32.gmra.mrb[0].mxu0 %v2236
    %v2304 = vpop.f32.mrb[0].mxu0
    %v2305 = vadd.f32 0.0, %v2304
    %v2306 = vpop.f32.mrb[0].mxu0
    %2307 = vdwg.mxu0
    %s2308 = scalar_lea.vmem [#allocation10], 8
    %v2309 = vld [vmem:[%s2308] sm:$0xff]
    %v2311 = vsel %vm1150, %v2309, 0
    %2313 = vmatprep.subr.mxu0 0.0
    %2314 = vmatpush1.msra.mxu0 %v2232
    %2315 = vmatprep.subr.mxu0 0.0
    %2316 = vmatpush1.msra.mxu0 %v2233
    %2317 = vmatprep.subr.mxu0 0.0
    %2318 = vmatpush1.msra.mxu0 0.0
    %2319 = vmatprep.subr.mxu0 0.0
    %2320 = vmatpush1.msra.mxu0 0.0
    %2321 = vmatprep.subr.mxu0 0.0
    %2322 = vmatpush1.msra.mxu0 0.0
    %2323 = vmatprep.subr.mxu0 0.0
    %2324 = vmatpush1.msra.mxu0 0.0
    %2325 = vmatprep.subr.mxu0 0.0
    %2326 = vmatpush1.msra.mxu0 0.0
    %2327 = vmatprep.subr.mxu0 0.0
    %2328 = vmatpush1.msra.mxu0 0.0
    %2329 = vmatprep.subr.mxu0 0.0
    %2330 = vmatpush1.msra.mxu0 0.0
    %2331 = vmatprep.subr.mxu0 0.0
    %2332 = vmatpush1.msra.mxu0 0.0
    %2333 = vmatprep.subr.mxu0 0.0
    %2334 = vmatpush1.msra.mxu0 0.0
    %2335 = vmatprep.subr.mxu0 0.0
    %2336 = vmatpush1.msra.mxu0 0.0
    %2337 = vmatprep.subr.mxu0 0.0
    %2338 = vmatpush1.msra.mxu0 0.0
    %2339 = vmatprep.subr.mxu0 0.0
    %2340 = vmatpush1.msra.mxu0 0.0
    %2341 = vmatprep.subr.mxu0 0.0
    %2342 = vmatpush1.msra.mxu0 0.0
    %2343 = vmatprep.subr.mxu0 0.0
    %2344 = vmatpush1.msra.mxu0 0.0
    %2345 = vmatprep.subr.mxu0 0.0
    %2346 = vmatpush1.msra.mxu0 0.0
    %2347 = vmatprep.subr.mxu0 0.0
    %2348 = vmatpush1.msra.mxu0 0.0
    %2349 = vmatprep.subr.mxu0 0.0
    %2350 = vmatpush1.msra.mxu0 0.0
    %2351 = vmatprep.subr.mxu0 0.0
    %2352 = vmatpush1.msra.mxu0 0.0
    %2353 = vmatprep.subr.mxu0 0.0
    %2354 = vmatpush1.msra.mxu0 0.0
    %2355 = vmatprep.subr.mxu0 0.0
    %2356 = vmatpush1.msra.mxu0 0.0
    %2357 = vmatprep.subr.mxu0 0.0
    %2358 = vmatpush1.msra.mxu0 0.0
    %2359 = vmatprep.subr.mxu0 0.0
    %2360 = vmatpush1.msra.mxu0 0.0
    %2361 = vmatprep.subr.mxu0 0.0
    %2362 = vmatpush1.msra.mxu0 0.0
    %2363 = vmatprep.subr.mxu0 0.0
    %2364 = vmatpush1.msra.mxu0 0.0
    %2365 = vmatprep.subr.mxu0 0.0
    %2366 = vmatpush1.msra.mxu0 0.0
    %2367 = vmatprep.subr.mxu0 0.0
    %2368 = vmatpush1.msra.mxu0 0.0
    %2369 = vmatprep.subr.mxu0 0.0
    %2370 = vmatpush1.msra.mxu0 0.0
    %2371 = vmatprep.subr.mxu0 0.0
    %2372 = vmatpush1.msra.mxu0 0.0
    %2373 = vmatprep.subr.mxu0 0.0
    %2374 = vmatpush1.msra.mxu0 0.0
    %2375 = vmatprep.subr.mxu0 0.0
    %2376 = vmatpush1.msra.mxu0 0.0
    %2377 = vmatprep.mubr.f32.mxu0 0.0
    %2378 = vmatmul.mubr.f32.gmra.mrb[0].mxu0 %v2311
    %v2379 = vpop.f32.mrb[0].mxu0
    %v2380 = vadd.f32 0.0, %v2379
    %v2381 = vpop.f32.mrb[0].mxu0
    %2382 = vdwg.mxu0
    %v2383 = vmax.f32 %v2305, %v2380
    %v2384 = vld [vmem:[%s9] sm:$0xff]
    %v2385 = vld [vmem:[%s9 + $0x8] sm:$0xff]
    %v2386 = vld [vmem:[%s9 + $0x10] sm:$0xff]
    %v2387 = vld [vmem:[%s9 + $0x18] sm:$0xff]
    %v2388 = vld [vmem:[%s9 + $0x20] sm:$0xff]
    %v2389 = vld [vmem:[%s9 + $0x28] sm:$0xff]
    %v2390 = vld [vmem:[%s9 + $0x30] sm:$0xff]
    %v2391 = vld [vmem:[%s9 + $0x38] sm:$0xff]
    %v2392 = vld [vmem:[%s9 + $0x40] sm:$0xff]
    %v2393 = vld [vmem:[%s9 + $0x48] sm:$0xff]
    %v2394 = vld [vmem:[%s9 + $0x50] sm:$0xff]
    %v2395 = vld [vmem:[%s9 + $0x58] sm:$0xff]
    %v2396 = vld [vmem:[%s9 + $0x60] sm:$0xff]
    %v2397 = vld [vmem:[%s9 + $0x68] sm:$0xff]
    %v2398 = vld [vmem:[%s9 + $0x70] sm:$0xff]
    %v2399 = vld [vmem:[%s9 + $0x78] sm:$0xff]
    %2400 = vmatprep.subr.mxu0 0.0
    %2401 = vmatpush1.msra.mxu0 %v2384
    %2402 = vmatprep.subr.mxu0 0.0
    %2403 = vmatpush1.msra.mxu0 %v2385
    %2404 = vmatprep.subr.mxu0 0.0
    %2405 = vmatpush1.msra.mxu0 %v2386
    %2406 = vmatprep.subr.mxu0 0.0
    %2407 = vmatpush1.msra.mxu0 %v2387
    %2408 = vmatprep.subr.mxu0 0.0
    %2409 = vmatpush1.msra.mxu0 %v2388
    %2410 = vmatprep.subr.mxu0 0.0
    %2411 = vmatpush1.msra.mxu0 %v2389
    %2412 = vmatprep.subr.mxu0 0.0
    %2413 = vmatpush1.msra.mxu0 %v2390
    %2414 = vmatprep.subr.mxu0 0.0
    %2415 = vmatpush1.msra.mxu0 %v2391
    %2416 = vmatprep.subr.mxu0 0.0
    %2417 = vmatpush1.msra.mxu0 %v2392
    %2418 = vmatprep.subr.mxu0 0.0
    %2419 = vmatpush1.msra.mxu0 %v2393
    %2420 = vmatprep.subr.mxu0 0.0
    %2421 = vmatpush1.msra.mxu0 %v2394
    %2422 = vmatprep.subr.mxu0 0.0
    %2423 = vmatpush1.msra.mxu0 %v2395
    %2424 = vmatprep.subr.mxu0 0.0
    %2425 = vmatpush1.msra.mxu0 %v2396
    %2426 = vmatprep.subr.mxu0 0.0
    %2427 = vmatpush1.msra.mxu0 %v2397
    %2428 = vmatprep.subr.mxu0 0.0
    %2429 = vmatpush1.msra.mxu0 %v2398
    %2430 = vmatprep.subr.mxu0 0.0
    %2431 = vmatpush1.msra.mxu0 %v2399
    %2432 = vmatprep.subr.mxu0 0.0
    %2433 = vmatpush1.msra.mxu0 0.0
    %2434 = vmatprep.subr.mxu0 0.0
    %2435 = vmatpush1.msra.mxu0 0.0
    %2436 = vmatprep.subr.mxu0 0.0
    %2437 = vmatpush1.msra.mxu0 0.0
    %2438 = vmatprep.subr.mxu0 0.0
    %2439 = vmatpush1.msra.mxu0 0.0
    %2440 = vmatprep.subr.mxu0 0.0
    %2441 = vmatpush1.msra.mxu0 0.0
    %2442 = vmatprep.subr.mxu0 0.0
    %2443 = vmatpush1.msra.mxu0 0.0
    %2444 = vmatprep.subr.mxu0 0.0
    %2445 = vmatpush1.msra.mxu0 0.0
    %2446 = vmatprep.subr.mxu0 0.0
    %2447 = vmatpush1.msra.mxu0 0.0
    %2448 = vmatprep.subr.mxu0 0.0
    %2449 = vmatpush1.msra.mxu0 0.0
    %2450 = vmatprep.subr.mxu0 0.0
    %2451 = vmatpush1.msra.mxu0 0.0
    %2452 = vmatprep.subr.mxu0 0.0
    %2453 = vmatpush1.msra.mxu0 0.0
    %2454 = vmatprep.subr.mxu0 0.0
    %2455 = vmatpush1.msra.mxu0 0.0
    %2456 = vmatprep.subr.mxu0 0.0
    %2457 = vmatpush1.msra.mxu0 0.0
    %2458 = vmatprep.subr.mxu0 0.0
    %2459 = vmatpush1.msra.mxu0 0.0
    %2460 = vmatprep.subr.mxu0 0.0
    %2461 = vmatpush1.msra.mxu0 0.0
    %2462 = vmatprep.subr.mxu0 0.0
    %2463 = vmatpush1.msra.mxu0 0.0
    %2464 = vmatprep.mubr.f32.mxu0 0.0
    %2465 = vmatmul.mubr.f32.gmra.mrb[0].mxu0 %v2383
    %v2466 = vpop.f32.mrb[0].mxu0
    %v2467 = vadd.f32 0.0, %v2466
    %v2468 = vpop.f32.mrb[0].mxu0
    %2469 = vdwg.mxu0
    %s2470 = scalar_lea.vmem %s9, 128
    %v2471 = vld [vmem:[%s2470] sm:$0xff]
    %v2472 = vld [vmem:[%s2470 + $0x8] sm:$0xff]
    %v2473 = vld [vmem:[%s2470 + $0x10] sm:$0xff]
    %v2474 = vld [vmem:[%s2470 + $0x18] sm:$0xff]
    %v2475 = vld [vmem:[%s2470 + $0x20] sm:$0xff]
    %v2476 = vld [vmem:[%s2470 + $0x28] sm:$0xff]
    %v2477 = vld [vmem:[%s2470 + $0x30] sm:$0xff]
    %v2478 = vld [vmem:[%s2470 + $0x38] sm:$0xff]
    %v2479 = vld [vmem:[%s2470 + $0x40] sm:$0xff]
    %v2480 = vld [vmem:[%s2470 + $0x48] sm:$0xff]
    %v2481 = vld [vmem:[%s2470 + $0x50] sm:$0xff]
    %v2482 = vld [vmem:[%s2470 + $0x58] sm:$0xff]
    %v2483 = vld [vmem:[%s2470 + $0x60] sm:$0xff]
    %v2484 = vld [vmem:[%s2470 + $0x68] sm:$0xff]
    %v2485 = vld [vmem:[%s2470 + $0x70] sm:$0xff]
    %v2486 = vld [vmem:[%s2470 + $0x78] sm:$0xff]
    %2487 = vmatprep.subr.mxu0 0.0
    %2488 = vmatpush1.msra.mxu0 %v2471
    %2489 = vmatprep.subr.mxu0 0.0
    %2490 = vmatpush1.msra.mxu0 %v2472
    %2491 = vmatprep.subr.mxu0 0.0
    %2492 = vmatpush1.msra.mxu0 %v2473
    %2493 = vmatprep.subr.mxu0 0.0
    %2494 = vmatpush1.msra.mxu0 %v2474
    %2495 = vmatprep.subr.mxu0 0.0
    %2496 = vmatpush1.msra.mxu0 %v2475
    %2497 = vmatprep.subr.mxu0 0.0
    %2498 = vmatpush1.msra.mxu0 %v2476
    %2499 = vmatprep.subr.mxu0 0.0
    %2500 = vmatpush1.msra.mxu0 %v2477
    %2501 = vmatprep.subr.mxu0 0.0
    %2502 = vmatpush1.msra.mxu0 %v2478
    %2503 = vmatprep.subr.mxu0 0.0
    %2504 = vmatpush1.msra.mxu0 %v2479
    %2505 = vmatprep.subr.mxu0 0.0
    %2506 = vmatpush1.msra.mxu0 %v2480
    %2507 = vmatprep.subr.mxu0 0.0
    %2508 = vmatpush1.msra.mxu0 %v2481
    %2509 = vmatprep.subr.mxu0 0.0
    %2510 = vmatpush1.msra.mxu0 %v2482
    %2511 = vmatprep.subr.mxu0 0.0
    %2512 = vmatpush1.msra.mxu0 %v2483
    %2513 = vmatprep.subr.mxu0 0.0
    %2514 = vmatpush1.msra.mxu0 %v2484
    %2515 = vmatprep.subr.mxu0 0.0
    %2516 = vmatpush1.msra.mxu0 %v2485
    %2517 = vmatprep.subr.mxu0 0.0
    %2518 = vmatpush1.msra.mxu0 %v2486
    %2519 = vmatprep.subr.mxu0 0.0
    %2520 = vmatpush1.msra.mxu0 0.0
    %2521 = vmatprep.subr.mxu0 0.0
    %2522 = vmatpush1.msra.mxu0 0.0
    %2523 = vmatprep.subr.mxu0 0.0
    %2524 = vmatpush1.msra.mxu0 0.0
    %2525 = vmatprep.subr.mxu0 0.0
    %2526 = vmatpush1.msra.mxu0 0.0
    %2527 = vmatprep.subr.mxu0 0.0
    %2528 = vmatpush1.msra.mxu0 0.0
    %2529 = vmatprep.subr.mxu0 0.0
    %2530 = vmatpush1.msra.mxu0 0.0
    %2531 = vmatprep.subr.mxu0 0.0
    %2532 = vmatpush1.msra.mxu0 0.0
    %2533 = vmatprep.subr.mxu0 0.0
    %2534 = vmatpush1.msra.mxu0 0.0
    %2535 = vmatprep.subr.mxu0 0.0
    %2536 = vmatpush1.msra.mxu0 0.0
    %2537 = vmatprep.subr.mxu0 0.0
    %2538 = vmatpush1.msra.mxu0 0.0
    %2539 = vmatprep.subr.mxu0 0.0
    %2540 = vmatpush1.msra.mxu0 0.0
    %2541 = vmatprep.subr.mxu0 0.0
    %2542 = vmatpush1.msra.mxu0 0.0
    %2543 = vmatprep.subr.mxu0 0.0
    %2544 = vmatpush1.msra.mxu0 0.0
    %2545 = vmatprep.subr.mxu0 0.0
    %2546 = vmatpush1.msra.mxu0 0.0
    %2547 = vmatprep.subr.mxu0 0.0
    %2548 = vmatpush1.msra.mxu0 0.0
    %2549 = vmatprep.subr.mxu0 0.0
    %2550 = vmatpush1.msra.mxu0 0.0
    %2551 = vmatprep.mubr.f32.mxu0 0.0
    %2552 = vmatmul.mubr.f32.gmra.mrb[0].mxu0 %v2383
    %v2553 = vpop.f32.mrb[0].mxu0
    %v2554 = vadd.f32 0.0, %v2553
    %v2555 = vpop.f32.mrb[0].mxu0
    %2556 = vdwg.mxu0
    %v2557 = vmax.f32 %v2467, %v2554
    %v2558 = vld [vmem:[#allocation11] sm:$0x3]
    %vm2559 = vcmask 64512
    %v2561 = vsel %vm2559, %v2558, 0
    %2563 = vmatprep.subr.mxu0 0.0
    %2564 = vmatpush1.msra.mxu0 %v2557
    %2565 = vmatprep.subr.mxu0 0.0
    %2566 = vmatpush1.msra.mxu0 0.0
    %2567 = vmatprep.subr.mxu0 0.0
    %2568 = vmatpush1.msra.mxu0 0.0
    %2569 = vmatprep.subr.mxu0 0.0
    %2570 = vmatpush1.msra.mxu0 0.0
    %2571 = vmatprep.subr.mxu0 0.0
    %2572 = vmatpush1.msra.mxu0 0.0
    %2573 = vmatprep.subr.mxu0 0.0
    %2574 = vmatpush1.msra.mxu0 0.0
    %2575 = vmatprep.subr.mxu0 0.0
    %2576 = vmatpush1.msra.mxu0 0.0
    %2577 = vmatprep.subr.mxu0 0.0
    %2578 = vmatpush1.msra.mxu0 0.0
    %2579 = vmatprep.subr.mxu0 0.0
    %2580 = vmatpush1.msra.mxu0 0.0
    %2581 = vmatprep.subr.mxu0 0.0
    %2582 = vmatpush1.msra.mxu0 0.0
    %2583 = vmatprep.subr.mxu0 0.0
    %2584 = vmatpush1.msra.mxu0 0.0
    %2585 = vmatprep.subr.mxu0 0.0
    %2586 = vmatpush1.msra.mxu0 0.0
    %2587 = vmatprep.subr.mxu0 0.0
    %2588 = vmatpush1.msra.mxu0 0.0
    %2589 = vmatprep.subr.mxu0 0.0
    %2590 = vmatpush1.msra.mxu0 0.0
    %2591 = vmatprep.subr.mxu0 0.0
    %2592 = vmatpush1.msra.mxu0 0.0
    %2593 = vmatprep.subr.mxu0 0.0
    %2594 = vmatpush1.msra.mxu0 0.0
    %2595 = vmatprep.subr.mxu0 0.0
    %2596 = vmatpush1.msra.mxu0 0.0
    %2597 = vmatprep.subr.mxu0 0.0
    %2598 = vmatpush1.msra.mxu0 0.0
    %2599 = vmatprep.subr.mxu0 0.0
    %2600 = vmatpush1.msra.mxu0 0.0
    %2601 = vmatprep.subr.mxu0 0.0
    %2602 = vmatpush1.msra.mxu0 0.0
    %2603 = vmatprep.subr.mxu0 0.0
    %2604 = vmatpush1.msra.mxu0 0.0
    %2605 = vmatprep.subr.mxu0 0.0
    %2606 = vmatpush1.msra.mxu0 0.0
    %2607 = vmatprep.subr.mxu0 0.0
    %2608 = vmatpush1.msra.mxu0 0.0
    %2609 = vmatprep.subr.mxu0 0.0
    %2610 = vmatpush1.msra.mxu0 0.0
    %2611 = vmatprep.subr.mxu0 0.0
    %2612 = vmatpush1.msra.mxu0 0.0
    %2613 = vmatprep.subr.mxu0 0.0
    %2614 = vmatpush1.msra.mxu0 0.0
    %2615 = vmatprep.subr.mxu0 0.0
    %2616 = vmatpush1.msra.mxu0 0.0
    %2617 = vmatprep.subr.mxu0 0.0
    %2618 = vmatpush1.msra.mxu0 0.0
    %2619 = vmatprep.subr.mxu0 0.0
    %2620 = vmatpush1.msra.mxu0 0.0
    %2621 = vmatprep.subr.mxu0 0.0
    %2622 = vmatpush1.msra.mxu0 0.0
    %2623 = vmatprep.subr.mxu0 0.0
    %2624 = vmatpush1.msra.mxu0 0.0
    %2625 = vmatprep.subr.mxu0 0.0
    %2626 = vmatpush1.msra.mxu0 0.0
    %2627 = vmatprep.mubr.f32.mxu0 0.0
    %2628 = vmatmul.mubr.f32.gmra.mrb[0].mxu0 %v2561
    %v2629 = vpop.f32.mrb[0].mxu0
    %v2630 = vadd.f32 0.0, %v2629
    %v2631 = vpop.f32.mrb[0].mxu0
    %2632 = vdwg.mxu0
    %v2633 = vpack.c.bf16 %v2630, %v2630
    %v2634 = vld [vmem:[%s11] sm:$0xff]
    %v2635 = vld [vmem:[%s11 + $0x8] sm:$0xff]
    %v2636 = vld [vmem:[%s11 + $0x10] sm:$0xff]
    %v2637 = vld [vmem:[%s11 + $0x18] sm:$0xff]
    %v2638 = vld [vmem:[%s11 + $0x20] sm:$0xff]
    %v2639 = vld [vmem:[%s11 + $0x28] sm:$0xff]
    %v2640 = vld [vmem:[%s11 + $0x30] sm:$0xff]
    %v2641 = vld [vmem:[%s11 + $0x38] sm:$0xff]
    %s2642 = scalar_lea.vmem [#allocation11], 2
    %v2643 = vld [vmem:[%s2642] sm:$0x3]
    %v2645 = vsel %vm2559, %v2643, 0
    %2647 = vmatprep.subr.mxu0 0.0
    %2648 = vmatpush1.msra.mxu0 %v2557
    %2649 = vmatprep.subr.mxu0 0.0
    %2650 = vmatpush1.msra.mxu0 0.0
    %2651 = vmatprep.subr.mxu0 0.0
    %2652 = vmatpush1.msra.mxu0 0.0
    %2653 = vmatprep.subr.mxu0 0.0
    %2654 = vmatpush1.msra.mxu0 0.0
    %2655 = vmatprep.subr.mxu0 0.0
    %2656 = vmatpush1.msra.mxu0 0.0
    %2657 = vmatprep.subr.mxu0 0.0
    %2658 = vmatpush1.msra.mxu0 0.0
    %2659 = vmatprep.subr.mxu0 0.0
    %2660 = vmatpush1.msra.mxu0 0.0
    %2661 = vmatprep.subr.mxu0 0.0
    %2662 = vmatpush1.msra.mxu0 0.0
    %2663 = vmatprep.subr.mxu0 0.0
    %2664 = vmatpush1.msra.mxu0 0.0
    %2665 = vmatprep.subr.mxu0 0.0
    %2666 = vmatpush1.msra.mxu0 0.0
    %2667 = vmatprep.subr.mxu0 0.0
    %2668 = vmatpush1.msra.mxu0 0.0
    %2669 = vmatprep.subr.mxu0 0.0
    %2670 = vmatpush1.msra.mxu0 0.0
    %2671 = vmatprep.subr.mxu0 0.0
    %2672 = vmatpush1.msra.mxu0 0.0
    %2673 = vmatprep.subr.mxu0 0.0
    %2674 = vmatpush1.msra.mxu0 0.0
    %2675 = vmatprep.subr.mxu0 0.0
    %2676 = vmatpush1.msra.mxu0 0.0
    %2677 = vmatprep.subr.mxu0 0.0
    %2678 = vmatpush1.msra.mxu0 0.0
    %2679 = vmatprep.subr.mxu0 0.0
    %2680 = vmatpush1.msra.mxu0 0.0
    %2681 = vmatprep.subr.mxu0 0.0
    %2682 = vmatpush1.msra.mxu0 0.0
    %2683 = vmatprep.subr.mxu0 0.0
    %2684 = vmatpush1.msra.mxu0 0.0
    %2685 = vmatprep.subr.mxu0 0.0
    %2686 = vmatpush1.msra.mxu0 0.0
    %2687 = vmatprep.subr.mxu0 0.0
    %2688 = vmatpush1.msra.mxu0 0.0
    %2689 = vmatprep.subr.mxu0 0.0
    %2690 = vmatpush1.msra.mxu0 0.0
    %2691 = vmatprep.subr.mxu0 0.0
    %2692 = vmatpush1.msra.mxu0 0.0
    %2693 = vmatprep.subr.mxu0 0.0
    %2694 = vmatpush1.msra.mxu0 0.0
    %2695 = vmatprep.subr.mxu0 0.0
    %2696 = vmatpush1.msra.mxu0 0.0
    %2697 = vmatprep.subr.mxu0 0.0
    %2698 = vmatpush1.msra.mxu0 0.0
    %2699 = vmatprep.subr.mxu0 0.0
    %2700 = vmatpush1.msra.mxu0 0.0
    %2701 = vmatprep.subr.mxu0 0.0
    %2702 = vmatpush1.msra.mxu0 0.0
    %2703 = vmatprep.subr.mxu0 0.0
    %2704 = vmatpush1.msra.mxu0 0.0
    %2705 = vmatprep.subr.mxu0 0.0
    %2706 = vmatpush1.msra.mxu0 0.0
    %2707 = vmatprep.subr.mxu0 0.0
    %2708 = vmatpush1.msra.mxu0 0.0
    %2709 = vmatprep.subr.mxu0 0.0
    %2710 = vmatpush1.msra.mxu0 0.0
    %2711 = vmatprep.mubr.f32.mxu0 0.0
    %2712 = vmatmul.mubr.f32.gmra.mrb[0].mxu0 %v2645
    %v2713 = vpop.f32.mrb[0].mxu0
    %v2714 = vadd.f32 0.0, %v2713
    %v2715 = vpop.f32.mrb[0].mxu0
    %2716 = vdwg.mxu0
    %v2717 = vpack.c.bf16 %v2714, %v2714
    %s2718 = scalar_lea.vmem %s11, 64
    %v2719 = vld [vmem:[%s2718] sm:$0xff]
    %v2720 = vld [vmem:[%s2718 + $0x8] sm:$0xff]
    %v2721 = vld [vmem:[%s2718 + $0x10] sm:$0xff]
    %v2722 = vld [vmem:[%s2718 + $0x18] sm:$0xff]
    %v2723 = vld [vmem:[%s2718 + $0x20] sm:$0xff]
    %v2724 = vld [vmem:[%s2718 + $0x28] sm:$0xff]
    %v2725 = vld [vmem:[%s2718 + $0x30] sm:$0xff]
    %v2726 = vld [vmem:[%s2718 + $0x38] sm:$0xff]
    %v2735 = vunpack.c.l.b16 %v2719
    %v2736 = vunpack.c.h.b16 %v2719
    %v2737 = vunpack.c.l.b16 %v2720
    %v2738 = vunpack.c.h.b16 %v2720
    %v2739 = vunpack.c.l.b16 %v2721
    %v2740 = vunpack.c.h.b16 %v2721
    %v2741 = vunpack.c.l.b16 %v2722
    %v2742 = vunpack.c.h.b16 %v2722
    %v2743 = vunpack.c.l.b16 %v2723
    %v2744 = vunpack.c.h.b16 %v2723
    %v2745 = vunpack.c.l.b16 %v2724
    %v2746 = vunpack.c.h.b16 %v2724
    %v2747 = vunpack.c.l.b16 %v2725
    %v2748 = vunpack.c.h.b16 %v2725
    %v2749 = vunpack.c.l.b16 %v2726
    %v2750 = vunpack.c.h.b16 %v2726
    %v2751 = vpack.c.b16 %v2737, %v2735
    %v2752 = vpack.c.b16 %v2738, %v2736
    %v2753 = vpack.c.b16 %v2741, %v2739
    %v2754 = vpack.c.b16 %v2742, %v2740
    %v2755 = vpack.c.b16 %v2745, %v2743
    %v2756 = vpack.c.b16 %v2746, %v2744
    %v2757 = vpack.c.b16 %v2749, %v2747
    %v2758 = vpack.c.b16 %v2750, %v2748
    %vm2767 = vcmask 523264
    %v2769 = vsel %vm2767, %v2717, 0
    %2771 = vmatprep.subr.bf16.mxu0 %v2752
    %2772 = vmatpush1.bf16.msra.mxu0 %v2751
    %2773 = vmatprep.subr.bf16.mxu0 %v2754
    %2774 = vmatpush1.bf16.msra.mxu0 %v2753
    %2775 = vmatprep.subr.bf16.mxu0 %v2756
    %2776 = vmatpush1.bf16.msra.mxu0 %v2755
    %2777 = vmatprep.subr.bf16.mxu0 %v2758
    %2778 = vmatpush1.bf16.msra.mxu0 %v2757
    %2779 = vmatprep.subr.bf16.mxu0 0
    %2780 = vmatpush1.bf16.msra.mxu0 0
    %2781 = vmatprep.subr.bf16.mxu0 0
    %2782 = vmatpush1.bf16.msra.mxu0 0
    %2783 = vmatprep.subr.bf16.mxu0 0
    %2784 = vmatpush1.bf16.msra.mxu0 0
    %2785 = vmatprep.subr.bf16.mxu0 0
    %2786 = vmatpush1.bf16.msra.mxu0 0
    %2787 = vmatprep.subr.bf16.mxu0 0
    %2788 = vmatpush1.bf16.msra.mxu0 0
    %2789 = vmatprep.subr.bf16.mxu0 0
    %2790 = vmatpush1.bf16.msra.mxu0 0
    %2791 = vmatprep.subr.bf16.mxu0 0
    %2792 = vmatpush1.bf16.msra.mxu0 0
    %2793 = vmatprep.subr.bf16.mxu0 0
    %2794 = vmatpush1.bf16.msra.mxu0 0
    %2795 = vmatprep.subr.bf16.mxu0 0
    %2796 = vmatpush1.bf16.msra.mxu0 0
    %2797 = vmatprep.subr.bf16.mxu0 0
    %2798 = vmatpush1.bf16.msra.mxu0 0
    %2799 = vmatprep.subr.bf16.mxu0 0
    %2800 = vmatpush1.bf16.msra.mxu0 0
    %2801 = vmatprep.subr.bf16.mxu0 0
    %2802 = vmatpush1.bf16.msra.mxu0 0
    %2803 = vmatprep.mubr.bf16.mxu0 0
    %2804 = vmatmul.mubr.bf16.gmra.mrb[0].mxu0 %v2769
    %v2805 = vpop.f32.mrb[0].mxu0
    %v2806 = vadd.f32 0.0, %v2805
    %v2807 = vpop.f32.mrb[0].mxu0
    %v2808 = vadd.f32 0.0, %v2807
    %v2809 = vpop.f32.mrb[0].mxu0
    %v2810 = vpop.f32.mrb[0].mxu0
    %2811 = vdwg.mxu0
    %v2820 = vunpack.c.l.b16 %v2634
    %v2821 = vunpack.c.h.b16 %v2634
    %v2822 = vunpack.c.l.b16 %v2635
    %v2823 = vunpack.c.h.b16 %v2635
    %v2824 = vunpack.c.l.b16 %v2636
    %v2825 = vunpack.c.h.b16 %v2636
    %v2826 = vunpack.c.l.b16 %v2637
    %v2827 = vunpack.c.h.b16 %v2637
    %v2828 = vunpack.c.l.b16 %v2638
    %v2829 = vunpack.c.h.b16 %v2638
    %v2830 = vunpack.c.l.b16 %v2639
    %v2831 = vunpack.c.h.b16 %v2639
    %v2832 = vunpack.c.l.b16 %v2640
    %v2833 = vunpack.c.h.b16 %v2640
    %v2834 = vunpack.c.l.b16 %v2641
    %v2835 = vunpack.c.h.b16 %v2641
    %v2836 = vpack.c.b16 %v2822, %v2820
    %v2837 = vpack.c.b16 %v2823, %v2821
    %v2838 = vpack.c.b16 %v2826, %v2824
    %v2839 = vpack.c.b16 %v2827, %v2825
    %v2840 = vpack.c.b16 %v2830, %v2828
    %v2841 = vpack.c.b16 %v2831, %v2829
    %v2842 = vpack.c.b16 %v2834, %v2832
    %v2843 = vpack.c.b16 %v2835, %v2833
    %v2853 = vsel %vm2767, %v2633, 0
    %2855 = vmatprep.subr.bf16.mxu0 %v2837
    %2856 = vmatpush1.bf16.msra.mxu0 %v2836
    %2857 = vmatprep.subr.bf16.mxu0 %v2839
    %2858 = vmatpush1.bf16.msra.mxu0 %v2838
    %2859 = vmatprep.subr.bf16.mxu0 %v2841
    %2860 = vmatpush1.bf16.msra.mxu0 %v2840
    %2861 = vmatprep.subr.bf16.mxu0 %v2843
    %2862 = vmatpush1.bf16.msra.mxu0 %v2842
    %2863 = vmatprep.subr.bf16.mxu0 0
    %2864 = vmatpush1.bf16.msra.mxu0 0
    %2865 = vmatprep.subr.bf16.mxu0 0
    %2866 = vmatpush1.bf16.msra.mxu0 0
    %2867 = vmatprep.subr.bf16.mxu0 0
    %2868 = vmatpush1.bf16.msra.mxu0 0
    %2869 = vmatprep.subr.bf16.mxu0 0
    %2870 = vmatpush1.bf16.msra.mxu0 0
    %2871 = vmatprep.subr.bf16.mxu0 0
    %2872 = vmatpush1.bf16.msra.mxu0 0
    %2873 = vmatprep.subr.bf16.mxu0 0
    %2874 = vmatpush1.bf16.msra.mxu0 0
    %2875 = vmatprep.subr.bf16.mxu0 0
    %2876 = vmatpush1.bf16.msra.mxu0 0
    %2877 = vmatprep.subr.bf16.mxu0 0
    %2878 = vmatpush1.bf16.msra.mxu0 0
    %2879 = vmatprep.subr.bf16.mxu0 0
    %2880 = vmatpush1.bf16.msra.mxu0 0
    %2881 = vmatprep.subr.bf16.mxu0 0
    %2882 = vmatpush1.bf16.msra.mxu0 0
    %2883 = vmatprep.subr.bf16.mxu0 0
    %2884 = vmatpush1.bf16.msra.mxu0 0
    %2885 = vmatprep.subr.bf16.mxu0 0
    %2886 = vmatpush1.bf16.msra.mxu0 0
    %2887 = vmatprep.mubr.bf16.mxu0 0
    %2888 = vmatmul.mubr.bf16.gmra.mrb[0].mxu0 %v2853
    %v2889 = vpop.f32.mrb[0].mxu0
    %v2890 = vadd.f32 %v2806, %v2889
    %v2891 = vpop.f32.mrb[0].mxu0
    %v2892 = vadd.f32 %v2808, %v2891
    %v2893 = vpop.f32.mrb[0].mxu0
    %v2894 = vpop.f32.mrb[0].mxu0
    %2895 = vdwg.mxu0
    %s2896 = scalar_lea.vmem [#allocation11], 4
    %v2897 = vld [vmem:[%s2896] sm:$0x3]
    %v2899 = vsel %vm2559, %v2897, 0
    %2901 = vmatprep.subr.mxu0 0.0
    %2902 = vmatpush1.msra.mxu0 %v2557
    %2903 = vmatprep.subr.mxu0 0.0
    %2904 = vmatpush1.msra.mxu0 0.0
    %2905 = vmatprep.subr.mxu0 0.0
    %2906 = vmatpush1.msra.mxu0 0.0
    %2907 = vmatprep.subr.mxu0 0.0
    %2908 = vmatpush1.msra.mxu0 0.0
    %2909 = vmatprep.subr.mxu0 0.0
    %2910 = vmatpush1.msra.mxu0 0.0
    %2911 = vmatprep.subr.mxu0 0.0
    %2912 = vmatpush1.msra.mxu0 0.0
    %2913 = vmatprep.subr.mxu0 0.0
    %2914 = vmatpush1.msra.mxu0 0.0
    %2915 = vmatprep.subr.mxu0 0.0
    %2916 = vmatpush1.msra.mxu0 0.0
    %2917 = vmatprep.subr.mxu0 0.0
    %2918 = vmatpush1.msra.mxu0 0.0
    %2919 = vmatprep.subr.mxu0 0.0
    %2920 = vmatpush1.msra.mxu0 0.0
    %2921 = vmatprep.subr.mxu0 0.0
    %2922 = vmatpush1.msra.mxu0 0.0
    %2923 = vmatprep.subr.mxu0 0.0
    %2924 = vmatpush1.msra.mxu0 0.0
    %2925 = vmatprep.subr.mxu0 0.0
    %2926 = vmatpush1.msra.mxu0 0.0
    %2927 = vmatprep.subr.mxu0 0.0
    %2928 = vmatpush1.msra.mxu0 0.0
    %2929 = vmatprep.subr.mxu0 0.0
    %2930 = vmatpush1.msra.mxu0 0.0
    %2931 = vmatprep.subr.mxu0 0.0
    %2932 = vmatpush1.msra.mxu0 0.0
    %2933 = vmatprep.subr.mxu0 0.0
    %2934 = vmatpush1.msra.mxu0 0.0
    %2935 = vmatprep.subr.mxu0 0.0
    %2936 = vmatpush1.msra.mxu0 0.0
    %2937 = vmatprep.subr.mxu0 0.0
    %2938 = vmatpush1.msra.mxu0 0.0
    %2939 = vmatprep.subr.mxu0 0.0
    %2940 = vmatpush1.msra.mxu0 0.0
    %2941 = vmatprep.subr.mxu0 0.0
    %2942 = vmatpush1.msra.mxu0 0.0
    %2943 = vmatprep.subr.mxu0 0.0
    %2944 = vmatpush1.msra.mxu0 0.0
    %2945 = vmatprep.subr.mxu0 0.0
    %2946 = vmatpush1.msra.mxu0 0.0
    %2947 = vmatprep.subr.mxu0 0.0
    %2948 = vmatpush1.msra.mxu0 0.0
    %2949 = vmatprep.subr.mxu0 0.0
    %2950 = vmatpush1.msra.mxu0 0.0
    %2951 = vmatprep.subr.mxu0 0.0
    %2952 = vmatpush1.msra.mxu0 0.0
    %2953 = vmatprep.subr.mxu0 0.0
    %2954 = vmatpush1.msra.mxu0 0.0
    %2955 = vmatprep.subr.mxu0 0.0
    %2956 = vmatpush1.msra.mxu0 0.0
    %2957 = vmatprep.subr.mxu0 0.0
    %2958 = vmatpush1.msra.mxu0 0.0
    %2959 = vmatprep.subr.mxu0 0.0
    %2960 = vmatpush1.msra.mxu0 0.0
    %2961 = vmatprep.subr.mxu0 0.0
    %2962 = vmatpush1.msra.mxu0 0.0
    %2963 = vmatprep.subr.mxu0 0.0
    %2964 = vmatpush1.msra.mxu0 0.0
    %2965 = vmatprep.mubr.f32.mxu0 0.0
    %2966 = vmatmul.mubr.f32.gmra.mrb[0].mxu0 %v2899
    %v2967 = vpop.f32.mrb[0].mxu0
    %v2968 = vadd.f32 0.0, %v2967
    %v2969 = vpop.f32.mrb[0].mxu0
    %2970 = vdwg.mxu0
    %v2971 = vpack.c.bf16 %v2968, %v2968
    %s2972 = scalar_lea.vmem %s11, 128
    %v2973 = vld [vmem:[%s2972] sm:$0xff]
    %v2974 = vld [vmem:[%s2972 + $0x8] sm:$0xff]
    %v2975 = vld [vmem:[%s2972 + $0x10] sm:$0xff]
    %v2976 = vld [vmem:[%s2972 + $0x18] sm:$0xff]
    %v2977 = vld [vmem:[%s2972 + $0x20] sm:$0xff]
    %v2978 = vld [vmem:[%s2972 + $0x28] sm:$0xff]
    %v2979 = vld [vmem:[%s2972 + $0x30] sm:$0xff]
    %v2980 = vld [vmem:[%s2972 + $0x38] sm:$0xff]
    %v2989 = vunpack.c.l.b16 %v2973
    %v2990 = vunpack.c.h.b16 %v2973
    %v2991 = vunpack.c.l.b16 %v2974
    %v2992 = vunpack.c.h.b16 %v2974
    %v2993 = vunpack.c.l.b16 %v2975
    %v2994 = vunpack.c.h.b16 %v2975
    %v2995 = vunpack.c.l.b16 %v2976
    %v2996 = vunpack.c.h.b16 %v2976
    %v2997 = vunpack.c.l.b16 %v2977
    %v2998 = vunpack.c.h.b16 %v2977
    %v2999 = vunpack.c.l.b16 %v2978
    %v3000 = vunpack.c.h.b16 %v2978
    %v3001 = vunpack.c.l.b16 %v2979
    %v3002 = vunpack.c.h.b16 %v2979
    %v3003 = vunpack.c.l.b16 %v2980
    %v3004 = vunpack.c.h.b16 %v2980
    %v3005 = vpack.c.b16 %v2991, %v2989
    %v3006 = vpack.c.b16 %v2992, %v2990
    %v3007 = vpack.c.b16 %v2995, %v2993
    %v3008 = vpack.c.b16 %v2996, %v2994
    %v3009 = vpack.c.b16 %v2999, %v2997
    %v3010 = vpack.c.b16 %v3000, %v2998
    %v3011 = vpack.c.b16 %v3003, %v3001
    %v3012 = vpack.c.b16 %v3004, %v3002
    %v3022 = vsel %vm2767, %v2971, 0
    %3024 = vmatprep.subr.bf16.mxu0 %v3006
    %3025 = vmatpush1.bf16.msra.mxu0 %v3005
    %3026 = vmatprep.subr.bf16.mxu0 %v3008
    %3027 = vmatpush1.bf16.msra.mxu0 %v3007
    %3028 = vmatprep.subr.bf16.mxu0 %v3010
    %3029 = vmatpush1.bf16.msra.mxu0 %v3009
    %3030 = vmatprep.subr.bf16.mxu0 %v3012
    %3031 = vmatpush1.bf16.msra.mxu0 %v3011
    %3032 = vmatprep.subr.bf16.mxu0 0
    %3033 = vmatpush1.bf16.msra.mxu0 0
    %3034 = vmatprep.subr.bf16.mxu0 0
    %3035 = vmatpush1.bf16.msra.mxu0 0
    %3036 = vmatprep.subr.bf16.mxu0 0
    %3037 = vmatpush1.bf16.msra.mxu0 0
    %3038 = vmatprep.subr.bf16.mxu0 0
    %3039 = vmatpush1.bf16.msra.mxu0 0
    %3040 = vmatprep.subr.bf16.mxu0 0
    %3041 = vmatpush1.bf16.msra.mxu0 0
    %3042 = vmatprep.subr.bf16.mxu0 0
    %3043 = vmatpush1.bf16.msra.mxu0 0
    %3044 = vmatprep.subr.bf16.mxu0 0
    %3045 = vmatpush1.bf16.msra.mxu0 0
    %3046 = vmatprep.subr.bf16.mxu0 0
    %3047 = vmatpush1.bf16.msra.mxu0 0
    %3048 = vmatprep.subr.bf16.mxu0 0
    %3049 = vmatpush1.bf16.msra.mxu0 0
    %3050 = vmatprep.subr.bf16.mxu0 0
    %3051 = vmatpush1.bf16.msra.mxu0 0
    %3052 = vmatprep.subr.bf16.mxu0 0
    %3053 = vmatpush1.bf16.msra.mxu0 0
    %3054 = vmatprep.subr.bf16.mxu0 0
    %3055 = vmatpush1.bf16.msra.mxu0 0
    %3056 = vmatprep.mubr.bf16.mxu0 0
    %3057 = vmatmul.mubr.bf16.gmra.mrb[0].mxu0 %v3022
    %v3058 = vpop.f32.mrb[0].mxu0
    %v3059 = vadd.f32 0.0, %v3058
    %v3060 = vpop.f32.mrb[0].mxu0
    %v3061 = vadd.f32 0.0, %v3060
    %v3062 = vpop.f32.mrb[0].mxu0
    %v3063 = vpop.f32.mrb[0].mxu0
    %3064 = vdwg.mxu0
    %v3065 = vadd.f32 %v2890, %v3059
    %v3066 = vadd.f32 %v2892, %v3061
    %s3067 = scalar_lea.vmem [#allocation11], 6
    %v3068 = vld [vmem:[%s3067] sm:$0x3]
    %v3070 = vsel %vm2559, %v3068, 0
    %3072 = vmatprep.subr.mxu0 0.0
    %3073 = vmatpush1.msra.mxu0 %v2557
    %3074 = vmatprep.subr.mxu0 0.0
    %3075 = vmatpush1.msra.mxu0 0.0
    %3076 = vmatprep.subr.mxu0 0.0
    %3077 = vmatpush1.msra.mxu0 0.0
    %3078 = vmatprep.subr.mxu0 0.0
    %3079 = vmatpush1.msra.mxu0 0.0
    %3080 = vmatprep.subr.mxu0 0.0
    %3081 = vmatpush1.msra.mxu0 0.0
    %3082 = vmatprep.subr.mxu0 0.0
    %3083 = vmatpush1.msra.mxu0 0.0
    %3084 = vmatprep.subr.mxu0 0.0
    %3085 = vmatpush1.msra.mxu0 0.0
    %3086 = vmatprep.subr.mxu0 0.0
    %3087 = vmatpush1.msra.mxu0 0.0
    %3088 = vmatprep.subr.mxu0 0.0
    %3089 = vmatpush1.msra.mxu0 0.0
    %3090 = vmatprep.subr.mxu0 0.0
    %3091 = vmatpush1.msra.mxu0 0.0
    %3092 = vmatprep.subr.mxu0 0.0
    %3093 = vmatpush1.msra.mxu0 0.0
    %3094 = vmatprep.subr.mxu0 0.0
    %3095 = vmatpush1.msra.mxu0 0.0
    %3096 = vmatprep.subr.mxu0 0.0
    %3097 = vmatpush1.msra.mxu0 0.0
    %3098 = vmatprep.subr.mxu0 0.0
    %3099 = vmatpush1.msra.mxu0 0.0
    %3100 = vmatprep.subr.mxu0 0.0
    %3101 = vmatpush1.msra.mxu0 0.0
    %3102 = vmatprep.subr.mxu0 0.0
    %3103 = vmatpush1.msra.mxu0 0.0
    %3104 = vmatprep.subr.mxu0 0.0
    %3105 = vmatpush1.msra.mxu0 0.0
    %3106 = vmatprep.subr.mxu0 0.0
    %3107 = vmatpush1.msra.mxu0 0.0
    %3108 = vmatprep.subr.mxu0 0.0
    %3109 = vmatpush1.msra.mxu0 0.0
    %3110 = vmatprep.subr.mxu0 0.0
    %3111 = vmatpush1.msra.mxu0 0.0
    %3112 = vmatprep.subr.mxu0 0.0
    %3113 = vmatpush1.msra.mxu0 0.0
    %3114 = vmatprep.subr.mxu0 0.0
    %3115 = vmatpush1.msra.mxu0 0.0
    %3116 = vmatprep.subr.mxu0 0.0
    %3117 = vmatpush1.msra.mxu0 0.0
    %3118 = vmatprep.subr.mxu0 0.0
    %3119 = vmatpush1.msra.mxu0 0.0
    %3120 = vmatprep.subr.mxu0 0.0
    %3121 = vmatpush1.msra.mxu0 0.0
    %3122 = vmatprep.subr.mxu0 0.0
    %3123 = vmatpush1.msra.mxu0 0.0
    %3124 = vmatprep.subr.mxu0 0.0
    %3125 = vmatpush1.msra.mxu0 0.0
    %3126 = vmatprep.subr.mxu0 0.0
    %3127 = vmatpush1.msra.mxu0 0.0
    %3128 = vmatprep.subr.mxu0 0.0
    %3129 = vmatpush1.msra.mxu0 0.0
    %3130 = vmatprep.subr.mxu0 0.0
    %3131 = vmatpush1.msra.mxu0 0.0
    %3132 = vmatprep.subr.mxu0 0.0
    %3133 = vmatpush1.msra.mxu0 0.0
    %3134 = vmatprep.subr.mxu0 0.0
    %3135 = vmatpush1.msra.mxu0 0.0
    %3136 = vmatprep.mubr.f32.mxu0 0.0
    %3137 = vmatmul.mubr.f32.gmra.mrb[0].mxu0 %v3070
    %v3138 = vpop.f32.mrb[0].mxu0
    %v3139 = vadd.f32 0.0, %v3138
    %v3140 = vpop.f32.mrb[0].mxu0
    %3141 = vdwg.mxu0
    %v3142 = vpack.c.bf16 %v3139, %v3139
    %s3143 = scalar_lea.vmem %s11, 192
    %v3144 = vld [vmem:[%s3143] sm:$0xff]
    %v3145 = vld [vmem:[%s3143 + $0x8] sm:$0xff]
    %v3146 = vld [vmem:[%s3143 + $0x10] sm:$0xff]
    %v3147 = vld [vmem:[%s3143 + $0x18] sm:$0xff]
    %v3148 = vld [vmem:[%s3143 + $0x20] sm:$0xff]
    %v3149 = vld [vmem:[%s3143 + $0x28] sm:$0xff]
    %v3150 = vld [vmem:[%s3143 + $0x30] sm:$0xff]
    %v3151 = vld [vmem:[%s3143 + $0x38] sm:$0xff]
    %v3160 = vunpack.c.l.b16 %v3144
    %v3161 = vunpack.c.h.b16 %v3144
    %v3162 = vunpack.c.l.b16 %v3145
    %v3163 = vunpack.c.h.b16 %v3145
    %v3164 = vunpack.c.l.b16 %v3146
    %v3165 = vunpack.c.h.b16 %v3146
    %v3166 = vunpack.c.l.b16 %v3147
    %v3167 = vunpack.c.h.b16 %v3147
    %v3168 = vunpack.c.l.b16 %v3148
    %v3169 = vunpack.c.h.b16 %v3148
    %v3170 = vunpack.c.l.b16 %v3149
    %v3171 = vunpack.c.h.b16 %v3149
    %v3172 = vunpack.c.l.b16 %v3150
    %v3173 = vunpack.c.h.b16 %v3150
    %v3174 = vunpack.c.l.b16 %v3151
    %v3175 = vunpack.c.h.b16 %v3151
    %v3176 = vpack.c.b16 %v3162, %v3160
    %v3177 = vpack.c.b16 %v3163, %v3161
    %v3178 = vpack.c.b16 %v3166, %v3164
    %v3179 = vpack.c.b16 %v3167, %v3165
    %v3180 = vpack.c.b16 %v3170, %v3168
    %v3181 = vpack.c.b16 %v3171, %v3169
    %v3182 = vpack.c.b16 %v3174, %v3172
    %v3183 = vpack.c.b16 %v3175, %v3173
    %v3193 = vsel %vm2767, %v3142, 0
    %3195 = vmatprep.subr.bf16.mxu0 %v3177
    %3196 = vmatpush1.bf16.msra.mxu0 %v3176
    %3197 = vmatprep.subr.bf16.mxu0 %v3179
    %3198 = vmatpush1.bf16.msra.mxu0 %v3178
    %3199 = vmatprep.subr.bf16.mxu0 %v3181
    %3200 = vmatpush1.bf16.msra.mxu0 %v3180
    %3201 = vmatprep.subr.bf16.mxu0 %v3183
    %3202 = vmatpush1.bf16.msra.mxu0 %v3182
    %3203 = vmatprep.subr.bf16.mxu0 0
    %3204 = vmatpush1.bf16.msra.mxu0 0
    %3205 = vmatprep.subr.bf16.mxu0 0
    %3206 = vmatpush1.bf16.msra.mxu0 0
    %3207 = vmatprep.subr.bf16.mxu0 0
    %3208 = vmatpush1.bf16.msra.mxu0 0
    %3209 = vmatprep.subr.bf16.mxu0 0
    %3210 = vmatpush1.bf16.msra.mxu0 0
    %3211 = vmatprep.subr.bf16.mxu0 0
    %3212 = vmatpush1.bf16.msra.mxu0 0
    %3213 = vmatprep.subr.bf16.mxu0 0
    %3214 = vmatpush1.bf16.msra.mxu0 0
    %3215 = vmatprep.subr.bf16.mxu0 0
    %3216 = vmatpush1.bf16.msra.mxu0 0
    %3217 = vmatprep.subr.bf16.mxu0 0
    %3218 = vmatpush1.bf16.msra.mxu0 0
    %3219 = vmatprep.subr.bf16.mxu0 0
    %3220 = vmatpush1.bf16.msra.mxu0 0
    %3221 = vmatprep.subr.bf16.mxu0 0
    %3222 = vmatpush1.bf16.msra.mxu0 0
    %3223 = vmatprep.subr.bf16.mxu0 0
    %3224 = vmatpush1.bf16.msra.mxu0 0
    %3225 = vmatprep.subr.bf16.mxu0 0
    %3226 = vmatpush1.bf16.msra.mxu0 0
    %3227 = vmatprep.mubr.bf16.mxu0 0
    %3228 = vmatmul.mubr.bf16.gmra.mrb[0].mxu0 %v3193
    %v3229 = vpop.f32.mrb[0].mxu0
    %v3230 = vadd.f32 0.0, %v3229
    %v3231 = vpop.f32.mrb[0].mxu0
    %v3232 = vadd.f32 0.0, %v3231
    %v3233 = vpop.f32.mrb[0].mxu0
    %v3234 = vpop.f32.mrb[0].mxu0
    %3235 = vdwg.mxu0
    %v3236 = vadd.f32 %v3065, %v3230
    %v3237 = vadd.f32 %v3066, %v3232
    %v3238 = vld [vmem:[%s12] sm:$0x3]
    %v3240 = vlaneseq
    %v3241 = vshrl.u32 %v3240, 7
    %v3242 = vsub.s32 0, %v3241
    %v3243 = vrot.slane %v3238, %v3242
    %v3244 = vlaneseq
    %v3245 = vshrl.u32 %v3244, 7
    %v3246 = vsub.s32 1, %v3245
    %v3247 = vrot.slane %v3238, %v3246
    %v3250 = vadd.f32 %v3236, %v3243
    %v3251 = vadd.f32 %v3237, %v3247
    %v3252 = vmax.f32 %v3250, 0.0
    %v3253 = vmax.f32 %v3251, 0.0
    %v3254 = vpack.c.bf16 %v3252, %v3252
    %v3255 = vpack.c.bf16 %v3253, %v3253
    %v3256 = vld [vmem:[%s13] sm:$0xf]
    %v3257 = vld [vmem:[%s13 + $0x4] sm:$0xf]
    %v3258 = vld [vmem:[%s13 + $0x8] sm:$0xf]
    %v3259 = vld [vmem:[%s13 + $0xc] sm:$0xf]
    %v3260 = vld [vmem:[%s13 + $0x10] sm:$0xf]
    %v3261 = vld [vmem:[%s13 + $0x14] sm:$0xf]
    %v3262 = vld [vmem:[%s13 + $0x18] sm:$0xf]
    %v3263 = vld [vmem:[%s13 + $0x1c] sm:$0xf]
    %v3264 = vld [vmem:[%s13 + $0x20] sm:$0xf]
    %v3265 = vld [vmem:[%s13 + $0x24] sm:$0xf]
    %v3266 = vld [vmem:[%s13 + $0x28] sm:$0xf]
    %v3267 = vld [vmem:[%s13 + $0x2c] sm:$0xf]
    %v3268 = vld [vmem:[%s13 + $0x30] sm:$0xf]
    %v3269 = vld [vmem:[%s13 + $0x34] sm:$0xf]
    %v3270 = vld [vmem:[%s13 + $0x38] sm:$0xf]
    %v3271 = vld [vmem:[%s13 + $0x3c] sm:$0xf]
    %v3272 = vld [vmem:[%s13 + $0x40] sm:$0xf]
    %v3273 = vld [vmem:[%s13 + $0x44] sm:$0xf]
    %v3274 = vld [vmem:[%s13 + $0x48] sm:$0xf]
    %v3275 = vld [vmem:[%s13 + $0x4c] sm:$0xf]
    %v3276 = vld [vmem:[%s13 + $0x50] sm:$0xf]
    %v3277 = vld [vmem:[%s13 + $0x54] sm:$0xf]
    %v3278 = vld [vmem:[%s13 + $0x58] sm:$0xf]
    %v3279 = vld [vmem:[%s13 + $0x5c] sm:$0xf]
    %v3280 = vld [vmem:[%s13 + $0x60] sm:$0xf]
    %v3281 = vld [vmem:[%s13 + $0x64] sm:$0xf]
    %v3282 = vld [vmem:[%s13 + $0x68] sm:$0xf]
    %v3283 = vld [vmem:[%s13 + $0x6c] sm:$0xf]
    %v3284 = vld [vmem:[%s13 + $0x70] sm:$0xf]
    %v3285 = vld [vmem:[%s13 + $0x74] sm:$0xf]
    %v3286 = vld [vmem:[%s13 + $0x78] sm:$0xf]
    %v3287 = vld [vmem:[%s13 + $0x7c] sm:$0xf]
    %v3288 = vld [vmem:[#allocation13] sm:$0x1]
    %v3290 = vlaneseq
    %v3291 = vshrl.u32 %v3290, 7
    %v3292 = vsub.s32 0, %v3291
    %v3293 = vrot.slane %v3288, %v3292
    %v3327 = vunpack.c.l.b16 %v3256
    %v3328 = vunpack.c.l.b16 %v3257
    %v3329 = vunpack.c.l.b16 %v3258
    %v3330 = vunpack.c.l.b16 %v3259
    %v3331 = vunpack.c.l.b16 %v3260
    %v3332 = vunpack.c.l.b16 %v3261
    %v3333 = vunpack.c.l.b16 %v3262
    %v3334 = vunpack.c.l.b16 %v3263
    %v3335 = vunpack.c.l.b16 %v3264
    %v3336 = vunpack.c.l.b16 %v3265
    %v3337 = vunpack.c.l.b16 %v3266
    %v3338 = vunpack.c.l.b16 %v3267
    %v3339 = vunpack.c.l.b16 %v3268
    %v3340 = vunpack.c.l.b16 %v3269
    %v3341 = vunpack.c.l.b16 %v3270
    %v3342 = vunpack.c.l.b16 %v3271
    %v3343 = vunpack.c.l.b16 %v3272
    %v3344 = vunpack.c.l.b16 %v3273
    %v3345 = vunpack.c.l.b16 %v3274
    %v3346 = vunpack.c.l.b16 %v3275
    %v3347 = vunpack.c.l.b16 %v3276
    %v3348 = vunpack.c.l.b16 %v3277
    %v3349 = vunpack.c.l.b16 %v3278
    %v3350 = vunpack.c.l.b16 %v3279
    %v3351 = vunpack.c.l.b16 %v3280
    %v3352 = vunpack.c.l.b16 %v3281
    %v3353 = vunpack.c.l.b16 %v3282
    %v3354 = vunpack.c.l.b16 %v3283
    %v3355 = vunpack.c.l.b16 %v3284
    %v3356 = vunpack.c.l.b16 %v3285
    %v3357 = vunpack.c.l.b16 %v3286
    %v3358 = vunpack.c.l.b16 %v3287
    %v3359 = vpack.c.b16 %v3328, %v3327
    %v3360 = vpack.c.b16 %v3330, %v3329
    %v3361 = vpack.c.b16 %v3332, %v3331
    %v3362 = vpack.c.b16 %v3334, %v3333
    %v3363 = vpack.c.b16 %v3336, %v3335
    %v3364 = vpack.c.b16 %v3338, %v3337
    %v3365 = vpack.c.b16 %v3340, %v3339
    %v3366 = vpack.c.b16 %v3342, %v3341
    %v3367 = vpack.c.b16 %v3344, %v3343
    %v3368 = vpack.c.b16 %v3346, %v3345
    %v3369 = vpack.c.b16 %v3348, %v3347
    %v3370 = vpack.c.b16 %v3350, %v3349
    %v3371 = vpack.c.b16 %v3352, %v3351
    %v3372 = vpack.c.b16 %v3354, %v3353
    %v3373 = vpack.c.b16 %v3356, %v3355
    %v3374 = vpack.c.b16 %v3358, %v3357
    %3391 = vmatprep.subr.bf16.mxu0 0
    %3392 = vmatpush1.bf16.msra.mxu0 %v3359
    %3393 = vmatprep.subr.bf16.mxu0 0
    %3394 = vmatpush1.bf16.msra.mxu0 %v3360
    %3395 = vmatprep.subr.bf16.mxu0 0
    %3396 = vmatpush1.bf16.msra.mxu0 %v3361
    %3397 = vmatprep.subr.bf16.mxu0 0
    %3398 = vmatpush1.bf16.msra.mxu0 %v3362
    %3399 = vmatprep.subr.bf16.mxu0 0
    %3400 = vmatpush1.bf16.msra.mxu0 %v3363
    %3401 = vmatprep.subr.bf16.mxu0 0
    %3402 = vmatpush1.bf16.msra.mxu0 %v3364
    %3403 = vmatprep.subr.bf16.mxu0 0
    %3404 = vmatpush1.bf16.msra.mxu0 %v3365
    %3405 = vmatprep.subr.bf16.mxu0 0
    %3406 = vmatpush1.bf16.msra.mxu0 %v3366
    %3407 = vmatprep.subr.bf16.mxu0 0
    %3408 = vmatpush1.bf16.msra.mxu0 %v3367
    %3409 = vmatprep.subr.bf16.mxu0 0
    %3410 = vmatpush1.bf16.msra.mxu0 %v3368
    %3411 = vmatprep.subr.bf16.mxu0 0
    %3412 = vmatpush1.bf16.msra.mxu0 %v3369
    %3413 = vmatprep.subr.bf16.mxu0 0
    %3414 = vmatpush1.bf16.msra.mxu0 %v3370
    %3415 = vmatprep.subr.bf16.mxu0 0
    %3416 = vmatpush1.bf16.msra.mxu0 %v3371
    %3417 = vmatprep.subr.bf16.mxu0 0
    %3418 = vmatpush1.bf16.msra.mxu0 %v3372
    %3419 = vmatprep.subr.bf16.mxu0 0
    %3420 = vmatpush1.bf16.msra.mxu0 %v3373
    %3421 = vmatprep.subr.bf16.mxu0 0
    %3422 = vmatpush1.bf16.msra.mxu0 %v3374
    %3423 = vmatprep.mubr.bf16.mxu0 %v3255
    %3424 = vmatmul.mubr.bf16.gmra.mrb[0].mxu0 %v3254
    %v3425 = vpop.f32.mrb[0].mxu0
    %v3426 = vadd.f32 %v3293, %v3425
    %v3427 = vpop.f32.mrb[0].mxu0
    %v3428 = vpop.f32.mrb[0].mxu0
    %v3429 = vpop.f32.mrb[0].mxu0
    %3430 = vdwg.mxu0
    %v3431 = vmax.f32 %v3426, 0.0
    %v3432 = vld [vmem:[%s15] sm:$0xff]
    %v3433 = vld [vmem:[%s15 + $0x8] sm:$0xff]
    %v3434 = vld [vmem:[%s15 + $0x10] sm:$0xff]
    %v3435 = vld [vmem:[%s15 + $0x18] sm:$0xff]
    %v3436 = vld [vmem:[%s15 + $0x20] sm:$0xff]
    %v3437 = vld [vmem:[%s15 + $0x28] sm:$0xff]
    %v3438 = vld [vmem:[%s15 + $0x30] sm:$0xff]
    %v3439 = vld [vmem:[%s15 + $0x38] sm:$0xff]
    %v3440 = vld [vmem:[%s15 + $0x40] sm:$0xff]
    %v3441 = vld [vmem:[%s15 + $0x48] sm:$0xff]
    %v3442 = vld [vmem:[%s15 + $0x50] sm:$0xf]
    %v3443 = vld [vmem:[#allocation14] sm:$0x1]
    %v3445 = vlaneseq
    %v3446 = vshrl.u32 %v3445, 7
    %v3447 = vsub.s32 0, %v3446
    %v3448 = vrot.slane %v3443, %v3447
    %vm3450 = vcmask 687104
    %v3452 = vsel %vm3450, %v3431, 0
    %v3455 = vsel %vm209, %v3442, 0
    %3457 = vmatprep.subr.mxu0 0.0
    %3458 = vmatpush1.msra.mxu0 %v3432
    %3459 = vmatprep.subr.mxu0 0.0
    %3460 = vmatpush1.msra.mxu0 %v3433
    %3461 = vmatprep.subr.mxu0 0.0
    %3462 = vmatpush1.msra.mxu0 %v3434
    %3463 = vmatprep.subr.mxu0 0.0
    %3464 = vmatpush1.msra.mxu0 %v3435
    %3465 = vmatprep.subr.mxu0 0.0
    %3466 = vmatpush1.msra.mxu0 %v3436
    %3467 = vmatprep.subr.mxu0 0.0
    %3468 = vmatpush1.msra.mxu0 %v3437
    %3469 = vmatprep.subr.mxu0 0.0
    %3470 = vmatpush1.msra.mxu0 %v3438
    %3471 = vmatprep.subr.mxu0 0.0
    %3472 = vmatpush1.msra.mxu0 %v3439
    %3473 = vmatprep.subr.mxu0 0.0
    %3474 = vmatpush1.msra.mxu0 %v3440
    %3475 = vmatprep.subr.mxu0 0.0
    %3476 = vmatpush1.msra.mxu0 %v3441
    %3477 = vmatprep.subr.mxu0 0.0
    %3478 = vmatpush1.msra.mxu0 %v3455
    %3479 = vmatprep.subr.mxu0 0.0
    %3480 = vmatpush1.msra.mxu0 0.0
    %3481 = vmatprep.subr.mxu0 0.0
    %3482 = vmatpush1.msra.mxu0 0.0
    %3483 = vmatprep.subr.mxu0 0.0
    %3484 = vmatpush1.msra.mxu0 0.0
    %3485 = vmatprep.subr.mxu0 0.0
    %3486 = vmatpush1.msra.mxu0 0.0
    %3487 = vmatprep.subr.mxu0 0.0
    %3488 = vmatpush1.msra.mxu0 0.0
    %3489 = vmatprep.subr.mxu0 0.0
    %3490 = vmatpush1.msra.mxu0 0.0
    %3491 = vmatprep.subr.mxu0 0.0
    %3492 = vmatpush1.msra.mxu0 0.0
    %3493 = vmatprep.subr.mxu0 0.0
    %3494 = vmatpush1.msra.mxu0 0.0
    %3495 = vmatprep.subr.mxu0 0.0
    %3496 = vmatpush1.msra.mxu0 0.0
    %3497 = vmatprep.subr.mxu0 0.0
    %3498 = vmatpush1.msra.mxu0 0.0
    %3499 = vmatprep.subr.mxu0 0.0
    %3500 = vmatpush1.msra.mxu0 0.0
    %3501 = vmatprep.subr.mxu0 0.0
    %3502 = vmatpush1.msra.mxu0 0.0
    %3503 = vmatprep.subr.mxu0 0.0
    %3504 = vmatpush1.msra.mxu0 0.0
    %3505 = vmatprep.subr.mxu0 0.0
    %3506 = vmatpush1.msra.mxu0 0.0
    %3507 = vmatprep.subr.mxu0 0.0
    %3508 = vmatpush1.msra.mxu0 0.0
    %3509 = vmatprep.subr.mxu0 0.0
    %3510 = vmatpush1.msra.mxu0 0.0
    %3511 = vmatprep.subr.mxu0 0.0
    %3512 = vmatpush1.msra.mxu0 0.0
    %3513 = vmatprep.subr.mxu0 0.0
    %3514 = vmatpush1.msra.mxu0 0.0
    %3515 = vmatprep.subr.mxu0 0.0
    %3516 = vmatpush1.msra.mxu0 0.0
    %3517 = vmatprep.subr.mxu0 0.0
    %3518 = vmatpush1.msra.mxu0 0.0
    %3519 = vmatprep.subr.mxu0 0.0
    %3520 = vmatpush1.msra.mxu0 0.0
    %3521 = vmatprep.mubr.f32.mxu0 0.0
    %3522 = vmatmul.mubr.f32.gmra.mrb[0].mxu0 %v3452
    %v3523 = vpop.f32.mrb[0].mxu0
    %v3524 = vadd.f32 %v3448, %v3523
    %v3525 = vpop.f32.mrb[0].mxu0
    %3526 = vdwg.mxu0
    %vm3527 = vcmask 74752
    %3528 = vst.msk [vmem:[#allocation16] sm:$0x3] %vm3527, %v3524
    // Predicated region
    $region102: #{network_forward.1} parent=1 // pred_check
      _
    $region103: #{network_forward.1} parent=1 // pred_check_branch
      %3530 = sbr.rel (0) target = $region105
    $region104: #{network_forward.1} parent=1 // pred_region
      %s3532 = ssub.s32 32, 32
      %3533 = vsyncadd [#allocation4], %s3532
      %s3535 = sshll.u32 [#allocation16], 4
      %s3536 = int_to_ptr.vmem [resolvable:$true] %s3535
      %3538 = dma.vmem_to_hbm [thread:$0]  %s3536, 32, %s17, [#allocation4]
    $region105: #{network_forward.1} parent=1 // pred_fallthru
      _
    // Predicated region
    $region106: #{network_forward.1} parent=1 // pred_check
      _
    $region107: #{network_forward.1} parent=1 // pred_check_branch
      %3540 = sbr.rel (0) target = $region109
    $region108: #{network_forward.1} parent=1 // pred_region
      %3541 = dma.done [#allocation4], 32
    $region109: #{network_forward.1} parent=1 // pred_fallthru
      _
    %3542 = vsyncpa [#allocation3], 1
    %3543 = vsyncpa [#allocation6], 1
    %3544 = vsyncpa [#allocation9], 1
    %3545 = vsyncpa [#allocation12], 1
    %3546 = vsyncpa [#allocation15], 1
    %3547 = vsyncpa [#allocation4], 1

</llo_original>
